<compile_context>
chip_gen: v5e
topology: v5e:2x2
jax: 0.10.0
libtpu: 0.0.40
codegen_flags: <defaults>
</compile_context>

<pallas_src>
import jax
import jax.numpy as jnp
from jax.experimental import pallas as pl
from jax.experimental.pallas import tpu as pltpu

EPS = 1e-5   # nn.BatchNorm1d default eps
LANE = 128


def _round_up(n, m):
    return ((n + m - 1) // m) * m


def mlp_kernel(x_ref,
               w1_ref, b1_ref,
               w2_ref, b2_ref,
               w3_ref, b3_ref,
               w4_ref, b4_ref,
               o_ref):
    """One batch tile of the fused 4-layer MLP (eval mode, BN pre-folded into weights)."""
    x = x_ref[...]                                           # bf16, lane-dense (tb, 384)

    # Block 1: Linear(384p, 512) -> LeakyReLU(0.001)   [BN1 folded into W2/b2; Dropout=id]
    h = jnp.dot(x, w1_ref[...], preferred_element_type=jnp.float32) + b1_ref[...]
    h = h.astype(jnp.bfloat16)
    h = jnp.maximum(h, 0.001 * h)

    # Block 2: Linear(512, 1024) -> LeakyReLU(0.001)   [BN2 folded into W3/b3]
    h = jnp.dot(h, w2_ref[...], preferred_element_type=jnp.float32) + b2_ref[...]
    h = h.astype(jnp.bfloat16)
    h = jnp.maximum(h, 0.001 * h)

    # Block 3: Linear(1024, 512) -> LeakyReLU(0.01)    [BN3 folded into W4/b4]
    h = jnp.dot(h, w3_ref[...], preferred_element_type=jnp.float32) + b3_ref[...]
    h = h.astype(jnp.bfloat16)
    h = jnp.maximum(h, 0.01 * h)

    # Head: Linear(512, 768p)
    o_ref[...] = (jnp.dot(h, w4_ref[...], preferred_element_type=jnp.float32)
                  + b4_ref[...]).astype(o_ref.dtype)


def _fold_and_pad(params, f_in_p, out_p):
    """Fold eval-mode BatchNorm into the NEXT layer (in f32), pad, cast weights to bf16."""
    def bn_fold(g, be, m, v):
        s = g * jax.lax.rsqrt(v + EPS)          # (1, d)
        return s, be - m * s

    s1, t1 = bn_fold(params["g1"], params["be1"], params["m1"], params["v1"])
    s2, t2 = bn_fold(params["g2"], params["be2"], params["m2"], params["v2"])
    s3, t3 = bn_fold(params["g3"], params["be3"], params["m3"], params["v3"])

    f_in = params["w1"].shape[0]
    out_size = params["w4"].shape[1]

    w1 = jnp.pad(params["w1"], ((0, f_in_p - f_in), (0, 0)))   # zero-pad K: 377 -> 384
    b1 = params["b1"]
    # (h*s + t) @ W + b  ==  h @ (s[:,None]*W) + (t @ W + b)
    w2 = s1.T * params["w2"]
    b2 = params["b2"] + t1 @ params["w2"]
    w3 = s2.T * params["w3"]
    b3 = params["b3"] + t2 @ params["w3"]
    w4 = s3.T * params["w4"]
    b4 = params["b4"] + t3 @ params["w4"]
    w4 = jnp.pad(w4, ((0, 0), (0, out_p - out_size)))           # zero-pad N: 754 -> 768
    b4 = jnp.pad(b4, ((0, 0), (0, out_p - out_size)))

    bf = lambda w: w.astype(jnp.bfloat16)
    return [bf(w1), b1, bf(w2), b2, bf(w3), b3, bf(w4), b4]


def disease_predictor(x, params, *, tb_max=512):
    """x: [B, 377] float32 -> [B, 754] float32 (eval-mode forward)."""
    B, f_in = x.shape
    out_size = params["w4"].shape[1]

    f_in_p = _round_up(f_in, LANE)      # 377 -> 384
    out_p = _round_up(out_size, LANE)   # 754 -> 768

    # Batch tiling: >=2 grid steps whenever B > 8 (lets v7x shard the parallel axis across
    # its 2 TensorCores), tiles a multiple of 8 rows, minimal zero-row padding.
    n_tiles = max(-(-B // tb_max), 2 if B > 8 else 1)
    tb = _round_up(-(-B // n_tiles), 8)
    Bp = n_tiles * tb

    # bf16 input: halves the per-tile HBM DMA and removes the in-kernel cast.
    xp = jnp.pad(x.astype(jnp.bfloat16), ((0, Bp - B), (0, f_in_p - f_in)))

    flat = _fold_and_pad(params, f_in_p, out_p)

    # Parameters: whole-array blocks with constant index -> VMEM-resident across the
    # batch grid. Activations: batch-tiled on the grid's single (parallel) axis.
    param_specs = [pl.BlockSpec(p.shape, lambda i: (0, 0)) for p in flat]

    flops = 2 * Bp * (f_in_p * 512 + 512 * 1024 + 1024 * 512 + 512 * out_p)
    bytes_accessed = (xp.size * 2 + Bp * out_p * 4
                      + sum(int(p.size) * int(p.dtype.itemsize) for p in flat))
    cost = pl.CostEstimate(flops=int(flops), transcendentals=0,
                           bytes_accessed=int(bytes_accessed))

    out = pl.pallas_call(
        mlp_kernel,
        out_shape=jax.ShapeDtypeStruct((Bp, out_p), jnp.float32),
        grid_spec=pltpu.PrefetchScalarGridSpec(
            num_scalar_prefetch=0,
            grid=(n_tiles,),
            in_specs=[pl.BlockSpec((tb, f_in_p), lambda i: (i, 0))] + param_specs,
            out_specs=pl.BlockSpec((tb, out_p), lambda i: (i, 0)),
        ),
        compiler_params=pltpu.CompilerParams(
            dimension_semantics=("parallel",),
            vmem_limit_bytes=40 * 1024 * 1024,
        ),
        cost_estimate=cost,
    )(xp, *flat)

    return out[:B, :out_size]


def make_params(key, input_size=377, output_size=754):
    dims = [(input_size, 512), (512, 1024), (1024, 512), (512, output_size)]
    params = {}
    keys = jax.random.split(key, 32)
    ki = 0
    for li, (din, dout) in enumerate(dims, start=1):
        lim = 1.0 / jnp.sqrt(jnp.float32(din))
        params[f"w{li}"] = jax.random.uniform(keys[ki], (din, dout), jnp.float32, -lim, lim); ki += 1
        params[f"b{li}"] = jax.random.uniform(keys[ki], (1, dout), jnp.float32, -lim, lim); ki += 1
        if li <= 3:  # BatchNorm1d params/running stats for the first three blocks
            params[f"g{li}"] = 1.0 + 0.1 * jax.random.normal(keys[ki], (1, dout), jnp.float32); ki += 1
            params[f"be{li}"] = 0.1 * jax.random.normal(keys[ki], (1, dout), jnp.float32); ki += 1
            params[f"m{li}"] = 0.1 * jax.random.normal(keys[ki], (1, dout), jnp.float32); ki += 1
            params[f"v{li}"] = jax.random.uniform(keys[ki], (1, dout), jnp.float32, 0.5, 1.5); ki += 1
    return params


def reference_forward_matched(x, folded, f_in_p):
    """Plain-JAX replay of the kernel math (same folded/padded bf16 weights)."""
    w1, b1, w2, b2, w3, b3, w4, b4 = folded
    f_in = x.shape[1]
    h = jnp.pad(x.astype(jnp.bfloat16), ((0, 0), (0, f_in_p - f_in)))

    def blk(h, w, b, slope):
        h = jnp.dot(h, w, preferred_element_type=jnp.float32) + b
        h = h.astype(jnp.bfloat16)
        return jnp.maximum(h, slope * h)

    h = blk(h, w1, b1, 0.001)
    h = blk(h, w2, b2, 0.001)
    h = blk(h, w3, b3, 0.01)
    return jnp.dot(h, w4, preferred_element_type=jnp.float32) + b4


def reference_forward_f32(x, p):
    """Plain-JAX f32 reference matching the original PyTorch module (eval mode)."""
    def bn(h, g, be, m, v):
        return (h - m) * (g * jax.lax.rsqrt(v + EPS)) + be

    def blk(h, w, b, slope, g, be, m, v):
        h = h @ w + b
        h = jnp.maximum(h, slope * h)
        return bn(h, g, be, m, v)

    h = blk(x, p["w1"], p["b1"], 0.001, p["g1"], p["be1"], p["m1"], p["v1"])
    h = blk(h, p["w2"], p["b2"], 0.001, p["g2"], p["be2"], p["m2"], p["v2"])
    h = blk(h, p["w3"], p["b3"], 0.01, p["g3"], p["be3"], p["m3"], p["v3"])
    return h @ p["w4"] + p["b4"]


if __name__ == "__main__":
    key = jax.random.PRNGKey(0)
    k_p, k_x1, k_x2 = jax.random.split(key, 3)

    input_size, output_size = 377, 754
    params = make_params(k_p, input_size, output_size)
    f_in_p, out_p = _round_up(input_size, LANE), _round_up(output_size, LANE)
    folded = _fold_and_pad(params, f_in_p, out_p)

    # Small check: B=8 -> single 8-row tile (single grid step).
    x1 = jax.random.normal(k_x1, (8, input_size), jnp.float32)
    out1 = jax.block_until_ready(disease_predictor(x1, params))
    assert out1.shape == (8, output_size)
    ref1_m = reference_forward_matched(x1, folded, f_in_p)[:, :output_size]
    ref1_f = reference_forward_f32(x1, params)
    assert jnp.allclose(out1, ref1_m, rtol=1e-2, atol=1e-2), "mismatch vs matched ref (B=8)"
    assert jnp.allclose(out1, ref1_f, rtol=5e-2, atol=5e-2), "mismatch vs f32 ref (B=8)"

    # Ragged-batch check: B=100 -> 2 parallel tiles of 56 rows (Bp=112, minimal padding).
    x2 = jax.random.normal(k_x2, (100, input_size), jnp.float32)
    out2 = jax.block_until_ready(disease_predictor(x2, params))
    assert out2.shape == (100, output_size)
    ref2_m = reference_forward_matched(x2, folded, f_in_p)[:, :output_size]
    ref2_f = reference_forward_f32(x2, params)
    assert jnp.allclose(out2, ref2_m, rtol=1e-2, atol=1e-2), "mismatch vs matched ref (B=100)"
    assert jnp.allclose(out2, ref2_f, rtol=5e-2, atol=5e-2), "mismatch vs f32 ref (B=100)"

    print("KERNEL_OK")
</pallas_src>

<mosaic_0001>
module attributes {stable_mosaic.version = 11 : i64} {
  func.func @mlp_kernel(%arg0: i32, %arg1: memref<8x384xbf16, #tpu.memory_space<vmem>>, %arg2: memref<384x512xbf16, #tpu.memory_space<vmem>>, %arg3: memref<1x512xf32, #tpu.memory_space<vmem>>, %arg4: memref<512x1024xbf16, #tpu.memory_space<vmem>>, %arg5: memref<1x1024xf32, #tpu.memory_space<vmem>>, %arg6: memref<1024x512xbf16, #tpu.memory_space<vmem>>, %arg7: memref<1x512xf32, #tpu.memory_space<vmem>>, %arg8: memref<512x768xbf16, #tpu.memory_space<vmem>>, %arg9: memref<1x768xf32, #tpu.memory_space<vmem>>, %arg10: memref<8x768xf32, #tpu.memory_space<vmem>>) attributes {dimension_semantics = [#tpu.dimension_semantics<parallel>], iteration_bounds = array<i64: 1>, scalar_prefetch = 0 : i64, scratch_operands = 0 : i64, tpu.core_type = #tpu.core_type<tc>, window_params = [{transform_indices = @transform_0, window_bounds = array<i64: 8, 384>}, {pipeline_mode = #tpu.pipeline_mode<synchronous>, transform_indices = @transform_1, window_bounds = array<i64: 384, 512>}, {pipeline_mode = #tpu.pipeline_mode<synchronous>, transform_indices = @transform_2, window_bounds = array<i64: 1, 512>}, {pipeline_mode = #tpu.pipeline_mode<synchronous>, transform_indices = @transform_3, window_bounds = array<i64: 512, 1024>}, {pipeline_mode = #tpu.pipeline_mode<synchronous>, transform_indices = @transform_4, window_bounds = array<i64: 1, 1024>}, {pipeline_mode = #tpu.pipeline_mode<synchronous>, transform_indices = @transform_5, window_bounds = array<i64: 1024, 512>}, {pipeline_mode = #tpu.pipeline_mode<synchronous>, transform_indices = @transform_6, window_bounds = array<i64: 1, 512>}, {pipeline_mode = #tpu.pipeline_mode<synchronous>, transform_indices = @transform_7, window_bounds = array<i64: 512, 768>}, {pipeline_mode = #tpu.pipeline_mode<synchronous>, transform_indices = @transform_8, window_bounds = array<i64: 1, 768>}, {transform_indices = @transform_9, window_bounds = array<i64: 8, 768>}]} {
    %c0 = arith.constant 0 : index
    %c0_0 = arith.constant 0 : index
    %0 = vector.load %arg1[%c0, %c0_0] : memref<8x384xbf16, #tpu.memory_space<vmem>>, vector<8x384xbf16>
    %c0_1 = arith.constant 0 : index
    %c0_2 = arith.constant 0 : index
    %1 = vector.load %arg2[%c0_1, %c0_2] : memref<384x512xbf16, #tpu.memory_space<vmem>>, vector<384x512xbf16>
    %cst = arith.constant dense<0.000000e+00> : vector<8x512xf32>
    %2 = tpu.matmul %0, %1, %cst {dimension_numbers = #tpu.dot_dimension_numbers<[1], [0], [0], [1], [0, 0, 1, 1], [], []>} : vector<8x384xbf16>, vector<384x512xbf16>, vector<8x512xf32> -> vector<8x512xf32>
    %c0_3 = arith.constant 0 : index
    %c0_4 = arith.constant 0 : index
    %3 = vector.load %arg3[%c0_3, %c0_4] : memref<1x512xf32, #tpu.memory_space<vmem>>, vector<1x512xf32>
    %4 = vector.broadcast %3 : vector<1x512xf32> to vector<8x512xf32>
    %5 = arith.addf %2, %4 : vector<8x512xf32>
    %6 = arith.truncf %5 : vector<8x512xf32> to vector<8x512xbf16>
    %cst_5 = arith.constant 9.994500e-04 : bf16
    %7 = vector.broadcast %cst_5 : bf16 to vector<8x512xbf16>
    %8 = arith.mulf %7, %6 : vector<8x512xbf16>
    %9 = arith.maximumf %6, %8 : vector<8x512xbf16>
    %c0_6 = arith.constant 0 : index
    %c0_7 = arith.constant 0 : index
    %10 = vector.load %arg4[%c0_6, %c0_7] : memref<512x1024xbf16, #tpu.memory_space<vmem>>, vector<512x1024xbf16>
    %cst_8 = arith.constant dense<0.000000e+00> : vector<8x1024xf32>
    %11 = tpu.matmul %9, %10, %cst_8 {dimension_numbers = #tpu.dot_dimension_numbers<[1], [0], [0], [1], [0, 0, 1, 1], [], []>} : vector<8x512xbf16>, vector<512x1024xbf16>, vector<8x1024xf32> -> vector<8x1024xf32>
    %c0_9 = arith.constant 0 : index
    %c0_10 = arith.constant 0 : index
    %12 = vector.load %arg5[%c0_9, %c0_10] : memref<1x1024xf32, #tpu.memory_space<vmem>>, vector<1x1024xf32>
    %13 = vector.broadcast %12 : vector<1x1024xf32> to vector<8x1024xf32>
    %14 = arith.addf %11, %13 : vector<8x1024xf32>
    %15 = arith.truncf %14 : vector<8x1024xf32> to vector<8x1024xbf16>
    %cst_11 = arith.constant 9.994500e-04 : bf16
    %16 = vector.broadcast %cst_11 : bf16 to vector<8x1024xbf16>
    %17 = arith.mulf %16, %15 : vector<8x1024xbf16>
    %18 = arith.maximumf %15, %17 : vector<8x1024xbf16>
    %c0_12 = arith.constant 0 : index
    %c0_13 = arith.constant 0 : index
    %19 = vector.load %arg6[%c0_12, %c0_13] : memref<1024x512xbf16, #tpu.memory_space<vmem>>, vector<1024x512xbf16>
    %cst_14 = arith.constant dense<0.000000e+00> : vector<8x512xf32>
    %20 = tpu.matmul %18, %19, %cst_14 {dimension_numbers = #tpu.dot_dimension_numbers<[1], [0], [0], [1], [0, 0, 1, 1], [], []>} : vector<8x1024xbf16>, vector<1024x512xbf16>, vector<8x512xf32> -> vector<8x512xf32>
    %c0_15 = arith.constant 0 : index
    %c0_16 = arith.constant 0 : index
    %21 = vector.load %arg7[%c0_15, %c0_16] : memref<1x512xf32, #tpu.memory_space<vmem>>, vector<1x512xf32>
    %22 = vector.broadcast %21 : vector<1x512xf32> to vector<8x512xf32>
    %23 = arith.addf %20, %22 : vector<8x512xf32>
    %24 = arith.truncf %23 : vector<8x512xf32> to vector<8x512xbf16>
    %cst_17 = arith.constant 1.000980e-02 : bf16
    %25 = vector.broadcast %cst_17 : bf16 to vector<8x512xbf16>
    %26 = arith.mulf %25, %24 : vector<8x512xbf16>
    %27 = arith.maximumf %24, %26 : vector<8x512xbf16>
    %c0_18 = arith.constant 0 : index
    %c0_19 = arith.constant 0 : index
    %28 = vector.load %arg8[%c0_18, %c0_19] : memref<512x768xbf16, #tpu.memory_space<vmem>>, vector<512x768xbf16>
    %cst_20 = arith.constant dense<0.000000e+00> : vector<8x768xf32>
    %29 = tpu.matmul %27, %28, %cst_20 {dimension_numbers = #tpu.dot_dimension_numbers<[1], [0], [0], [1], [0, 0, 1, 1], [], []>} : vector<8x512xbf16>, vector<512x768xbf16>, vector<8x768xf32> -> vector<8x768xf32>
    %c0_21 = arith.constant 0 : index
    %c0_22 = arith.constant 0 : index
    %30 = vector.load %arg9[%c0_21, %c0_22] : memref<1x768xf32, #tpu.memory_space<vmem>>, vector<1x768xf32>
    %31 = vector.broadcast %30 : vector<1x768xf32> to vector<8x768xf32>
    %32 = arith.addf %29, %31 : vector<8x768xf32>
    %c0_23 = arith.constant 0 : index
    %c0_24 = arith.constant 0 : index
    %33 = vector.load %arg10[%c0_23, %c0_24] : memref<8x768xf32, #tpu.memory_space<vmem>>, vector<8x768xf32>
    tpu.vector_store %arg10[%c0_23, %c0_24], %32 {strides = array<i32>} : memref<8x768xf32, #tpu.memory_space<vmem>>, vector<8x768xf32>,
    return
  }
  func.func @transform_0(%arg0: i32) -> (i32, i32) {
    %c0_i32 = arith.constant 0 : i32
    %c0_i32_0 = arith.constant 0 : i32
    return %arg0, %c0_i32 : i32, i32
  }
  func.func @transform_1(%arg0: i32) -> (i32, i32) {
    %c0_i32 = arith.constant 0 : i32
    %c0_i32_0 = arith.constant 0 : i32
    %c0_i32_1 = arith.constant 0 : i32
    return %c0_i32, %c0_i32_0 : i32, i32
  }
  func.func @transform_2(%arg0: i32) -> (i32, i32) {
    %c0_i32 = arith.constant 0 : i32
    %c0_i32_0 = arith.constant 0 : i32
    %c0_i32_1 = arith.constant 0 : i32
    return %c0_i32, %c0_i32_0 : i32, i32
  }
  func.func @transform_3(%arg0: i32) -> (i32, i32) {
    %c0_i32 = arith.constant 0 : i32
    %c0_i32_0 = arith.constant 0 : i32
    %c0_i32_1 = arith.constant 0 : i32
    return %c0_i32, %c0_i32_0 : i32, i32
  }
  func.func @transform_4(%arg0: i32) -> (i32, i32) {
    %c0_i32 = arith.constant 0 : i32
    %c0_i32_0 = arith.constant 0 : i32
    %c0_i32_1 = arith.constant 0 : i32
    return %c0_i32, %c0_i32_0 : i32, i32
  }
  func.func @transform_5(%arg0: i32) -> (i32, i32) {
    %c0_i32 = arith.constant 0 : i32
    %c0_i32_0 = arith.constant 0 : i32
    %c0_i32_1 = arith.constant 0 : i32
    return %c0_i32, %c0_i32_0 : i32, i32
  }
  func.func @transform_6(%arg0: i32) -> (i32, i32) {
    %c0_i32 = arith.constant 0 : i32
    %c0_i32_0 = arith.constant 0 : i32
    %c0_i32_1 = arith.constant 0 : i32
    return %c0_i32, %c0_i32_0 : i32, i32
  }
  func.func @transform_7(%arg0: i32) -> (i32, i32) {
    %c0_i32 = arith.constant 0 : i32
    %c0_i32_0 = arith.constant 0 : i32
    %c0_i32_1 = arith.constant 0 : i32
    return %c0_i32, %c0_i32_0 : i32, i32
  }
  func.func @transform_8(%arg0: i32) -> (i32, i32) {
    %c0_i32 = arith.constant 0 : i32
    %c0_i32_0 = arith.constant 0 : i32
    %c0_i32_1 = arith.constant 0 : i32
    return %c0_i32, %c0_i32_0 : i32, i32
  }
  func.func @transform_9(%arg0: i32) -> (i32, i32) {
    %c0_i32 = arith.constant 0 : i32
    %c0_i32_0 = arith.constant 0 : i32
    return %arg0, %c0_i32 : i32, i32
  }
}

</mosaic_0001>

<llo_original>
// kernel: tpu_custom_call.1
$region0: #{tpu_custom_call.1}
  #allocation0 [shape = 'u32[]', space=smem, size = 0x4, offset = 0x4, fixed_abs, tag = 'smem constant byte address 0x4 - core index']
  #allocation1 [shape = 'u32[72,128]{1,0:T(1,128)}', space=vmem, size = 0x9000, scoped, tag = 'internal scratch']
  %s0 = inlined_call_operand.hbm [shape: bf16[8,384], index: 0, kind: input, shape index: {}]
  %s1 = inlined_call_operand.hbm [shape: bf16[384,512], index: 1, kind: input, shape index: {}]
  %s2 = inlined_call_operand.hbm [shape: f32[1,512], index: 2, kind: input, shape index: {}]
  %s3 = inlined_call_operand.hbm [shape: bf16[512,1024], index: 3, kind: input, shape index: {}]
  %s4 = inlined_call_operand.hbm [shape: f32[1,1024], index: 4, kind: input, shape index: {}]
  %s5 = inlined_call_operand.hbm [shape: bf16[1024,512], index: 5, kind: input, shape index: {}]
  %s6 = inlined_call_operand.hbm [shape: f32[1,512], index: 6, kind: input, shape index: {}]
  %s7 = inlined_call_operand.hbm [shape: bf16[512,768], index: 7, kind: input, shape index: {}]
  %s8 = inlined_call_operand.vmem [shape: f32[1,768], index: 8, kind: input, shape index: {}]
  %s9 = inlined_call_operand.hbm [shape: f32[8,768], index: 9, kind: output, shape index: {}]
  %s10 = sld [smem:[#allocation0]]
  $region78: #{tpu_custom_call.1} parent=0
    _
  %s12 = ssub.s32 1, %s10
  %s13 = scalar_select 0, %s12, %s10
  $region1: #{tpu_custom_call.1} parent=0
    #allocation2 [shape = 'u8[6144]{0}', space=vmem, size = 0x1800, scoped, tag = 'input window, operand 0, single buffered']
    #allocation3 [shape = 's32[1]{0}', space=sflag, size = 0x4, scoped, tag = 'scoped memory for tpu_custom_call.1']
    #allocation4 [shape = 's32[1]{0}', space=sflag, size = 0x4, scoped, tag = 'scoped memory for tpu_custom_call.1']
    #allocation5 [shape = 'u8[393216]{0}', space=vmem, size = 0x60000, scoped, tag = 'input window, operand 1, single buffered']
    #allocation6 [shape = 's32[1]{0}', space=sflag, size = 0x4, scoped, tag = 'scoped memory for tpu_custom_call.1']
    #allocation7 [shape = 'u8[2048]{0}', space=vmem, size = 0x800, scoped, tag = 'input window, operand 2, single buffered']
    #allocation8 [shape = 'u8[1048576]{0}', space=vmem, size = 0x100000, scoped, tag = 'input window, operand 3, single buffered']
    #allocation9 [shape = 's32[1]{0}', space=sflag, size = 0x4, scoped, tag = 'scoped memory for tpu_custom_call.1']
    #allocation10 [shape = 'u8[4096]{0}', space=vmem, size = 0x1000, scoped, tag = 'input window, operand 4, single buffered']
    #allocation11 [shape = 'u8[1048576]{0}', space=vmem, size = 0x100000, scoped, tag = 'input window, operand 5, single buffered']
    #allocation12 [shape = 's32[1]{0}', space=sflag, size = 0x4, scoped, tag = 'scoped memory for tpu_custom_call.1']
    #allocation13 [shape = 'u8[2048]{0}', space=vmem, size = 0x800, scoped, tag = 'input window, operand 6, single buffered']
    #allocation14 [shape = 'u8[786432]{0}', space=vmem, size = 0xc0000, scoped, tag = 'input window, operand 7, single buffered']
    #allocation15 [shape = 's32[1]{0}', space=sflag, size = 0x4, scoped, tag = 'scoped memory for tpu_custom_call.1']
    #allocation16 [shape = 'u8[24576]{0}', space=vmem, size = 0x6000, scoped, tag = 'output window, operand 0, single buffered']
    %14 = vsyncpa [#allocation3], 0
    %15 = vsyncpa [#allocation6], 0
    %16 = vsyncpa [#allocation9], 0
    %17 = vsyncpa [#allocation12], 0
    %18 = vsyncpa [#allocation15], 0
    %19 = vsyncpa [#allocation4], 0
    // Predicated region
    $region2: #{tpu_custom_call.1} parent=1 // pred_check
      _
    $region3: #{tpu_custom_call.1} parent=1 // pred_check_branch
      %21 = sbr.rel (0) target = $region5
    $region4: #{tpu_custom_call.1} parent=1 // pred_region
      %23 = vsyncadd [#allocation3], 0
      %s25 = sshll.u32 %s0, 4
      %s26 = int_to_ptr.hbm [resolvable:$true] %s25
      %s27 = sshll.u32 [#allocation2], 4
      %s28 = int_to_ptr.vmem [resolvable:$true] %s27
      %30 = dma.hbm_to_vmem [thread:$0]  %s26, 192, %s28, [#allocation3]
    $region5: #{tpu_custom_call.1} parent=1 // pred_fallthru
      _
    // Predicated region
    $region6: #{tpu_custom_call.1} parent=1 // pred_check
      _
    $region7: #{tpu_custom_call.1} parent=1 // pred_check_branch
      %32 = sbr.rel (0) target = $region9
    $region8: #{tpu_custom_call.1} parent=1 // pred_region
      %34 = vsyncadd [#allocation6], 0
      %s35 = sshll.u32 %s1, 4
      %s36 = int_to_ptr.hbm [resolvable:$true] %s35
      %s37 = sshll.u32 [#allocation5], 4
      %s38 = int_to_ptr.vmem [resolvable:$true] %s37
      %43 = dma.hbm_to_vmem [thread:$0]  %s36, 12288, %s38, [#allocation6], 256, 256, 16
    $region9: #{tpu_custom_call.1} parent=1 // pred_fallthru
      _
    // Predicated region
    $region10: #{tpu_custom_call.1} parent=1 // pred_check
      _
    $region11: #{tpu_custom_call.1} parent=1 // pred_check_branch
      %45 = sbr.rel (0) target = $region13
    $region12: #{tpu_custom_call.1} parent=1 // pred_region
      %47 = vsyncadd [#allocation6], 0
      %s49 = sshll.u32 %s2, 4
      %s50 = int_to_ptr.hbm [resolvable:$true] %s49
      %s51 = sshll.u32 [#allocation7], 4
      %s52 = int_to_ptr.vmem [resolvable:$true] %s51
      %54 = dma.hbm_to_vmem [thread:$0]  %s50, 64, %s52, [#allocation6]
    $region13: #{tpu_custom_call.1} parent=1 // pred_fallthru
      _
    // Predicated region
    $region14: #{tpu_custom_call.1} parent=1 // pred_check
      _
    $region15: #{tpu_custom_call.1} parent=1 // pred_check_branch
      %56 = sbr.rel (0) target = $region17
    $region16: #{tpu_custom_call.1} parent=1 // pred_region
      %58 = vsyncadd [#allocation9], 0
      %s59 = sshll.u32 %s3, 4
      %s60 = int_to_ptr.hbm [resolvable:$true] %s59
      %s61 = sshll.u32 [#allocation8], 4
      %s62 = int_to_ptr.vmem [resolvable:$true] %s61
      %67 = dma.hbm_to_vmem [thread:$0]  %s60, 32768, %s62, [#allocation9], 512, 512, 32
    $region17: #{tpu_custom_call.1} parent=1 // pred_fallthru
      _
    // Predicated region
    $region18: #{tpu_custom_call.1} parent=1 // pred_check
      _
    $region19: #{tpu_custom_call.1} parent=1 // pred_check_branch
      %69 = sbr.rel (0) target = $region21
    $region20: #{tpu_custom_call.1} parent=1 // pred_region
      %71 = vsyncadd [#allocation9], 0
      %s73 = sshll.u32 %s4, 4
      %s74 = int_to_ptr.hbm [resolvable:$true] %s73
      %s75 = sshll.u32 [#allocation10], 4
      %s76 = int_to_ptr.vmem [resolvable:$true] %s75
      %78 = dma.hbm_to_vmem [thread:$0]  %s74, 128, %s76, [#allocation9]
    $region21: #{tpu_custom_call.1} parent=1 // pred_fallthru
      _
    // Predicated region
    $region22: #{tpu_custom_call.1} parent=1 // pred_check
      _
    $region23: #{tpu_custom_call.1} parent=1 // pred_check_branch
      %80 = sbr.rel (0) target = $region25
    $region24: #{tpu_custom_call.1} parent=1 // pred_region
      %82 = vsyncadd [#allocation12], 0
      %s83 = sshll.u32 %s5, 4
      %s84 = int_to_ptr.hbm [resolvable:$true] %s83
      %s85 = sshll.u32 [#allocation11], 4
      %s86 = int_to_ptr.vmem [resolvable:$true] %s85
      %91 = dma.hbm_to_vmem [thread:$0]  %s84, 32768, %s86, [#allocation12], 256, 256, 16
    $region25: #{tpu_custom_call.1} parent=1 // pred_fallthru
      _
    // Predicated region
    $region26: #{tpu_custom_call.1} parent=1 // pred_check
      _
    $region27: #{tpu_custom_call.1} parent=1 // pred_check_branch
      %93 = sbr.rel (0) target = $region29
    $region28: #{tpu_custom_call.1} parent=1 // pred_region
      %95 = vsyncadd [#allocation12], 0
      %s97 = sshll.u32 %s6, 4
      %s98 = int_to_ptr.hbm [resolvable:$true] %s97
      %s99 = sshll.u32 [#allocation13], 4
      %s100 = int_to_ptr.vmem [resolvable:$true] %s99
      %102 = dma.hbm_to_vmem [thread:$0]  %s98, 64, %s100, [#allocation12]
    $region29: #{tpu_custom_call.1} parent=1 // pred_fallthru
      _
    // Predicated region
    $region30: #{tpu_custom_call.1} parent=1 // pred_check
      _
    $region31: #{tpu_custom_call.1} parent=1 // pred_check_branch
      %104 = sbr.rel (0) target = $region33
    $region32: #{tpu_custom_call.1} parent=1 // pred_region
      %106 = vsyncadd [#allocation15], 0
      %s107 = sshll.u32 %s7, 4
      %s108 = int_to_ptr.hbm [resolvable:$true] %s107
      %s109 = sshll.u32 [#allocation14], 4
      %s110 = int_to_ptr.vmem [resolvable:$true] %s109
      %115 = dma.hbm_to_vmem [thread:$0]  %s108, 24576, %s110, [#allocation15], 384, 384, 24
    $region33: #{tpu_custom_call.1} parent=1 // pred_fallthru
      _
    // Predicated region
    $region34: #{tpu_custom_call.1} parent=1 // pred_check
      _
    $region35: #{tpu_custom_call.1} parent=1 // pred_check_branch
      %117 = sbr.rel (0) target = $region37
    $region36: #{tpu_custom_call.1} parent=1 // pred_region
      _
    $region37: #{tpu_custom_call.1} parent=1 // pred_fallthru
      _
    // Predicated region
    $region38: #{tpu_custom_call.1} parent=1 // pred_check
      _
    $region39: #{tpu_custom_call.1} parent=1 // pred_check_branch
      %119 = sbr.rel (0) target = $region41
    $region40: #{tpu_custom_call.1} parent=1 // pred_region
      %121 = dma.done [#allocation3], 192
    $region41: #{tpu_custom_call.1} parent=1 // pred_fallthru
      _
    // Predicated region
    $region42: #{tpu_custom_call.1} parent=1 // pred_check
      _
    $region43: #{tpu_custom_call.1} parent=1 // pred_check_branch
      %123 = sbr.rel (0) target = $region45
    $region44: #{tpu_custom_call.1} parent=1 // pred_region
      %125 = dma.done [#allocation6], 12288
    $region45: #{tpu_custom_call.1} parent=1 // pred_fallthru
      _
    // Predicated region
    $region46: #{tpu_custom_call.1} parent=1 // pred_check
      _
    $region47: #{tpu_custom_call.1} parent=1 // pred_check_branch
      %127 = sbr.rel (0) target = $region49
    $region48: #{tpu_custom_call.1} parent=1 // pred_region
      %129 = dma.done [#allocation6], 64
    $region49: #{tpu_custom_call.1} parent=1 // pred_fallthru
      _
    // Predicated region
    $region50: #{tpu_custom_call.1} parent=1 // pred_check
      _
    $region51: #{tpu_custom_call.1} parent=1 // pred_check_branch
      %131 = sbr.rel (0) target = $region53
    $region52: #{tpu_custom_call.1} parent=1 // pred_region
      %133 = dma.done [#allocation9], 32768
    $region53: #{tpu_custom_call.1} parent=1 // pred_fallthru
      _
    // Predicated region
    $region54: #{tpu_custom_call.1} parent=1 // pred_check
      _
    $region55: #{tpu_custom_call.1} parent=1 // pred_check_branch
      %135 = sbr.rel (0) target = $region57
    $region56: #{tpu_custom_call.1} parent=1 // pred_region
      %137 = dma.done [#allocation9], 128
    $region57: #{tpu_custom_call.1} parent=1 // pred_fallthru
      _
    // Predicated region
    $region58: #{tpu_custom_call.1} parent=1 // pred_check
      _
    $region59: #{tpu_custom_call.1} parent=1 // pred_check_branch
      %139 = sbr.rel (0) target = $region61
    $region60: #{tpu_custom_call.1} parent=1 // pred_region
      %141 = dma.done [#allocation12], 32768
    $region61: #{tpu_custom_call.1} parent=1 // pred_fallthru
      _
    // Predicated region
    $region62: #{tpu_custom_call.1} parent=1 // pred_check
      _
    $region63: #{tpu_custom_call.1} parent=1 // pred_check_branch
      %143 = sbr.rel (0) target = $region65
    $region64: #{tpu_custom_call.1} parent=1 // pred_region
      %145 = dma.done [#allocation12], 64
    $region65: #{tpu_custom_call.1} parent=1 // pred_fallthru
      _
    // Predicated region
    $region66: #{tpu_custom_call.1} parent=1 // pred_check
      _
    $region67: #{tpu_custom_call.1} parent=1 // pred_check_branch
      %147 = sbr.rel (0) target = $region69
    $region68: #{tpu_custom_call.1} parent=1 // pred_region
      %149 = dma.done [#allocation15], 24576
    $region69: #{tpu_custom_call.1} parent=1 // pred_fallthru
      _
    %v150 = vld [vmem:[#allocation2] sm:$0xff]
    %v151 = vld [vmem:[#allocation2 + $0x8] sm:$0xf]
    %v152 = vld [vmem:[#allocation5] sm:$0xff]
    %v153 = vld [vmem:[#allocation5 + $0x8] sm:$0xff]
    %v154 = vld [vmem:[#allocation5 + $0x10] sm:$0xff]
    %v155 = vld [vmem:[#allocation5 + $0x18] sm:$0xff]
    %v156 = vld [vmem:[#allocation5 + $0x20] sm:$0xff]
    %v157 = vld [vmem:[#allocation5 + $0x28] sm:$0xff]
    %v158 = vld [vmem:[#allocation5 + $0x30] sm:$0xff]
    %v159 = vld [vmem:[#allocation5 + $0x38] sm:$0xff]
    %v160 = vld [vmem:[#allocation5 + $0x40] sm:$0xff]
    %v161 = vld [vmem:[#allocation5 + $0x48] sm:$0xff]
    %v162 = vld [vmem:[#allocation5 + $0x50] sm:$0xff]
    %v163 = vld [vmem:[#allocation5 + $0x58] sm:$0xff]
    %v164 = vld [vmem:[#allocation5 + $0x60] sm:$0xff]
    %v165 = vld [vmem:[#allocation5 + $0x68] sm:$0xff]
    %v166 = vld [vmem:[#allocation5 + $0x70] sm:$0xff]
    %v167 = vld [vmem:[#allocation5 + $0x78] sm:$0xff]
    %v168 = vld [vmem:[#allocation5 + $0x80] sm:$0xff]
    %v169 = vld [vmem:[#allocation5 + $0x88] sm:$0xff]
    %v170 = vld [vmem:[#allocation5 + $0x90] sm:$0xff]
    %v171 = vld [vmem:[#allocation5 + $0x98] sm:$0xff]
    %v172 = vld [vmem:[#allocation5 + $0xa0] sm:$0xff]
    %v173 = vld [vmem:[#allocation5 + $0xa8] sm:$0xff]
    %v174 = vld [vmem:[#allocation5 + $0xb0] sm:$0xff]
    %v175 = vld [vmem:[#allocation5 + $0xb8] sm:$0xff]
    %v176 = vld [vmem:[#allocation5 + $0xc0] sm:$0xff]
    %v177 = vld [vmem:[#allocation5 + $0xc8] sm:$0xff]
    %v178 = vld [vmem:[#allocation5 + $0xd0] sm:$0xff]
    %v179 = vld [vmem:[#allocation5 + $0xd8] sm:$0xff]
    %v180 = vld [vmem:[#allocation5 + $0xe0] sm:$0xff]
    %v181 = vld [vmem:[#allocation5 + $0xe8] sm:$0xff]
    %v182 = vld [vmem:[#allocation5 + $0xf0] sm:$0xff]
    %v183 = vld [vmem:[#allocation5 + $0xf8] sm:$0xff]
    %v184 = vld [vmem:[#allocation5 + $0x100] sm:$0xff]
    %v185 = vld [vmem:[#allocation5 + $0x108] sm:$0xff]
    %v186 = vld [vmem:[#allocation5 + $0x110] sm:$0xff]
    %v187 = vld [vmem:[#allocation5 + $0x118] sm:$0xff]
    %v188 = vld [vmem:[#allocation5 + $0x120] sm:$0xff]
    %v189 = vld [vmem:[#allocation5 + $0x128] sm:$0xff]
    %v190 = vld [vmem:[#allocation5 + $0x130] sm:$0xff]
    %v191 = vld [vmem:[#allocation5 + $0x138] sm:$0xff]
    %v192 = vld [vmem:[#allocation5 + $0x140] sm:$0xff]
    %v193 = vld [vmem:[#allocation5 + $0x148] sm:$0xff]
    %v194 = vld [vmem:[#allocation5 + $0x150] sm:$0xff]
    %v195 = vld [vmem:[#allocation5 + $0x158] sm:$0xff]
    %v196 = vld [vmem:[#allocation5 + $0x160] sm:$0xff]
    %v197 = vld [vmem:[#allocation5 + $0x168] sm:$0xff]
    %v198 = vld [vmem:[#allocation5 + $0x170] sm:$0xff]
    %v199 = vld [vmem:[#allocation5 + $0x178] sm:$0xff]
    %v200 = vld [vmem:[#allocation5 + $0x180] sm:$0xff]
    %v201 = vld [vmem:[#allocation5 + $0x188] sm:$0xff]
    %v202 = vld [vmem:[#allocation5 + $0x190] sm:$0xff]
    %v203 = vld [vmem:[#allocation5 + $0x198] sm:$0xff]
    %v204 = vld [vmem:[#allocation5 + $0x1a0] sm:$0xff]
    %v205 = vld [vmem:[#allocation5 + $0x1a8] sm:$0xff]
    %v206 = vld [vmem:[#allocation5 + $0x1b0] sm:$0xff]
    %v207 = vld [vmem:[#allocation5 + $0x1b8] sm:$0xff]
    %v208 = vld [vmem:[#allocation5 + $0x1c0] sm:$0xff]
    %v209 = vld [vmem:[#allocation5 + $0x1c8] sm:$0xff]
    %v210 = vld [vmem:[#allocation5 + $0x1d0] sm:$0xff]
    %v211 = vld [vmem:[#allocation5 + $0x1d8] sm:$0xff]
    %v212 = vld [vmem:[#allocation5 + $0x1e0] sm:$0xff]
    %v213 = vld [vmem:[#allocation5 + $0x1e8] sm:$0xff]
    %v214 = vld [vmem:[#allocation5 + $0x1f0] sm:$0xff]
    %v215 = vld [vmem:[#allocation5 + $0x1f8] sm:$0xff]
    %v216 = vld [vmem:[#allocation5 + $0x200] sm:$0xff]
    %v217 = vld [vmem:[#allocation5 + $0x208] sm:$0xff]
    %v218 = vld [vmem:[#allocation5 + $0x210] sm:$0xff]
    %v219 = vld [vmem:[#allocation5 + $0x218] sm:$0xff]
    %v220 = vld [vmem:[#allocation5 + $0x220] sm:$0xff]
    %v221 = vld [vmem:[#allocation5 + $0x228] sm:$0xff]
    %v222 = vld [vmem:[#allocation5 + $0x230] sm:$0xff]
    %v223 = vld [vmem:[#allocation5 + $0x238] sm:$0xff]
    %v224 = vld [vmem:[#allocation5 + $0x240] sm:$0xff]
    %v225 = vld [vmem:[#allocation5 + $0x248] sm:$0xff]
    %v226 = vld [vmem:[#allocation5 + $0x250] sm:$0xff]
    %v227 = vld [vmem:[#allocation5 + $0x258] sm:$0xff]
    %v228 = vld [vmem:[#allocation5 + $0x260] sm:$0xff]
    %v229 = vld [vmem:[#allocation5 + $0x268] sm:$0xff]
    %v230 = vld [vmem:[#allocation5 + $0x270] sm:$0xff]
    %v231 = vld [vmem:[#allocation5 + $0x278] sm:$0xff]
    %v232 = vld [vmem:[#allocation5 + $0x280] sm:$0xff]
    %v233 = vld [vmem:[#allocation5 + $0x288] sm:$0xff]
    %v234 = vld [vmem:[#allocation5 + $0x290] sm:$0xff]
    %v235 = vld [vmem:[#allocation5 + $0x298] sm:$0xff]
    %v236 = vld [vmem:[#allocation5 + $0x2a0] sm:$0xff]
    %v237 = vld [vmem:[#allocation5 + $0x2a8] sm:$0xff]
    %v238 = vld [vmem:[#allocation5 + $0x2b0] sm:$0xff]
    %v239 = vld [vmem:[#allocation5 + $0x2b8] sm:$0xff]
    %v240 = vld [vmem:[#allocation5 + $0x2c0] sm:$0xff]
    %v241 = vld [vmem:[#allocation5 + $0x2c8] sm:$0xff]
    %v242 = vld [vmem:[#allocation5 + $0x2d0] sm:$0xff]
    %v243 = vld [vmem:[#allocation5 + $0x2d8] sm:$0xff]
    %v244 = vld [vmem:[#allocation5 + $0x2e0] sm:$0xff]
    %v245 = vld [vmem:[#allocation5 + $0x2e8] sm:$0xff]
    %v246 = vld [vmem:[#allocation5 + $0x2f0] sm:$0xff]
    %v247 = vld [vmem:[#allocation5 + $0x2f8] sm:$0xff]
    %v248 = vld [vmem:[#allocation7] sm:$0xf]
    %v250 = vperm.slane %v248, 0
    %v251 = vperm.slane %v248, 1
    %v252 = vperm.slane %v248, 2
    %v253 = vperm.slane %v248, 3
    %v260 = vunpack.c.l.b16 %v150
    %v261 = vunpack.c.h.b16 %v150
    %v262 = vunpack.c.l.b16 %v151
    %v263 = vpack.c.b16 %v260, %v260
    %v264 = vpack.c.b16 %v261, %v261
    %v265 = vpack.c.b16 %v262, %v262
    %v365 = vunpack.c.l.b16 %v152
    %v366 = vunpack.c.h.b16 %v152
    %v367 = vunpack.c.l.b16 %v153
    %v368 = vunpack.c.h.b16 %v153
    %v369 = vunpack.c.l.b16 %v154
    %v370 = vunpack.c.h.b16 %v154
    %v371 = vunpack.c.l.b16 %v155
    %v372 = vunpack.c.h.b16 %v155
    %v373 = vunpack.c.l.b16 %v156
    %v374 = vunpack.c.h.b16 %v156
    %v375 = vunpack.c.l.b16 %v157
    %v376 = vunpack.c.h.b16 %v157
    %v377 = vunpack.c.l.b16 %v158
    %v378 = vunpack.c.h.b16 %v158
    %v379 = vunpack.c.l.b16 %v159
    %v380 = vunpack.c.h.b16 %v159
    %v381 = vunpack.c.l.b16 %v160
    %v382 = vunpack.c.h.b16 %v160
    %v383 = vunpack.c.l.b16 %v161
    %v384 = vunpack.c.h.b16 %v161
    %v385 = vunpack.c.l.b16 %v162
    %v386 = vunpack.c.h.b16 %v162
    %v387 = vunpack.c.l.b16 %v163
    %v388 = vunpack.c.h.b16 %v163
    %v389 = vunpack.c.l.b16 %v164
    %v390 = vunpack.c.h.b16 %v164
    %v391 = vunpack.c.l.b16 %v165
    %v392 = vunpack.c.h.b16 %v165
    %v393 = vunpack.c.l.b16 %v166
    %v394 = vunpack.c.h.b16 %v166
    %v395 = vunpack.c.l.b16 %v167
    %v396 = vunpack.c.h.b16 %v167
    %v397 = vunpack.c.l.b16 %v168
    %v398 = vunpack.c.h.b16 %v168
    %v399 = vunpack.c.l.b16 %v169
    %v400 = vunpack.c.h.b16 %v169
    %v401 = vunpack.c.l.b16 %v170
    %v402 = vunpack.c.h.b16 %v170
    %v403 = vunpack.c.l.b16 %v171
    %v404 = vunpack.c.h.b16 %v171
    %v405 = vunpack.c.l.b16 %v172
    %v406 = vunpack.c.h.b16 %v172
    %v407 = vunpack.c.l.b16 %v173
    %v408 = vunpack.c.h.b16 %v173
    %v409 = vunpack.c.l.b16 %v174
    %v410 = vunpack.c.h.b16 %v174
    %v411 = vunpack.c.l.b16 %v175
    %v412 = vunpack.c.h.b16 %v175
    %v413 = vunpack.c.l.b16 %v176
    %v414 = vunpack.c.h.b16 %v176
    %v415 = vunpack.c.l.b16 %v177
    %v416 = vunpack.c.h.b16 %v177
    %v417 = vunpack.c.l.b16 %v178
    %v418 = vunpack.c.h.b16 %v178
    %v419 = vunpack.c.l.b16 %v179
    %v420 = vunpack.c.h.b16 %v179
    %v421 = vunpack.c.l.b16 %v180
    %v422 = vunpack.c.h.b16 %v180
    %v423 = vunpack.c.l.b16 %v181
    %v424 = vunpack.c.h.b16 %v181
    %v425 = vunpack.c.l.b16 %v182
    %v426 = vunpack.c.h.b16 %v182
    %v427 = vunpack.c.l.b16 %v183
    %v428 = vunpack.c.h.b16 %v183
    %v429 = vunpack.c.l.b16 %v184
    %v430 = vunpack.c.h.b16 %v184
    %v431 = vunpack.c.l.b16 %v185
    %v432 = vunpack.c.h.b16 %v185
    %v433 = vunpack.c.l.b16 %v186
    %v434 = vunpack.c.h.b16 %v186
    %v435 = vunpack.c.l.b16 %v187
    %v436 = vunpack.c.h.b16 %v187
    %v437 = vunpack.c.l.b16 %v188
    %v438 = vunpack.c.h.b16 %v188
    %v439 = vunpack.c.l.b16 %v189
    %v440 = vunpack.c.h.b16 %v189
    %v441 = vunpack.c.l.b16 %v190
    %v442 = vunpack.c.h.b16 %v190
    %v443 = vunpack.c.l.b16 %v191
    %v444 = vunpack.c.h.b16 %v191
    %v445 = vunpack.c.l.b16 %v192
    %v446 = vunpack.c.h.b16 %v192
    %v447 = vunpack.c.l.b16 %v193
    %v448 = vunpack.c.h.b16 %v193
    %v449 = vunpack.c.l.b16 %v194
    %v450 = vunpack.c.h.b16 %v194
    %v451 = vunpack.c.l.b16 %v195
    %v452 = vunpack.c.h.b16 %v195
    %v453 = vunpack.c.l.b16 %v196
    %v454 = vunpack.c.h.b16 %v196
    %v455 = vunpack.c.l.b16 %v197
    %v456 = vunpack.c.h.b16 %v197
    %v457 = vunpack.c.l.b16 %v198
    %v458 = vunpack.c.h.b16 %v198
    %v459 = vunpack.c.l.b16 %v199
    %v460 = vunpack.c.h.b16 %v199
    %v461 = vunpack.c.l.b16 %v200
    %v462 = vunpack.c.h.b16 %v200
    %v463 = vunpack.c.l.b16 %v201
    %v464 = vunpack.c.h.b16 %v201
    %v465 = vunpack.c.l.b16 %v202
    %v466 = vunpack.c.h.b16 %v202
    %v467 = vunpack.c.l.b16 %v203
    %v468 = vunpack.c.h.b16 %v203
    %v469 = vunpack.c.l.b16 %v204
    %v470 = vunpack.c.h.b16 %v204
    %v471 = vunpack.c.l.b16 %v205
    %v472 = vunpack.c.h.b16 %v205
    %v473 = vunpack.c.l.b16 %v206
    %v474 = vunpack.c.h.b16 %v206
    %v475 = vunpack.c.l.b16 %v207
    %v476 = vunpack.c.h.b16 %v207
    %v477 = vunpack.c.l.b16 %v208
    %v478 = vunpack.c.h.b16 %v208
    %v479 = vunpack.c.l.b16 %v209
    %v480 = vunpack.c.h.b16 %v209
    %v481 = vunpack.c.l.b16 %v210
    %v482 = vunpack.c.h.b16 %v210
    %v483 = vunpack.c.l.b16 %v211
    %v484 = vunpack.c.h.b16 %v211
    %v485 = vunpack.c.l.b16 %v212
    %v486 = vunpack.c.h.b16 %v212
    %v487 = vunpack.c.l.b16 %v213
    %v488 = vunpack.c.h.b16 %v213
    %v489 = vunpack.c.l.b16 %v214
    %v490 = vunpack.c.h.b16 %v214
    %v491 = vunpack.c.l.b16 %v215
    %v492 = vunpack.c.h.b16 %v215
    %v493 = vunpack.c.l.b16 %v216
    %v494 = vunpack.c.h.b16 %v216
    %v495 = vunpack.c.l.b16 %v217
    %v496 = vunpack.c.h.b16 %v217
    %v497 = vunpack.c.l.b16 %v218
    %v498 = vunpack.c.h.b16 %v218
    %v499 = vunpack.c.l.b16 %v219
    %v500 = vunpack.c.h.b16 %v219
    %v501 = vunpack.c.l.b16 %v220
    %v502 = vunpack.c.h.b16 %v220
    %v503 = vunpack.c.l.b16 %v221
    %v504 = vunpack.c.h.b16 %v221
    %v505 = vunpack.c.l.b16 %v222
    %v506 = vunpack.c.h.b16 %v222
    %v507 = vunpack.c.l.b16 %v223
    %v508 = vunpack.c.h.b16 %v223
    %v509 = vunpack.c.l.b16 %v224
    %v510 = vunpack.c.h.b16 %v224
    %v511 = vunpack.c.l.b16 %v225
    %v512 = vunpack.c.h.b16 %v225
    %v513 = vunpack.c.l.b16 %v226
    %v514 = vunpack.c.h.b16 %v226
    %v515 = vunpack.c.l.b16 %v227
    %v516 = vunpack.c.h.b16 %v227
    %v517 = vunpack.c.l.b16 %v228
    %v518 = vunpack.c.h.b16 %v228
    %v519 = vunpack.c.l.b16 %v229
    %v520 = vunpack.c.h.b16 %v229
    %v521 = vunpack.c.l.b16 %v230
    %v522 = vunpack.c.h.b16 %v230
    %v523 = vunpack.c.l.b16 %v231
    %v524 = vunpack.c.h.b16 %v231
    %v525 = vunpack.c.l.b16 %v232
    %v526 = vunpack.c.h.b16 %v232
    %v527 = vunpack.c.l.b16 %v233
    %v528 = vunpack.c.h.b16 %v233
    %v529 = vunpack.c.l.b16 %v234
    %v530 = vunpack.c.h.b16 %v234
    %v531 = vunpack.c.l.b16 %v235
    %v532 = vunpack.c.h.b16 %v235
    %v533 = vunpack.c.l.b16 %v236
    %v534 = vunpack.c.h.b16 %v236
    %v535 = vunpack.c.l.b16 %v237
    %v536 = vunpack.c.h.b16 %v237
    %v537 = vunpack.c.l.b16 %v238
    %v538 = vunpack.c.h.b16 %v238
    %v539 = vunpack.c.l.b16 %v239
    %v540 = vunpack.c.h.b16 %v239
    %v541 = vunpack.c.l.b16 %v240
    %v542 = vunpack.c.h.b16 %v240
    %v543 = vunpack.c.l.b16 %v241
    %v544 = vunpack.c.h.b16 %v241
    %v545 = vunpack.c.l.b16 %v242
    %v546 = vunpack.c.h.b16 %v242
    %v547 = vunpack.c.l.b16 %v243
    %v548 = vunpack.c.h.b16 %v243
    %v549 = vunpack.c.l.b16 %v244
    %v550 = vunpack.c.h.b16 %v244
    %v551 = vunpack.c.l.b16 %v245
    %v552 = vunpack.c.h.b16 %v245
    %v553 = vunpack.c.l.b16 %v246
    %v554 = vunpack.c.h.b16 %v246
    %v555 = vunpack.c.l.b16 %v247
    %v556 = vunpack.c.h.b16 %v247
    %v557 = vpack.c.b16 %v369, %v365
    %v558 = vpack.c.b16 %v370, %v366
    %v559 = vpack.c.b16 %v371, %v367
    %v560 = vpack.c.b16 %v372, %v368
    %v561 = vpack.c.b16 %v377, %v373
    %v562 = vpack.c.b16 %v378, %v374
    %v563 = vpack.c.b16 %v379, %v375
    %v564 = vpack.c.b16 %v380, %v376
    %v565 = vpack.c.b16 %v385, %v381
    %v566 = vpack.c.b16 %v386, %v382
    %v567 = vpack.c.b16 %v387, %v383
    %v568 = vpack.c.b16 %v388, %v384
    %v569 = vpack.c.b16 %v393, %v389
    %v570 = vpack.c.b16 %v394, %v390
    %v571 = vpack.c.b16 %v395, %v391
    %v572 = vpack.c.b16 %v396, %v392
    %v573 = vpack.c.b16 %v401, %v397
    %v574 = vpack.c.b16 %v402, %v398
    %v575 = vpack.c.b16 %v403, %v399
    %v576 = vpack.c.b16 %v404, %v400
    %v577 = vpack.c.b16 %v409, %v405
    %v578 = vpack.c.b16 %v410, %v406
    %v579 = vpack.c.b16 %v411, %v407
    %v580 = vpack.c.b16 %v412, %v408
    %v581 = vpack.c.b16 %v417, %v413
    %v582 = vpack.c.b16 %v418, %v414
    %v583 = vpack.c.b16 %v419, %v415
    %v584 = vpack.c.b16 %v420, %v416
    %v585 = vpack.c.b16 %v425, %v421
    %v586 = vpack.c.b16 %v426, %v422
    %v587 = vpack.c.b16 %v427, %v423
    %v588 = vpack.c.b16 %v428, %v424
    %v589 = vpack.c.b16 %v433, %v429
    %v590 = vpack.c.b16 %v434, %v430
    %v591 = vpack.c.b16 %v435, %v431
    %v592 = vpack.c.b16 %v436, %v432
    %v593 = vpack.c.b16 %v441, %v437
    %v594 = vpack.c.b16 %v442, %v438
    %v595 = vpack.c.b16 %v443, %v439
    %v596 = vpack.c.b16 %v444, %v440
    %v597 = vpack.c.b16 %v449, %v445
    %v598 = vpack.c.b16 %v450, %v446
    %v599 = vpack.c.b16 %v451, %v447
    %v600 = vpack.c.b16 %v452, %v448
    %v601 = vpack.c.b16 %v457, %v453
    %v602 = vpack.c.b16 %v458, %v454
    %v603 = vpack.c.b16 %v459, %v455
    %v604 = vpack.c.b16 %v460, %v456
    %v605 = vpack.c.b16 %v465, %v461
    %v606 = vpack.c.b16 %v466, %v462
    %v607 = vpack.c.b16 %v467, %v463
    %v608 = vpack.c.b16 %v468, %v464
    %v609 = vpack.c.b16 %v473, %v469
    %v610 = vpack.c.b16 %v474, %v470
    %v611 = vpack.c.b16 %v475, %v471
    %v612 = vpack.c.b16 %v476, %v472
    %v613 = vpack.c.b16 %v481, %v477
    %v614 = vpack.c.b16 %v482, %v478
    %v615 = vpack.c.b16 %v483, %v479
    %v616 = vpack.c.b16 %v484, %v480
    %v617 = vpack.c.b16 %v489, %v485
    %v618 = vpack.c.b16 %v490, %v486
    %v619 = vpack.c.b16 %v491, %v487
    %v620 = vpack.c.b16 %v492, %v488
    %v621 = vpack.c.b16 %v497, %v493
    %v622 = vpack.c.b16 %v498, %v494
    %v623 = vpack.c.b16 %v499, %v495
    %v624 = vpack.c.b16 %v500, %v496
    %v625 = vpack.c.b16 %v505, %v501
    %v626 = vpack.c.b16 %v506, %v502
    %v627 = vpack.c.b16 %v507, %v503
    %v628 = vpack.c.b16 %v508, %v504
    %v629 = vpack.c.b16 %v513, %v509
    %v630 = vpack.c.b16 %v514, %v510
    %v631 = vpack.c.b16 %v515, %v511
    %v632 = vpack.c.b16 %v516, %v512
    %v633 = vpack.c.b16 %v521, %v517
    %v634 = vpack.c.b16 %v522, %v518
    %v635 = vpack.c.b16 %v523, %v519
    %v636 = vpack.c.b16 %v524, %v520
    %v637 = vpack.c.b16 %v529, %v525
    %v638 = vpack.c.b16 %v530, %v526
    %v639 = vpack.c.b16 %v531, %v527
    %v640 = vpack.c.b16 %v532, %v528
    %v641 = vpack.c.b16 %v537, %v533
    %v642 = vpack.c.b16 %v538, %v534
    %v643 = vpack.c.b16 %v539, %v535
    %v644 = vpack.c.b16 %v540, %v536
    %v645 = vpack.c.b16 %v545, %v541
    %v646 = vpack.c.b16 %v546, %v542
    %v647 = vpack.c.b16 %v547, %v543
    %v648 = vpack.c.b16 %v548, %v544
    %v649 = vpack.c.b16 %v553, %v549
    %v650 = vpack.c.b16 %v554, %v550
    %v651 = vpack.c.b16 %v555, %v551
    %v652 = vpack.c.b16 %v556, %v552
    %749 = vmatpush.bf16.msra.mxu0 %v585
    %750 = vmatpush.bf16.msra.mxu0 %v581
    %751 = vmatpush.bf16.msra.mxu0 %v577
    %752 = vmatpush.bf16.msra.mxu0 %v573
    %753 = vmatpush.bf16.msra.mxu0 %v569
    %754 = vmatpush.bf16.msra.mxu0 %v565
    %755 = vmatpush.bf16.msra.mxu0 %v561
    %756 = vmatpush.bf16.msra.mxu0 %v557
    %757 = vmatmul.bf16.gmra.mxu0 %v263
    %v758 = vpop.f32.mrf.mxu0
    %v759 = vadd.f32 %v250, %v758
    %v760 = vpop.f32.mrf.mxu0
    %761 = vdwg.mxu0
    %762 = vmatpush.bf16.msra.mxu0 %v617
    %763 = vmatpush.bf16.msra.mxu0 %v613
    %764 = vmatpush.bf16.msra.mxu0 %v609
    %765 = vmatpush.bf16.msra.mxu0 %v605
    %766 = vmatpush.bf16.msra.mxu0 %v601
    %767 = vmatpush.bf16.msra.mxu0 %v597
    %768 = vmatpush.bf16.msra.mxu0 %v593
    %769 = vmatpush.bf16.msra.mxu0 %v589
    %770 = vmatmul.bf16.gmra.mxu0 %v264
    %v771 = vpop.f32.mrf.mxu0
    %v772 = vadd.f32 %v759, %v771
    %v773 = vpop.f32.mrf.mxu0
    %774 = vdwg.mxu0
    %775 = vmatpush.bf16.msra.mxu0 %v649
    %776 = vmatpush.bf16.msra.mxu0 %v645
    %777 = vmatpush.bf16.msra.mxu0 %v641
    %778 = vmatpush.bf16.msra.mxu0 %v637
    %779 = vmatpush.bf16.msra.mxu0 %v633
    %780 = vmatpush.bf16.msra.mxu0 %v629
    %781 = vmatpush.bf16.msra.mxu0 %v625
    %782 = vmatpush.bf16.msra.mxu0 %v621
    %783 = vmatmul.bf16.gmra.mxu0 %v265
    %v784 = vpop.f32.mrf.mxu0
    %v785 = vadd.f32 %v772, %v784
    %v786 = vpop.f32.mrf.mxu0
    %787 = vdwg.mxu0
    %788 = vmatpush.bf16.msra.mxu0 %v586
    %789 = vmatpush.bf16.msra.mxu0 %v582
    %790 = vmatpush.bf16.msra.mxu0 %v578
    %791 = vmatpush.bf16.msra.mxu0 %v574
    %792 = vmatpush.bf16.msra.mxu0 %v570
    %793 = vmatpush.bf16.msra.mxu0 %v566
    %794 = vmatpush.bf16.msra.mxu0 %v562
    %795 = vmatpush.bf16.msra.mxu0 %v558
    %796 = vmatmul.bf16.gmra.mxu0 %v263
    %v797 = vpop.f32.mrf.mxu0
    %v798 = vadd.f32 %v251, %v797
    %v799 = vpop.f32.mrf.mxu0
    %800 = vdwg.mxu0
    %801 = vmatpush.bf16.msra.mxu0 %v618
    %802 = vmatpush.bf16.msra.mxu0 %v614
    %803 = vmatpush.bf16.msra.mxu0 %v610
    %804 = vmatpush.bf16.msra.mxu0 %v606
    %805 = vmatpush.bf16.msra.mxu0 %v602
    %806 = vmatpush.bf16.msra.mxu0 %v598
    %807 = vmatpush.bf16.msra.mxu0 %v594
    %808 = vmatpush.bf16.msra.mxu0 %v590
    %809 = vmatmul.bf16.gmra.mxu0 %v264
    %v810 = vpop.f32.mrf.mxu0
    %v811 = vadd.f32 %v798, %v810
    %v812 = vpop.f32.mrf.mxu0
    %813 = vdwg.mxu0
    %814 = vmatpush.bf16.msra.mxu0 %v650
    %815 = vmatpush.bf16.msra.mxu0 %v646
    %816 = vmatpush.bf16.msra.mxu0 %v642
    %817 = vmatpush.bf16.msra.mxu0 %v638
    %818 = vmatpush.bf16.msra.mxu0 %v634
    %819 = vmatpush.bf16.msra.mxu0 %v630
    %820 = vmatpush.bf16.msra.mxu0 %v626
    %821 = vmatpush.bf16.msra.mxu0 %v622
    %822 = vmatmul.bf16.gmra.mxu0 %v265
    %v823 = vpop.f32.mrf.mxu0
    %v824 = vadd.f32 %v811, %v823
    %v825 = vpop.f32.mrf.mxu0
    %826 = vdwg.mxu0
    %827 = vmatpush.bf16.msra.mxu0 %v587
    %828 = vmatpush.bf16.msra.mxu0 %v583
    %829 = vmatpush.bf16.msra.mxu0 %v579
    %830 = vmatpush.bf16.msra.mxu0 %v575
    %831 = vmatpush.bf16.msra.mxu0 %v571
    %832 = vmatpush.bf16.msra.mxu0 %v567
    %833 = vmatpush.bf16.msra.mxu0 %v563
    %834 = vmatpush.bf16.msra.mxu0 %v559
    %835 = vmatmul.bf16.gmra.mxu0 %v263
    %v836 = vpop.f32.mrf.mxu0
    %v837 = vadd.f32 %v252, %v836
    %v838 = vpop.f32.mrf.mxu0
    %839 = vdwg.mxu0
    %840 = vmatpush.bf16.msra.mxu0 %v619
    %841 = vmatpush.bf16.msra.mxu0 %v615
    %842 = vmatpush.bf16.msra.mxu0 %v611
    %843 = vmatpush.bf16.msra.mxu0 %v607
    %844 = vmatpush.bf16.msra.mxu0 %v603
    %845 = vmatpush.bf16.msra.mxu0 %v599
    %846 = vmatpush.bf16.msra.mxu0 %v595
    %847 = vmatpush.bf16.msra.mxu0 %v591
    %848 = vmatmul.bf16.gmra.mxu0 %v264
    %v849 = vpop.f32.mrf.mxu0
    %v850 = vadd.f32 %v837, %v849
    %v851 = vpop.f32.mrf.mxu0
    %852 = vdwg.mxu0
    %853 = vmatpush.bf16.msra.mxu0 %v651
    %854 = vmatpush.bf16.msra.mxu0 %v647
    %855 = vmatpush.bf16.msra.mxu0 %v643
    %856 = vmatpush.bf16.msra.mxu0 %v639
    %857 = vmatpush.bf16.msra.mxu0 %v635
    %858 = vmatpush.bf16.msra.mxu0 %v631
    %859 = vmatpush.bf16.msra.mxu0 %v627
    %860 = vmatpush.bf16.msra.mxu0 %v623
    %861 = vmatmul.bf16.gmra.mxu0 %v265
    %v862 = vpop.f32.mrf.mxu0
    %v863 = vadd.f32 %v850, %v862
    %v864 = vpop.f32.mrf.mxu0
    %865 = vdwg.mxu0
    %866 = vmatpush.bf16.msra.mxu0 %v588
    %867 = vmatpush.bf16.msra.mxu0 %v584
    %868 = vmatpush.bf16.msra.mxu0 %v580
    %869 = vmatpush.bf16.msra.mxu0 %v576
    %870 = vmatpush.bf16.msra.mxu0 %v572
    %871 = vmatpush.bf16.msra.mxu0 %v568
    %872 = vmatpush.bf16.msra.mxu0 %v564
    %873 = vmatpush.bf16.msra.mxu0 %v560
    %874 = vmatmul.bf16.gmra.mxu0 %v263
    %v875 = vpop.f32.mrf.mxu0
    %v876 = vadd.f32 %v253, %v875
    %v877 = vpop.f32.mrf.mxu0
    %878 = vdwg.mxu0
    %879 = vmatpush.bf16.msra.mxu0 %v620
    %880 = vmatpush.bf16.msra.mxu0 %v616
    %881 = vmatpush.bf16.msra.mxu0 %v612
    %882 = vmatpush.bf16.msra.mxu0 %v608
    %883 = vmatpush.bf16.msra.mxu0 %v604
    %884 = vmatpush.bf16.msra.mxu0 %v600
    %885 = vmatpush.bf16.msra.mxu0 %v596
    %886 = vmatpush.bf16.msra.mxu0 %v592
    %887 = vmatmul.bf16.gmra.mxu0 %v264
    %v888 = vpop.f32.mrf.mxu0
    %v889 = vadd.f32 %v876, %v888
    %v890 = vpop.f32.mrf.mxu0
    %891 = vdwg.mxu0
    %892 = vmatpush.bf16.msra.mxu0 %v652
    %893 = vmatpush.bf16.msra.mxu0 %v648
    %894 = vmatpush.bf16.msra.mxu0 %v644
    %895 = vmatpush.bf16.msra.mxu0 %v640
    %896 = vmatpush.bf16.msra.mxu0 %v636
    %897 = vmatpush.bf16.msra.mxu0 %v632
    %898 = vmatpush.bf16.msra.mxu0 %v628
    %899 = vmatpush.bf16.msra.mxu0 %v624
    %900 = vmatmul.bf16.gmra.mxu0 %v265
    %v901 = vpop.f32.mrf.mxu0
    %v902 = vadd.f32 %v889, %v901
    %v903 = vpop.f32.mrf.mxu0
    %904 = vdwg.mxu0
    %v905 = vpack.c.bf16 %v824, %v785
    %v906 = vpack.c.bf16 %v902, %v863
    %v907 = vunpack.c.l.bf16 %v905
    %v908 = vunpack.c.h.bf16 %v905
    %v909 = vunpack.c.l.bf16 %v906
    %v910 = vunpack.c.h.bf16 %v906
    %v911 = vmul.f32 %v907, 0.0009994507
    %v912 = vmul.f32 %v908, 0.0009994507
    %v913 = vmul.f32 %v909, 0.0009994507
    %v914 = vmul.f32 %v910, 0.0009994507
    %v915 = vpack.c.bf16 %v912, %v911
    %v916 = vpack.c.bf16 %v914, %v913
    %v917 = vunpack.c.l.bf16 %v915
    %v918 = vunpack.c.h.bf16 %v915
    %v919 = vunpack.c.l.bf16 %v916
    %v920 = vunpack.c.h.bf16 %v916
    %v921 = vmax.f32 %v907, %v917
    %v922 = vmax.f32 %v908, %v918
    %v923 = vmax.f32 %v909, %v919
    %v924 = vmax.f32 %v910, %v920
    %v925 = vpack.c.bf16 %v921, %v921
    %v926 = vpack.c.bf16 %v922, %v922
    %v927 = vpack.c.bf16 %v923, %v923
    %v928 = vpack.c.bf16 %v924, %v924
    %v929 = vld [vmem:[#allocation8] sm:$0xff]
    %v930 = vld [vmem:[#allocation8 + $0x8] sm:$0xff]
    %v931 = vld [vmem:[#allocation8 + $0x10] sm:$0xff]
    %v932 = vld [vmem:[#allocation8 + $0x18] sm:$0xff]
    %v933 = vld [vmem:[#allocation8 + $0x20] sm:$0xff]
    %v934 = vld [vmem:[#allocation8 + $0x28] sm:$0xff]
    %v935 = vld [vmem:[#allocation8 + $0x30] sm:$0xff]
    %v936 = vld [vmem:[#allocation8 + $0x38] sm:$0xff]
    %v937 = vld [vmem:[#allocation8 + $0x40] sm:$0xff]
    %v938 = vld [vmem:[#allocation8 + $0x48] sm:$0xff]
    %v939 = vld [vmem:[#allocation8 + $0x50] sm:$0xff]
    %v940 = vld [vmem:[#allocation8 + $0x58] sm:$0xff]
    %v941 = vld [vmem:[#allocation8 + $0x60] sm:$0xff]
    %v942 = vld [vmem:[#allocation8 + $0x68] sm:$0xff]
    %v943 = vld [vmem:[#allocation8 + $0x70] sm:$0xff]
    %v944 = vld [vmem:[#allocation8 + $0x78] sm:$0xff]
    %v945 = vld [vmem:[#allocation8 + $0x80] sm:$0xff]
    %v946 = vld [vmem:[#allocation8 + $0x88] sm:$0xff]
    %v947 = vld [vmem:[#allocation8 + $0x90] sm:$0xff]
    %v948 = vld [vmem:[#allocation8 + $0x98] sm:$0xff]
    %v949 = vld [vmem:[#allocation8 + $0xa0] sm:$0xff]
    %v950 = vld [vmem:[#allocation8 + $0xa8] sm:$0xff]
    %v951 = vld [vmem:[#allocation8 + $0xb0] sm:$0xff]
    %v952 = vld [vmem:[#allocation8 + $0xb8] sm:$0xff]
    %v953 = vld [vmem:[#allocation8 + $0xc0] sm:$0xff]
    %v954 = vld [vmem:[#allocation8 + $0xc8] sm:$0xff]
    %v955 = vld [vmem:[#allocation8 + $0xd0] sm:$0xff]
    %v956 = vld [vmem:[#allocation8 + $0xd8] sm:$0xff]
    %v957 = vld [vmem:[#allocation8 + $0xe0] sm:$0xff]
    %v958 = vld [vmem:[#allocation8 + $0xe8] sm:$0xff]
    %v959 = vld [vmem:[#allocation8 + $0xf0] sm:$0xff]
    %v960 = vld [vmem:[#allocation8 + $0xf8] sm:$0xff]
    %v961 = vld [vmem:[#allocation8 + $0x100] sm:$0xff]
    %v962 = vld [vmem:[#allocation8 + $0x108] sm:$0xff]
    %v963 = vld [vmem:[#allocation8 + $0x110] sm:$0xff]
    %v964 = vld [vmem:[#allocation8 + $0x118] sm:$0xff]
    %v965 = vld [vmem:[#allocation8 + $0x120] sm:$0xff]
    %v966 = vld [vmem:[#allocation8 + $0x128] sm:$0xff]
    %v967 = vld [vmem:[#allocation8 + $0x130] sm:$0xff]
    %v968 = vld [vmem:[#allocation8 + $0x138] sm:$0xff]
    %v969 = vld [vmem:[#allocation8 + $0x140] sm:$0xff]
    %v970 = vld [vmem:[#allocation8 + $0x148] sm:$0xff]
    %v971 = vld [vmem:[#allocation8 + $0x150] sm:$0xff]
    %v972 = vld [vmem:[#allocation8 + $0x158] sm:$0xff]
    %v973 = vld [vmem:[#allocation8 + $0x160] sm:$0xff]
    %v974 = vld [vmem:[#allocation8 + $0x168] sm:$0xff]
    %v975 = vld [vmem:[#allocation8 + $0x170] sm:$0xff]
    %v976 = vld [vmem:[#allocation8 + $0x178] sm:$0xff]
    %v977 = vld [vmem:[#allocation8 + $0x180] sm:$0xff]
    %v978 = vld [vmem:[#allocation8 + $0x188] sm:$0xff]
    %v979 = vld [vmem:[#allocation8 + $0x190] sm:$0xff]
    %v980 = vld [vmem:[#allocation8 + $0x198] sm:$0xff]
    %v981 = vld [vmem:[#allocation8 + $0x1a0] sm:$0xff]
    %v982 = vld [vmem:[#allocation8 + $0x1a8] sm:$0xff]
    %v983 = vld [vmem:[#allocation8 + $0x1b0] sm:$0xff]
    %v984 = vld [vmem:[#allocation8 + $0x1b8] sm:$0xff]
    %v985 = vld [vmem:[#allocation8 + $0x1c0] sm:$0xff]
    %v986 = vld [vmem:[#allocation8 + $0x1c8] sm:$0xff]
    %v987 = vld [vmem:[#allocation8 + $0x1d0] sm:$0xff]
    %v988 = vld [vmem:[#allocation8 + $0x1d8] sm:$0xff]
    %v989 = vld [vmem:[#allocation8 + $0x1e0] sm:$0xff]
    %v990 = vld [vmem:[#allocation8 + $0x1e8] sm:$0xff]
    %v991 = vld [vmem:[#allocation8 + $0x1f0] sm:$0xff]
    %v992 = vld [vmem:[#allocation8 + $0x1f8] sm:$0xff]
    %v993 = vld [vmem:[#allocation8 + $0x200] sm:$0xff]
    %v994 = vld [vmem:[#allocation8 + $0x208] sm:$0xff]
    %v995 = vld [vmem:[#allocation8 + $0x210] sm:$0xff]
    %v996 = vld [vmem:[#allocation8 + $0x218] sm:$0xff]
    %v997 = vld [vmem:[#allocation8 + $0x220] sm:$0xff]
    %v998 = vld [vmem:[#allocation8 + $0x228] sm:$0xff]
    %v999 = vld [vmem:[#allocation8 + $0x230] sm:$0xff]
    %v1000 = vld [vmem:[#allocation8 + $0x238] sm:$0xff]
    %v1001 = vld [vmem:[#allocation8 + $0x240] sm:$0xff]
    %v1002 = vld [vmem:[#allocation8 + $0x248] sm:$0xff]
    %v1003 = vld [vmem:[#allocation8 + $0x250] sm:$0xff]
    %v1004 = vld [vmem:[#allocation8 + $0x258] sm:$0xff]
    %v1005 = vld [vmem:[#allocation8 + $0x260] sm:$0xff]
    %v1006 = vld [vmem:[#allocation8 + $0x268] sm:$0xff]
    %v1007 = vld [vmem:[#allocation8 + $0x270] sm:$0xff]
    %v1008 = vld [vmem:[#allocation8 + $0x278] sm:$0xff]
    %v1009 = vld [vmem:[#allocation8 + $0x280] sm:$0xff]
    %v1010 = vld [vmem:[#allocation8 + $0x288] sm:$0xff]
    %v1011 = vld [vmem:[#allocation8 + $0x290] sm:$0xff]
    %v1012 = vld [vmem:[#allocation8 + $0x298] sm:$0xff]
    %v1013 = vld [vmem:[#allocation8 + $0x2a0] sm:$0xff]
    %v1014 = vld [vmem:[#allocation8 + $0x2a8] sm:$0xff]
    %v1015 = vld [vmem:[#allocation8 + $0x2b0] sm:$0xff]
    %v1016 = vld [vmem:[#allocation8 + $0x2b8] sm:$0xff]
    %v1017 = vld [vmem:[#allocation8 + $0x2c0] sm:$0xff]
    %v1018 = vld [vmem:[#allocation8 + $0x2c8] sm:$0xff]
    %v1019 = vld [vmem:[#allocation8 + $0x2d0] sm:$0xff]
    %v1020 = vld [vmem:[#allocation8 + $0x2d8] sm:$0xff]
    %v1021 = vld [vmem:[#allocation8 + $0x2e0] sm:$0xff]
    %v1022 = vld [vmem:[#allocation8 + $0x2e8] sm:$0xff]
    %v1023 = vld [vmem:[#allocation8 + $0x2f0] sm:$0xff]
    %v1024 = vld [vmem:[#allocation8 + $0x2f8] sm:$0xff]
    %v1025 = vld [vmem:[#allocation8 + $0x300] sm:$0xff]
    %v1026 = vld [vmem:[#allocation8 + $0x308] sm:$0xff]
    %v1027 = vld [vmem:[#allocation8 + $0x310] sm:$0xff]
    %v1028 = vld [vmem:[#allocation8 + $0x318] sm:$0xff]
    %v1029 = vld [vmem:[#allocation8 + $0x320] sm:$0xff]
    %v1030 = vld [vmem:[#allocation8 + $0x328] sm:$0xff]
    %v1031 = vld [vmem:[#allocation8 + $0x330] sm:$0xff]
    %v1032 = vld [vmem:[#allocation8 + $0x338] sm:$0xff]
    %v1033 = vld [vmem:[#allocation8 + $0x340] sm:$0xff]
    %v1034 = vld [vmem:[#allocation8 + $0x348] sm:$0xff]
    %v1035 = vld [vmem:[#allocation8 + $0x350] sm:$0xff]
    %v1036 = vld [vmem:[#allocation8 + $0x358] sm:$0xff]
    %v1037 = vld [vmem:[#allocation8 + $0x360] sm:$0xff]
    %v1038 = vld [vmem:[#allocation8 + $0x368] sm:$0xff]
    %v1039 = vld [vmem:[#allocation8 + $0x370] sm:$0xff]
    %v1040 = vld [vmem:[#allocation8 + $0x378] sm:$0xff]
    %v1041 = vld [vmem:[#allocation8 + $0x380] sm:$0xff]
    %v1042 = vld [vmem:[#allocation8 + $0x388] sm:$0xff]
    %v1043 = vld [vmem:[#allocation8 + $0x390] sm:$0xff]
    %v1044 = vld [vmem:[#allocation8 + $0x398] sm:$0xff]
    %v1045 = vld [vmem:[#allocation8 + $0x3a0] sm:$0xff]
    %v1046 = vld [vmem:[#allocation8 + $0x3a8] sm:$0xff]
    %v1047 = vld [vmem:[#allocation8 + $0x3b0] sm:$0xff]
    %v1048 = vld [vmem:[#allocation8 + $0x3b8] sm:$0xff]
    %v1049 = vld [vmem:[#allocation8 + $0x3c0] sm:$0xff]
    %v1050 = vld [vmem:[#allocation8 + $0x3c8] sm:$0xff]
    %v1051 = vld [vmem:[#allocation8 + $0x3d0] sm:$0xff]
    %v1052 = vld [vmem:[#allocation8 + $0x3d8] sm:$0xff]
    %v1053 = vld [vmem:[#allocation8 + $0x3e0] sm:$0xff]
    %v1054 = vld [vmem:[#allocation8 + $0x3e8] sm:$0xff]
    %v1055 = vld [vmem:[#allocation8 + $0x3f0] sm:$0xff]
    %v1056 = vld [vmem:[#allocation8 + $0x3f8] sm:$0xff]
    %v1057 = vld [vmem:[#allocation8 + $0x400] sm:$0xff]
    %v1058 = vld [vmem:[#allocation8 + $0x408] sm:$0xff]
    %v1059 = vld [vmem:[#allocation8 + $0x410] sm:$0xff]
    %v1060 = vld [vmem:[#allocation8 + $0x418] sm:$0xff]
    %v1061 = vld [vmem:[#allocation8 + $0x420] sm:$0xff]
    %v1062 = vld [vmem:[#allocation8 + $0x428] sm:$0xff]
    %v1063 = vld [vmem:[#allocation8 + $0x430] sm:$0xff]
    %v1064 = vld [vmem:[#allocation8 + $0x438] sm:$0xff]
    %v1065 = vld [vmem:[#allocation8 + $0x440] sm:$0xff]
    %v1066 = vld [vmem:[#allocation8 + $0x448] sm:$0xff]
    %v1067 = vld [vmem:[#allocation8 + $0x450] sm:$0xff]
    %v1068 = vld [vmem:[#allocation8 + $0x458] sm:$0xff]
    %v1069 = vld [vmem:[#allocation8 + $0x460] sm:$0xff]
    %v1070 = vld [vmem:[#allocation8 + $0x468] sm:$0xff]
    %v1071 = vld [vmem:[#allocation8 + $0x470] sm:$0xff]
    %v1072 = vld [vmem:[#allocation8 + $0x478] sm:$0xff]
    %v1073 = vld [vmem:[#allocation8 + $0x480] sm:$0xff]
    %v1074 = vld [vmem:[#allocation8 + $0x488] sm:$0xff]
    %v1075 = vld [vmem:[#allocation8 + $0x490] sm:$0xff]
    %v1076 = vld [vmem:[#allocation8 + $0x498] sm:$0xff]
    %v1077 = vld [vmem:[#allocation8 + $0x4a0] sm:$0xff]
    %v1078 = vld [vmem:[#allocation8 + $0x4a8] sm:$0xff]
    %v1079 = vld [vmem:[#allocation8 + $0x4b0] sm:$0xff]
    %v1080 = vld [vmem:[#allocation8 + $0x4b8] sm:$0xff]
    %v1081 = vld [vmem:[#allocation8 + $0x4c0] sm:$0xff]
    %v1082 = vld [vmem:[#allocation8 + $0x4c8] sm:$0xff]
    %v1083 = vld [vmem:[#allocation8 + $0x4d0] sm:$0xff]
    %v1084 = vld [vmem:[#allocation8 + $0x4d8] sm:$0xff]
    %v1085 = vld [vmem:[#allocation8 + $0x4e0] sm:$0xff]
    %v1086 = vld [vmem:[#allocation8 + $0x4e8] sm:$0xff]
    %v1087 = vld [vmem:[#allocation8 + $0x4f0] sm:$0xff]
    %v1088 = vld [vmem:[#allocation8 + $0x4f8] sm:$0xff]
    %v1089 = vld [vmem:[#allocation8 + $0x500] sm:$0xff]
    %v1090 = vld [vmem:[#allocation8 + $0x508] sm:$0xff]
    %v1091 = vld [vmem:[#allocation8 + $0x510] sm:$0xff]
    %v1092 = vld [vmem:[#allocation8 + $0x518] sm:$0xff]
    %v1093 = vld [vmem:[#allocation8 + $0x520] sm:$0xff]
    %v1094 = vld [vmem:[#allocation8 + $0x528] sm:$0xff]
    %v1095 = vld [vmem:[#allocation8 + $0x530] sm:$0xff]
    %v1096 = vld [vmem:[#allocation8 + $0x538] sm:$0xff]
    %v1097 = vld [vmem:[#allocation8 + $0x540] sm:$0xff]
    %v1098 = vld [vmem:[#allocation8 + $0x548] sm:$0xff]
    %v1099 = vld [vmem:[#allocation8 + $0x550] sm:$0xff]
    %v1100 = vld [vmem:[#allocation8 + $0x558] sm:$0xff]
    %v1101 = vld [vmem:[#allocation8 + $0x560] sm:$0xff]
    %v1102 = vld [vmem:[#allocation8 + $0x568] sm:$0xff]
    %v1103 = vld [vmem:[#allocation8 + $0x570] sm:$0xff]
    %v1104 = vld [vmem:[#allocation8 + $0x578] sm:$0xff]
    %v1105 = vld [vmem:[#allocation8 + $0x580] sm:$0xff]
    %v1106 = vld [vmem:[#allocation8 + $0x588] sm:$0xff]
    %v1107 = vld [vmem:[#allocation8 + $0x590] sm:$0xff]
    %v1108 = vld [vmem:[#allocation8 + $0x598] sm:$0xff]
    %v1109 = vld [vmem:[#allocation8 + $0x5a0] sm:$0xff]
    %v1110 = vld [vmem:[#allocation8 + $0x5a8] sm:$0xff]
    %v1111 = vld [vmem:[#allocation8 + $0x5b0] sm:$0xff]
    %v1112 = vld [vmem:[#allocation8 + $0x5b8] sm:$0xff]
    %v1113 = vld [vmem:[#allocation8 + $0x5c0] sm:$0xff]
    %v1114 = vld [vmem:[#allocation8 + $0x5c8] sm:$0xff]
    %v1115 = vld [vmem:[#allocation8 + $0x5d0] sm:$0xff]
    %v1116 = vld [vmem:[#allocation8 + $0x5d8] sm:$0xff]
    %v1117 = vld [vmem:[#allocation8 + $0x5e0] sm:$0xff]
    %v1118 = vld [vmem:[#allocation8 + $0x5e8] sm:$0xff]
    %v1119 = vld [vmem:[#allocation8 + $0x5f0] sm:$0xff]
    %v1120 = vld [vmem:[#allocation8 + $0x5f8] sm:$0xff]
    %v1121 = vld [vmem:[#allocation8 + $0x600] sm:$0xff]
    %v1122 = vld [vmem:[#allocation8 + $0x608] sm:$0xff]
    %v1123 = vld [vmem:[#allocation8 + $0x610] sm:$0xff]
    %v1124 = vld [vmem:[#allocation8 + $0x618] sm:$0xff]
    %v1125 = vld [vmem:[#allocation8 + $0x620] sm:$0xff]
    %v1126 = vld [vmem:[#allocation8 + $0x628] sm:$0xff]
    %v1127 = vld [vmem:[#allocation8 + $0x630] sm:$0xff]
    %v1128 = vld [vmem:[#allocation8 + $0x638] sm:$0xff]
    %v1129 = vld [vmem:[#allocation8 + $0x640] sm:$0xff]
    %v1130 = vld [vmem:[#allocation8 + $0x648] sm:$0xff]
    %v1131 = vld [vmem:[#allocation8 + $0x650] sm:$0xff]
    %v1132 = vld [vmem:[#allocation8 + $0x658] sm:$0xff]
    %v1133 = vld [vmem:[#allocation8 + $0x660] sm:$0xff]
    %v1134 = vld [vmem:[#allocation8 + $0x668] sm:$0xff]
    %v1135 = vld [vmem:[#allocation8 + $0x670] sm:$0xff]
    %v1136 = vld [vmem:[#allocation8 + $0x678] sm:$0xff]
    %v1137 = vld [vmem:[#allocation8 + $0x680] sm:$0xff]
    %v1138 = vld [vmem:[#allocation8 + $0x688] sm:$0xff]
    %v1139 = vld [vmem:[#allocation8 + $0x690] sm:$0xff]
    %v1140 = vld [vmem:[#allocation8 + $0x698] sm:$0xff]
    %v1141 = vld [vmem:[#allocation8 + $0x6a0] sm:$0xff]
    %v1142 = vld [vmem:[#allocation8 + $0x6a8] sm:$0xff]
    %v1143 = vld [vmem:[#allocation8 + $0x6b0] sm:$0xff]
    %v1144 = vld [vmem:[#allocation8 + $0x6b8] sm:$0xff]
    %v1145 = vld [vmem:[#allocation8 + $0x6c0] sm:$0xff]
    %v1146 = vld [vmem:[#allocation8 + $0x6c8] sm:$0xff]
    %v1147 = vld [vmem:[#allocation8 + $0x6d0] sm:$0xff]
    %v1148 = vld [vmem:[#allocation8 + $0x6d8] sm:$0xff]
    %v1149 = vld [vmem:[#allocation8 + $0x6e0] sm:$0xff]
    %v1150 = vld [vmem:[#allocation8 + $0x6e8] sm:$0xff]
    %v1151 = vld [vmem:[#allocation8 + $0x6f0] sm:$0xff]
    %v1152 = vld [vmem:[#allocation8 + $0x6f8] sm:$0xff]
    %v1153 = vld [vmem:[#allocation8 + $0x700] sm:$0xff]
    %v1154 = vld [vmem:[#allocation8 + $0x708] sm:$0xff]
    %v1155 = vld [vmem:[#allocation8 + $0x710] sm:$0xff]
    %v1156 = vld [vmem:[#allocation8 + $0x718] sm:$0xff]
    %v1157 = vld [vmem:[#allocation8 + $0x720] sm:$0xff]
    %v1158 = vld [vmem:[#allocation8 + $0x728] sm:$0xff]
    %v1159 = vld [vmem:[#allocation8 + $0x730] sm:$0xff]
    %v1160 = vld [vmem:[#allocation8 + $0x738] sm:$0xff]
    %v1161 = vld [vmem:[#allocation8 + $0x740] sm:$0xff]
    %v1162 = vld [vmem:[#allocation8 + $0x748] sm:$0xff]
    %v1163 = vld [vmem:[#allocation8 + $0x750] sm:$0xff]
    %v1164 = vld [vmem:[#allocation8 + $0x758] sm:$0xff]
    %v1165 = vld [vmem:[#allocation8 + $0x760] sm:$0xff]
    %v1166 = vld [vmem:[#allocation8 + $0x768] sm:$0xff]
    %v1167 = vld [vmem:[#allocation8 + $0x770] sm:$0xff]
    %v1168 = vld [vmem:[#allocation8 + $0x778] sm:$0xff]
    %v1169 = vld [vmem:[#allocation8 + $0x780] sm:$0xff]
    %v1170 = vld [vmem:[#allocation8 + $0x788] sm:$0xff]
    %v1171 = vld [vmem:[#allocation8 + $0x790] sm:$0xff]
    %v1172 = vld [vmem:[#allocation8 + $0x798] sm:$0xff]
    %v1173 = vld [vmem:[#allocation8 + $0x7a0] sm:$0xff]
    %v1174 = vld [vmem:[#allocation8 + $0x7a8] sm:$0xff]
    %v1175 = vld [vmem:[#allocation8 + $0x7b0] sm:$0xff]
    %v1176 = vld [vmem:[#allocation8 + $0x7b8] sm:$0xff]
    %v1177 = vld [vmem:[#allocation8 + $0x7c0] sm:$0xff]
    %v1178 = vld [vmem:[#allocation8 + $0x7c8] sm:$0xff]
    %v1179 = vld [vmem:[#allocation8 + $0x7d0] sm:$0xff]
    %v1180 = vld [vmem:[#allocation8 + $0x7d8] sm:$0xff]
    %v1181 = vld [vmem:[#allocation8 + $0x7e0] sm:$0xff]
    %v1182 = vld [vmem:[#allocation8 + $0x7e8] sm:$0xff]
    %v1183 = vld [vmem:[#allocation8 + $0x7f0] sm:$0xff]
    %v1184 = vld [vmem:[#allocation8 + $0x7f8] sm:$0xff]
    %v1185 = vld [vmem:[#allocation10] sm:$0xff]
    %v1187 = vperm.slane %v1185, 0
    %v1188 = vperm.slane %v1185, 1
    %v1189 = vperm.slane %v1185, 2
    %v1190 = vperm.slane %v1185, 3
    %v1191 = vperm.slane %v1185, 4
    %v1192 = vperm.slane %v1185, 5
    %v1193 = vperm.slane %v1185, 6
    %v1194 = vperm.slane %v1185, 7
    %v1459 = vunpack.c.l.b16 %v929
    %v1460 = vunpack.c.h.b16 %v929
    %v1461 = vunpack.c.l.b16 %v930
    %v1462 = vunpack.c.h.b16 %v930
    %v1463 = vunpack.c.l.b16 %v931
    %v1464 = vunpack.c.h.b16 %v931
    %v1465 = vunpack.c.l.b16 %v932
    %v1466 = vunpack.c.h.b16 %v932
    %v1467 = vunpack.c.l.b16 %v933
    %v1468 = vunpack.c.h.b16 %v933
    %v1469 = vunpack.c.l.b16 %v934
    %v1470 = vunpack.c.h.b16 %v934
    %v1471 = vunpack.c.l.b16 %v935
    %v1472 = vunpack.c.h.b16 %v935
    %v1473 = vunpack.c.l.b16 %v936
    %v1474 = vunpack.c.h.b16 %v936
    %v1475 = vunpack.c.l.b16 %v937
    %v1476 = vunpack.c.h.b16 %v937
    %v1477 = vunpack.c.l.b16 %v938
    %v1478 = vunpack.c.h.b16 %v938
    %v1479 = vunpack.c.l.b16 %v939
    %v1480 = vunpack.c.h.b16 %v939
    %v1481 = vunpack.c.l.b16 %v940
    %v1482 = vunpack.c.h.b16 %v940
    %v1483 = vunpack.c.l.b16 %v941
    %v1484 = vunpack.c.h.b16 %v941
    %v1485 = vunpack.c.l.b16 %v942
    %v1486 = vunpack.c.h.b16 %v942
    %v1487 = vunpack.c.l.b16 %v943
    %v1488 = vunpack.c.h.b16 %v943
    %v1489 = vunpack.c.l.b16 %v944
    %v1490 = vunpack.c.h.b16 %v944
    %v1491 = vunpack.c.l.b16 %v945
    %v1492 = vunpack.c.h.b16 %v945
    %v1493 = vunpack.c.l.b16 %v946
    %v1494 = vunpack.c.h.b16 %v946
    %v1495 = vunpack.c.l.b16 %v947
    %v1496 = vunpack.c.h.b16 %v947
    %v1497 = vunpack.c.l.b16 %v948
    %v1498 = vunpack.c.h.b16 %v948
    %v1499 = vunpack.c.l.b16 %v949
    %v1500 = vunpack.c.h.b16 %v949
    %v1501 = vunpack.c.l.b16 %v950
    %v1502 = vunpack.c.h.b16 %v950
    %v1503 = vunpack.c.l.b16 %v951
    %v1504 = vunpack.c.h.b16 %v951
    %v1505 = vunpack.c.l.b16 %v952
    %v1506 = vunpack.c.h.b16 %v952
    %v1507 = vunpack.c.l.b16 %v953
    %v1508 = vunpack.c.h.b16 %v953
    %v1509 = vunpack.c.l.b16 %v954
    %v1510 = vunpack.c.h.b16 %v954
    %v1511 = vunpack.c.l.b16 %v955
    %v1512 = vunpack.c.h.b16 %v955
    %v1513 = vunpack.c.l.b16 %v956
    %v1514 = vunpack.c.h.b16 %v956
    %v1515 = vunpack.c.l.b16 %v957
    %v1516 = vunpack.c.h.b16 %v957
    %v1517 = vunpack.c.l.b16 %v958
    %v1518 = vunpack.c.h.b16 %v958
    %v1519 = vunpack.c.l.b16 %v959
    %v1520 = vunpack.c.h.b16 %v959
    %v1521 = vunpack.c.l.b16 %v960
    %v1522 = vunpack.c.h.b16 %v960
    %v1523 = vunpack.c.l.b16 %v961
    %v1524 = vunpack.c.h.b16 %v961
    %v1525 = vunpack.c.l.b16 %v962
    %v1526 = vunpack.c.h.b16 %v962
    %v1527 = vunpack.c.l.b16 %v963
    %v1528 = vunpack.c.h.b16 %v963
    %v1529 = vunpack.c.l.b16 %v964
    %v1530 = vunpack.c.h.b16 %v964
    %v1531 = vunpack.c.l.b16 %v965
    %v1532 = vunpack.c.h.b16 %v965
    %v1533 = vunpack.c.l.b16 %v966
    %v1534 = vunpack.c.h.b16 %v966
    %v1535 = vunpack.c.l.b16 %v967
    %v1536 = vunpack.c.h.b16 %v967
    %v1537 = vunpack.c.l.b16 %v968
    %v1538 = vunpack.c.h.b16 %v968
    %v1539 = vunpack.c.l.b16 %v969
    %v1540 = vunpack.c.h.b16 %v969
    %v1541 = vunpack.c.l.b16 %v970
    %v1542 = vunpack.c.h.b16 %v970
    %v1543 = vunpack.c.l.b16 %v971
    %v1544 = vunpack.c.h.b16 %v971
    %v1545 = vunpack.c.l.b16 %v972
    %v1546 = vunpack.c.h.b16 %v972
    %v1547 = vunpack.c.l.b16 %v973
    %v1548 = vunpack.c.h.b16 %v973
    %v1549 = vunpack.c.l.b16 %v974
    %v1550 = vunpack.c.h.b16 %v974
    %v1551 = vunpack.c.l.b16 %v975
    %v1552 = vunpack.c.h.b16 %v975
    %v1553 = vunpack.c.l.b16 %v976
    %v1554 = vunpack.c.h.b16 %v976
    %v1555 = vunpack.c.l.b16 %v977
    %v1556 = vunpack.c.h.b16 %v977
    %v1557 = vunpack.c.l.b16 %v978
    %v1558 = vunpack.c.h.b16 %v978
    %v1559 = vunpack.c.l.b16 %v979
    %v1560 = vunpack.c.h.b16 %v979
    %v1561 = vunpack.c.l.b16 %v980
    %v1562 = vunpack.c.h.b16 %v980
    %v1563 = vunpack.c.l.b16 %v981
    %v1564 = vunpack.c.h.b16 %v981
    %v1565 = vunpack.c.l.b16 %v982
    %v1566 = vunpack.c.h.b16 %v982
    %v1567 = vunpack.c.l.b16 %v983
    %v1568 = vunpack.c.h.b16 %v983
    %v1569 = vunpack.c.l.b16 %v984
    %v1570 = vunpack.c.h.b16 %v984
    %v1571 = vunpack.c.l.b16 %v985
    %v1572 = vunpack.c.h.b16 %v985
    %v1573 = vunpack.c.l.b16 %v986
    %v1574 = vunpack.c.h.b16 %v986
    %v1575 = vunpack.c.l.b16 %v987
    %v1576 = vunpack.c.h.b16 %v987
    %v1577 = vunpack.c.l.b16 %v988
    %v1578 = vunpack.c.h.b16 %v988
    %v1579 = vunpack.c.l.b16 %v989
    %v1580 = vunpack.c.h.b16 %v989
    %v1581 = vunpack.c.l.b16 %v990
    %v1582 = vunpack.c.h.b16 %v990
    %v1583 = vunpack.c.l.b16 %v991
    %v1584 = vunpack.c.h.b16 %v991
    %v1585 = vunpack.c.l.b16 %v992
    %v1586 = vunpack.c.h.b16 %v992
    %v1587 = vunpack.c.l.b16 %v993
    %v1588 = vunpack.c.h.b16 %v993
    %v1589 = vunpack.c.l.b16 %v994
    %v1590 = vunpack.c.h.b16 %v994
    %v1591 = vunpack.c.l.b16 %v995
    %v1592 = vunpack.c.h.b16 %v995
    %v1593 = vunpack.c.l.b16 %v996
    %v1594 = vunpack.c.h.b16 %v996
    %v1595 = vunpack.c.l.b16 %v997
    %v1596 = vunpack.c.h.b16 %v997
    %v1597 = vunpack.c.l.b16 %v998
    %v1598 = vunpack.c.h.b16 %v998
    %v1599 = vunpack.c.l.b16 %v999
    %v1600 = vunpack.c.h.b16 %v999
    %v1601 = vunpack.c.l.b16 %v1000
    %v1602 = vunpack.c.h.b16 %v1000
    %v1603 = vunpack.c.l.b16 %v1001
    %v1604 = vunpack.c.h.b16 %v1001
    %v1605 = vunpack.c.l.b16 %v1002
    %v1606 = vunpack.c.h.b16 %v1002
    %v1607 = vunpack.c.l.b16 %v1003
    %v1608 = vunpack.c.h.b16 %v1003
    %v1609 = vunpack.c.l.b16 %v1004
    %v1610 = vunpack.c.h.b16 %v1004
    %v1611 = vunpack.c.l.b16 %v1005
    %v1612 = vunpack.c.h.b16 %v1005
    %v1613 = vunpack.c.l.b16 %v1006
    %v1614 = vunpack.c.h.b16 %v1006
    %v1615 = vunpack.c.l.b16 %v1007
    %v1616 = vunpack.c.h.b16 %v1007
    %v1617 = vunpack.c.l.b16 %v1008
    %v1618 = vunpack.c.h.b16 %v1008
    %v1619 = vunpack.c.l.b16 %v1009
    %v1620 = vunpack.c.h.b16 %v1009
    %v1621 = vunpack.c.l.b16 %v1010
    %v1622 = vunpack.c.h.b16 %v1010
    %v1623 = vunpack.c.l.b16 %v1011
    %v1624 = vunpack.c.h.b16 %v1011
    %v1625 = vunpack.c.l.b16 %v1012
    %v1626 = vunpack.c.h.b16 %v1012
    %v1627 = vunpack.c.l.b16 %v1013
    %v1628 = vunpack.c.h.b16 %v1013
    %v1629 = vunpack.c.l.b16 %v1014
    %v1630 = vunpack.c.h.b16 %v1014
    %v1631 = vunpack.c.l.b16 %v1015
    %v1632 = vunpack.c.h.b16 %v1015
    %v1633 = vunpack.c.l.b16 %v1016
    %v1634 = vunpack.c.h.b16 %v1016
    %v1635 = vunpack.c.l.b16 %v1017
    %v1636 = vunpack.c.h.b16 %v1017
    %v1637 = vunpack.c.l.b16 %v1018
    %v1638 = vunpack.c.h.b16 %v1018
    %v1639 = vunpack.c.l.b16 %v1019
    %v1640 = vunpack.c.h.b16 %v1019
    %v1641 = vunpack.c.l.b16 %v1020
    %v1642 = vunpack.c.h.b16 %v1020
    %v1643 = vunpack.c.l.b16 %v1021
    %v1644 = vunpack.c.h.b16 %v1021
    %v1645 = vunpack.c.l.b16 %v1022
    %v1646 = vunpack.c.h.b16 %v1022
    %v1647 = vunpack.c.l.b16 %v1023
    %v1648 = vunpack.c.h.b16 %v1023
    %v1649 = vunpack.c.l.b16 %v1024
    %v1650 = vunpack.c.h.b16 %v1024
    %v1651 = vunpack.c.l.b16 %v1025
    %v1652 = vunpack.c.h.b16 %v1025
    %v1653 = vunpack.c.l.b16 %v1026
    %v1654 = vunpack.c.h.b16 %v1026
    %v1655 = vunpack.c.l.b16 %v1027
    %v1656 = vunpack.c.h.b16 %v1027
    %v1657 = vunpack.c.l.b16 %v1028
    %v1658 = vunpack.c.h.b16 %v1028
    %v1659 = vunpack.c.l.b16 %v1029
    %v1660 = vunpack.c.h.b16 %v1029
    %v1661 = vunpack.c.l.b16 %v1030
    %v1662 = vunpack.c.h.b16 %v1030
    %v1663 = vunpack.c.l.b16 %v1031
    %v1664 = vunpack.c.h.b16 %v1031
    %v1665 = vunpack.c.l.b16 %v1032
    %v1666 = vunpack.c.h.b16 %v1032
    %v1667 = vunpack.c.l.b16 %v1033
    %v1668 = vunpack.c.h.b16 %v1033
    %v1669 = vunpack.c.l.b16 %v1034
    %v1670 = vunpack.c.h.b16 %v1034
    %v1671 = vunpack.c.l.b16 %v1035
    %v1672 = vunpack.c.h.b16 %v1035
    %v1673 = vunpack.c.l.b16 %v1036
    %v1674 = vunpack.c.h.b16 %v1036
    %v1675 = vunpack.c.l.b16 %v1037
    %v1676 = vunpack.c.h.b16 %v1037
    %v1677 = vunpack.c.l.b16 %v1038
    %v1678 = vunpack.c.h.b16 %v1038
    %v1679 = vunpack.c.l.b16 %v1039
    %v1680 = vunpack.c.h.b16 %v1039
    %v1681 = vunpack.c.l.b16 %v1040
    %v1682 = vunpack.c.h.b16 %v1040
    %v1683 = vunpack.c.l.b16 %v1041
    %v1684 = vunpack.c.h.b16 %v1041
    %v1685 = vunpack.c.l.b16 %v1042
    %v1686 = vunpack.c.h.b16 %v1042
    %v1687 = vunpack.c.l.b16 %v1043
    %v1688 = vunpack.c.h.b16 %v1043
    %v1689 = vunpack.c.l.b16 %v1044
    %v1690 = vunpack.c.h.b16 %v1044
    %v1691 = vunpack.c.l.b16 %v1045
    %v1692 = vunpack.c.h.b16 %v1045
    %v1693 = vunpack.c.l.b16 %v1046
    %v1694 = vunpack.c.h.b16 %v1046
    %v1695 = vunpack.c.l.b16 %v1047
    %v1696 = vunpack.c.h.b16 %v1047
    %v1697 = vunpack.c.l.b16 %v1048
    %v1698 = vunpack.c.h.b16 %v1048
    %v1699 = vunpack.c.l.b16 %v1049
    %v1700 = vunpack.c.h.b16 %v1049
    %v1701 = vunpack.c.l.b16 %v1050
    %v1702 = vunpack.c.h.b16 %v1050
    %v1703 = vunpack.c.l.b16 %v1051
    %v1704 = vunpack.c.h.b16 %v1051
    %v1705 = vunpack.c.l.b16 %v1052
    %v1706 = vunpack.c.h.b16 %v1052
    %v1707 = vunpack.c.l.b16 %v1053
    %v1708 = vunpack.c.h.b16 %v1053
    %v1709 = vunpack.c.l.b16 %v1054
    %v1710 = vunpack.c.h.b16 %v1054
    %v1711 = vunpack.c.l.b16 %v1055
    %v1712 = vunpack.c.h.b16 %v1055
    %v1713 = vunpack.c.l.b16 %v1056
    %v1714 = vunpack.c.h.b16 %v1056
    %v1715 = vunpack.c.l.b16 %v1057
    %v1716 = vunpack.c.h.b16 %v1057
    %v1717 = vunpack.c.l.b16 %v1058
    %v1718 = vunpack.c.h.b16 %v1058
    %v1719 = vunpack.c.l.b16 %v1059
    %v1720 = vunpack.c.h.b16 %v1059
    %v1721 = vunpack.c.l.b16 %v1060
    %v1722 = vunpack.c.h.b16 %v1060
    %v1723 = vunpack.c.l.b16 %v1061
    %v1724 = vunpack.c.h.b16 %v1061
    %v1725 = vunpack.c.l.b16 %v1062
    %v1726 = vunpack.c.h.b16 %v1062
    %v1727 = vunpack.c.l.b16 %v1063
    %v1728 = vunpack.c.h.b16 %v1063
    %v1729 = vunpack.c.l.b16 %v1064
    %v1730 = vunpack.c.h.b16 %v1064
    %v1731 = vunpack.c.l.b16 %v1065
    %v1732 = vunpack.c.h.b16 %v1065
    %v1733 = vunpack.c.l.b16 %v1066
    %v1734 = vunpack.c.h.b16 %v1066
    %v1735 = vunpack.c.l.b16 %v1067
    %v1736 = vunpack.c.h.b16 %v1067
    %v1737 = vunpack.c.l.b16 %v1068
    %v1738 = vunpack.c.h.b16 %v1068
    %v1739 = vunpack.c.l.b16 %v1069
    %v1740 = vunpack.c.h.b16 %v1069
    %v1741 = vunpack.c.l.b16 %v1070
    %v1742 = vunpack.c.h.b16 %v1070
    %v1743 = vunpack.c.l.b16 %v1071
    %v1744 = vunpack.c.h.b16 %v1071
    %v1745 = vunpack.c.l.b16 %v1072
    %v1746 = vunpack.c.h.b16 %v1072
    %v1747 = vunpack.c.l.b16 %v1073
    %v1748 = vunpack.c.h.b16 %v1073
    %v1749 = vunpack.c.l.b16 %v1074
    %v1750 = vunpack.c.h.b16 %v1074
    %v1751 = vunpack.c.l.b16 %v1075
    %v1752 = vunpack.c.h.b16 %v1075
    %v1753 = vunpack.c.l.b16 %v1076
    %v1754 = vunpack.c.h.b16 %v1076
    %v1755 = vunpack.c.l.b16 %v1077
    %v1756 = vunpack.c.h.b16 %v1077
    %v1757 = vunpack.c.l.b16 %v1078
    %v1758 = vunpack.c.h.b16 %v1078
    %v1759 = vunpack.c.l.b16 %v1079
    %v1760 = vunpack.c.h.b16 %v1079
    %v1761 = vunpack.c.l.b16 %v1080
    %v1762 = vunpack.c.h.b16 %v1080
    %v1763 = vunpack.c.l.b16 %v1081
    %v1764 = vunpack.c.h.b16 %v1081
    %v1765 = vunpack.c.l.b16 %v1082
    %v1766 = vunpack.c.h.b16 %v1082
    %v1767 = vunpack.c.l.b16 %v1083
    %v1768 = vunpack.c.h.b16 %v1083
    %v1769 = vunpack.c.l.b16 %v1084
    %v1770 = vunpack.c.h.b16 %v1084
    %v1771 = vunpack.c.l.b16 %v1085
    %v1772 = vunpack.c.h.b16 %v1085
    %v1773 = vunpack.c.l.b16 %v1086
    %v1774 = vunpack.c.h.b16 %v1086
    %v1775 = vunpack.c.l.b16 %v1087
    %v1776 = vunpack.c.h.b16 %v1087
    %v1777 = vunpack.c.l.b16 %v1088
    %v1778 = vunpack.c.h.b16 %v1088
    %v1779 = vunpack.c.l.b16 %v1089
    %v1780 = vunpack.c.h.b16 %v1089
    %v1781 = vunpack.c.l.b16 %v1090
    %v1782 = vunpack.c.h.b16 %v1090
    %v1783 = vunpack.c.l.b16 %v1091
    %v1784 = vunpack.c.h.b16 %v1091
    %v1785 = vunpack.c.l.b16 %v1092
    %v1786 = vunpack.c.h.b16 %v1092
    %v1787 = vunpack.c.l.b16 %v1093
    %v1788 = vunpack.c.h.b16 %v1093
    %v1789 = vunpack.c.l.b16 %v1094
    %v1790 = vunpack.c.h.b16 %v1094
    %v1791 = vunpack.c.l.b16 %v1095
    %v1792 = vunpack.c.h.b16 %v1095
    %v1793 = vunpack.c.l.b16 %v1096
    %v1794 = vunpack.c.h.b16 %v1096
    %v1795 = vunpack.c.l.b16 %v1097
    %v1796 = vunpack.c.h.b16 %v1097
    %v1797 = vunpack.c.l.b16 %v1098
    %v1798 = vunpack.c.h.b16 %v1098
    %v1799 = vunpack.c.l.b16 %v1099
    %v1800 = vunpack.c.h.b16 %v1099
    %v1801 = vunpack.c.l.b16 %v1100
    %v1802 = vunpack.c.h.b16 %v1100
    %v1803 = vunpack.c.l.b16 %v1101
    %v1804 = vunpack.c.h.b16 %v1101
    %v1805 = vunpack.c.l.b16 %v1102
    %v1806 = vunpack.c.h.b16 %v1102
    %v1807 = vunpack.c.l.b16 %v1103
    %v1808 = vunpack.c.h.b16 %v1103
    %v1809 = vunpack.c.l.b16 %v1104
    %v1810 = vunpack.c.h.b16 %v1104
    %v1811 = vunpack.c.l.b16 %v1105
    %v1812 = vunpack.c.h.b16 %v1105
    %v1813 = vunpack.c.l.b16 %v1106
    %v1814 = vunpack.c.h.b16 %v1106
    %v1815 = vunpack.c.l.b16 %v1107
    %v1816 = vunpack.c.h.b16 %v1107
    %v1817 = vunpack.c.l.b16 %v1108
    %v1818 = vunpack.c.h.b16 %v1108
    %v1819 = vunpack.c.l.b16 %v1109
    %v1820 = vunpack.c.h.b16 %v1109
    %v1821 = vunpack.c.l.b16 %v1110
    %v1822 = vunpack.c.h.b16 %v1110
    %v1823 = vunpack.c.l.b16 %v1111
    %v1824 = vunpack.c.h.b16 %v1111
    %v1825 = vunpack.c.l.b16 %v1112
    %v1826 = vunpack.c.h.b16 %v1112
    %v1827 = vunpack.c.l.b16 %v1113
    %v1828 = vunpack.c.h.b16 %v1113
    %v1829 = vunpack.c.l.b16 %v1114
    %v1830 = vunpack.c.h.b16 %v1114
    %v1831 = vunpack.c.l.b16 %v1115
    %v1832 = vunpack.c.h.b16 %v1115
    %v1833 = vunpack.c.l.b16 %v1116
    %v1834 = vunpack.c.h.b16 %v1116
    %v1835 = vunpack.c.l.b16 %v1117
    %v1836 = vunpack.c.h.b16 %v1117
    %v1837 = vunpack.c.l.b16 %v1118
    %v1838 = vunpack.c.h.b16 %v1118
    %v1839 = vunpack.c.l.b16 %v1119
    %v1840 = vunpack.c.h.b16 %v1119
    %v1841 = vunpack.c.l.b16 %v1120
    %v1842 = vunpack.c.h.b16 %v1120
    %v1843 = vunpack.c.l.b16 %v1121
    %v1844 = vunpack.c.h.b16 %v1121
    %v1845 = vunpack.c.l.b16 %v1122
    %v1846 = vunpack.c.h.b16 %v1122
    %v1847 = vunpack.c.l.b16 %v1123
    %v1848 = vunpack.c.h.b16 %v1123
    %v1849 = vunpack.c.l.b16 %v1124
    %v1850 = vunpack.c.h.b16 %v1124
    %v1851 = vunpack.c.l.b16 %v1125
    %v1852 = vunpack.c.h.b16 %v1125
    %v1853 = vunpack.c.l.b16 %v1126
    %v1854 = vunpack.c.h.b16 %v1126
    %v1855 = vunpack.c.l.b16 %v1127
    %v1856 = vunpack.c.h.b16 %v1127
    %v1857 = vunpack.c.l.b16 %v1128
    %v1858 = vunpack.c.h.b16 %v1128
    %v1859 = vunpack.c.l.b16 %v1129
    %v1860 = vunpack.c.h.b16 %v1129
    %v1861 = vunpack.c.l.b16 %v1130
    %v1862 = vunpack.c.h.b16 %v1130
    %v1863 = vunpack.c.l.b16 %v1131
    %v1864 = vunpack.c.h.b16 %v1131
    %v1865 = vunpack.c.l.b16 %v1132
    %v1866 = vunpack.c.h.b16 %v1132
    %v1867 = vunpack.c.l.b16 %v1133
    %v1868 = vunpack.c.h.b16 %v1133
    %v1869 = vunpack.c.l.b16 %v1134
    %v1870 = vunpack.c.h.b16 %v1134
    %v1871 = vunpack.c.l.b16 %v1135
    %v1872 = vunpack.c.h.b16 %v1135
    %v1873 = vunpack.c.l.b16 %v1136
    %v1874 = vunpack.c.h.b16 %v1136
    %v1875 = vunpack.c.l.b16 %v1137
    %v1876 = vunpack.c.h.b16 %v1137
    %v1877 = vunpack.c.l.b16 %v1138
    %v1878 = vunpack.c.h.b16 %v1138
    %v1879 = vunpack.c.l.b16 %v1139
    %v1880 = vunpack.c.h.b16 %v1139
    %v1881 = vunpack.c.l.b16 %v1140
    %v1882 = vunpack.c.h.b16 %v1140
    %v1883 = vunpack.c.l.b16 %v1141
    %v1884 = vunpack.c.h.b16 %v1141
    %v1885 = vunpack.c.l.b16 %v1142
    %v1886 = vunpack.c.h.b16 %v1142
    %v1887 = vunpack.c.l.b16 %v1143
    %v1888 = vunpack.c.h.b16 %v1143
    %v1889 = vunpack.c.l.b16 %v1144
    %v1890 = vunpack.c.h.b16 %v1144
    %v1891 = vunpack.c.l.b16 %v1145
    %v1892 = vunpack.c.h.b16 %v1145
    %v1893 = vunpack.c.l.b16 %v1146
    %v1894 = vunpack.c.h.b16 %v1146
    %v1895 = vunpack.c.l.b16 %v1147
    %v1896 = vunpack.c.h.b16 %v1147
    %v1897 = vunpack.c.l.b16 %v1148
    %v1898 = vunpack.c.h.b16 %v1148
    %v1899 = vunpack.c.l.b16 %v1149
    %v1900 = vunpack.c.h.b16 %v1149
    %v1901 = vunpack.c.l.b16 %v1150
    %v1902 = vunpack.c.h.b16 %v1150
    %v1903 = vunpack.c.l.b16 %v1151
    %v1904 = vunpack.c.h.b16 %v1151
    %v1905 = vunpack.c.l.b16 %v1152
    %v1906 = vunpack.c.h.b16 %v1152
    %v1907 = vunpack.c.l.b16 %v1153
    %v1908 = vunpack.c.h.b16 %v1153
    %v1909 = vunpack.c.l.b16 %v1154
    %v1910 = vunpack.c.h.b16 %v1154
    %v1911 = vunpack.c.l.b16 %v1155
    %v1912 = vunpack.c.h.b16 %v1155
    %v1913 = vunpack.c.l.b16 %v1156
    %v1914 = vunpack.c.h.b16 %v1156
    %v1915 = vunpack.c.l.b16 %v1157
    %v1916 = vunpack.c.h.b16 %v1157
    %v1917 = vunpack.c.l.b16 %v1158
    %v1918 = vunpack.c.h.b16 %v1158
    %v1919 = vunpack.c.l.b16 %v1159
    %v1920 = vunpack.c.h.b16 %v1159
    %v1921 = vunpack.c.l.b16 %v1160
    %v1922 = vunpack.c.h.b16 %v1160
    %v1923 = vunpack.c.l.b16 %v1161
    %v1924 = vunpack.c.h.b16 %v1161
    %v1925 = vunpack.c.l.b16 %v1162
    %v1926 = vunpack.c.h.b16 %v1162
    %v1927 = vunpack.c.l.b16 %v1163
    %v1928 = vunpack.c.h.b16 %v1163
    %v1929 = vunpack.c.l.b16 %v1164
    %v1930 = vunpack.c.h.b16 %v1164
    %v1931 = vunpack.c.l.b16 %v1165
    %v1932 = vunpack.c.h.b16 %v1165
    %v1933 = vunpack.c.l.b16 %v1166
    %v1934 = vunpack.c.h.b16 %v1166
    %v1935 = vunpack.c.l.b16 %v1167
    %v1936 = vunpack.c.h.b16 %v1167
    %v1937 = vunpack.c.l.b16 %v1168
    %v1938 = vunpack.c.h.b16 %v1168
    %v1939 = vunpack.c.l.b16 %v1169
    %v1940 = vunpack.c.h.b16 %v1169
    %v1941 = vunpack.c.l.b16 %v1170
    %v1942 = vunpack.c.h.b16 %v1170
    %v1943 = vunpack.c.l.b16 %v1171
    %v1944 = vunpack.c.h.b16 %v1171
    %v1945 = vunpack.c.l.b16 %v1172
    %v1946 = vunpack.c.h.b16 %v1172
    %v1947 = vunpack.c.l.b16 %v1173
    %v1948 = vunpack.c.h.b16 %v1173
    %v1949 = vunpack.c.l.b16 %v1174
    %v1950 = vunpack.c.h.b16 %v1174
    %v1951 = vunpack.c.l.b16 %v1175
    %v1952 = vunpack.c.h.b16 %v1175
    %v1953 = vunpack.c.l.b16 %v1176
    %v1954 = vunpack.c.h.b16 %v1176
    %v1955 = vunpack.c.l.b16 %v1177
    %v1956 = vunpack.c.h.b16 %v1177
    %v1957 = vunpack.c.l.b16 %v1178
    %v1958 = vunpack.c.h.b16 %v1178
    %v1959 = vunpack.c.l.b16 %v1179
    %v1960 = vunpack.c.h.b16 %v1179
    %v1961 = vunpack.c.l.b16 %v1180
    %v1962 = vunpack.c.h.b16 %v1180
    %v1963 = vunpack.c.l.b16 %v1181
    %v1964 = vunpack.c.h.b16 %v1181
    %v1965 = vunpack.c.l.b16 %v1182
    %v1966 = vunpack.c.h.b16 %v1182
    %v1967 = vunpack.c.l.b16 %v1183
    %v1968 = vunpack.c.h.b16 %v1183
    %v1969 = vunpack.c.l.b16 %v1184
    %v1970 = vunpack.c.h.b16 %v1184
    %v1971 = vpack.c.b16 %v1467, %v1459
    %v1972 = vpack.c.b16 %v1468, %v1460
    %v1973 = vpack.c.b16 %v1469, %v1461
    %v1974 = vpack.c.b16 %v1470, %v1462
    %v1975 = vpack.c.b16 %v1471, %v1463
    %v1976 = vpack.c.b16 %v1472, %v1464
    %v1977 = vpack.c.b16 %v1473, %v1465
    %v1978 = vpack.c.b16 %v1474, %v1466
    %v1979 = vpack.c.b16 %v1483, %v1475
    %v1980 = vpack.c.b16 %v1484, %v1476
    %v1981 = vpack.c.b16 %v1485, %v1477
    %v1982 = vpack.c.b16 %v1486, %v1478
    %v1983 = vpack.c.b16 %v1487, %v1479
    %v1984 = vpack.c.b16 %v1488, %v1480
    %v1985 = vpack.c.b16 %v1489, %v1481
    %v1986 = vpack.c.b16 %v1490, %v1482
    %v1987 = vpack.c.b16 %v1499, %v1491
    %v1988 = vpack.c.b16 %v1500, %v1492
    %v1989 = vpack.c.b16 %v1501, %v1493
    %v1990 = vpack.c.b16 %v1502, %v1494
    %v1991 = vpack.c.b16 %v1503, %v1495
    %v1992 = vpack.c.b16 %v1504, %v1496
    %v1993 = vpack.c.b16 %v1505, %v1497
    %v1994 = vpack.c.b16 %v1506, %v1498
    %v1995 = vpack.c.b16 %v1515, %v1507
    %v1996 = vpack.c.b16 %v1516, %v1508
    %v1997 = vpack.c.b16 %v1517, %v1509
    %v1998 = vpack.c.b16 %v1518, %v1510
    %v1999 = vpack.c.b16 %v1519, %v1511
    %v2000 = vpack.c.b16 %v1520, %v1512
    %v2001 = vpack.c.b16 %v1521, %v1513
    %v2002 = vpack.c.b16 %v1522, %v1514
    %v2003 = vpack.c.b16 %v1531, %v1523
    %v2004 = vpack.c.b16 %v1532, %v1524
    %v2005 = vpack.c.b16 %v1533, %v1525
    %v2006 = vpack.c.b16 %v1534, %v1526
    %v2007 = vpack.c.b16 %v1535, %v1527
    %v2008 = vpack.c.b16 %v1536, %v1528
    %v2009 = vpack.c.b16 %v1537, %v1529
    %v2010 = vpack.c.b16 %v1538, %v1530
    %v2011 = vpack.c.b16 %v1547, %v1539
    %v2012 = vpack.c.b16 %v1548, %v1540
    %v2013 = vpack.c.b16 %v1549, %v1541
    %v2014 = vpack.c.b16 %v1550, %v1542
    %v2015 = vpack.c.b16 %v1551, %v1543
    %v2016 = vpack.c.b16 %v1552, %v1544
    %v2017 = vpack.c.b16 %v1553, %v1545
    %v2018 = vpack.c.b16 %v1554, %v1546
    %v2019 = vpack.c.b16 %v1563, %v1555
    %v2020 = vpack.c.b16 %v1564, %v1556
    %v2021 = vpack.c.b16 %v1565, %v1557
    %v2022 = vpack.c.b16 %v1566, %v1558
    %v2023 = vpack.c.b16 %v1567, %v1559
    %v2024 = vpack.c.b16 %v1568, %v1560
    %v2025 = vpack.c.b16 %v1569, %v1561
    %v2026 = vpack.c.b16 %v1570, %v1562
    %v2027 = vpack.c.b16 %v1579, %v1571
    %v2028 = vpack.c.b16 %v1580, %v1572
    %v2029 = vpack.c.b16 %v1581, %v1573
    %v2030 = vpack.c.b16 %v1582, %v1574
    %v2031 = vpack.c.b16 %v1583, %v1575
    %v2032 = vpack.c.b16 %v1584, %v1576
    %v2033 = vpack.c.b16 %v1585, %v1577
    %v2034 = vpack.c.b16 %v1586, %v1578
    %v2035 = vpack.c.b16 %v1595, %v1587
    %v2036 = vpack.c.b16 %v1596, %v1588
    %v2037 = vpack.c.b16 %v1597, %v1589
    %v2038 = vpack.c.b16 %v1598, %v1590
    %v2039 = vpack.c.b16 %v1599, %v1591
    %v2040 = vpack.c.b16 %v1600, %v1592
    %v2041 = vpack.c.b16 %v1601, %v1593
    %v2042 = vpack.c.b16 %v1602, %v1594
    %v2043 = vpack.c.b16 %v1611, %v1603
    %v2044 = vpack.c.b16 %v1612, %v1604
    %v2045 = vpack.c.b16 %v1613, %v1605
    %v2046 = vpack.c.b16 %v1614, %v1606
    %v2047 = vpack.c.b16 %v1615, %v1607
    %v2048 = vpack.c.b16 %v1616, %v1608
    %v2049 = vpack.c.b16 %v1617, %v1609
    %v2050 = vpack.c.b16 %v1618, %v1610
    %v2051 = vpack.c.b16 %v1627, %v1619
    %v2052 = vpack.c.b16 %v1628, %v1620
    %v2053 = vpack.c.b16 %v1629, %v1621
    %v2054 = vpack.c.b16 %v1630, %v1622
    %v2055 = vpack.c.b16 %v1631, %v1623
    %v2056 = vpack.c.b16 %v1632, %v1624
    %v2057 = vpack.c.b16 %v1633, %v1625
    %v2058 = vpack.c.b16 %v1634, %v1626
    %v2059 = vpack.c.b16 %v1643, %v1635
    %v2060 = vpack.c.b16 %v1644, %v1636
    %v2061 = vpack.c.b16 %v1645, %v1637
    %v2062 = vpack.c.b16 %v1646, %v1638
    %v2063 = vpack.c.b16 %v1647, %v1639
    %v2064 = vpack.c.b16 %v1648, %v1640
    %v2065 = vpack.c.b16 %v1649, %v1641
    %v2066 = vpack.c.b16 %v1650, %v1642
    %v2067 = vpack.c.b16 %v1659, %v1651
    %v2068 = vpack.c.b16 %v1660, %v1652
    %v2069 = vpack.c.b16 %v1661, %v1653
    %v2070 = vpack.c.b16 %v1662, %v1654
    %v2071 = vpack.c.b16 %v1663, %v1655
    %v2072 = vpack.c.b16 %v1664, %v1656
    %v2073 = vpack.c.b16 %v1665, %v1657
    %v2074 = vpack.c.b16 %v1666, %v1658
    %v2075 = vpack.c.b16 %v1675, %v1667
    %v2076 = vpack.c.b16 %v1676, %v1668
    %v2077 = vpack.c.b16 %v1677, %v1669
    %v2078 = vpack.c.b16 %v1678, %v1670
    %v2079 = vpack.c.b16 %v1679, %v1671
    %v2080 = vpack.c.b16 %v1680, %v1672
    %v2081 = vpack.c.b16 %v1681, %v1673
    %v2082 = vpack.c.b16 %v1682, %v1674
    %v2083 = vpack.c.b16 %v1691, %v1683
    %v2084 = vpack.c.b16 %v1692, %v1684
    %v2085 = vpack.c.b16 %v1693, %v1685
    %v2086 = vpack.c.b16 %v1694, %v1686
    %v2087 = vpack.c.b16 %v1695, %v1687
    %v2088 = vpack.c.b16 %v1696, %v1688
    %v2089 = vpack.c.b16 %v1697, %v1689
    %v2090 = vpack.c.b16 %v1698, %v1690
    %v2091 = vpack.c.b16 %v1707, %v1699
    %v2092 = vpack.c.b16 %v1708, %v1700
    %v2093 = vpack.c.b16 %v1709, %v1701
    %v2094 = vpack.c.b16 %v1710, %v1702
    %v2095 = vpack.c.b16 %v1711, %v1703
    %v2096 = vpack.c.b16 %v1712, %v1704
    %v2097 = vpack.c.b16 %v1713, %v1705
    %v2098 = vpack.c.b16 %v1714, %v1706
    %v2099 = vpack.c.b16 %v1723, %v1715
    %v2100 = vpack.c.b16 %v1724, %v1716
    %v2101 = vpack.c.b16 %v1725, %v1717
    %v2102 = vpack.c.b16 %v1726, %v1718
    %v2103 = vpack.c.b16 %v1727, %v1719
    %v2104 = vpack.c.b16 %v1728, %v1720
    %v2105 = vpack.c.b16 %v1729, %v1721
    %v2106 = vpack.c.b16 %v1730, %v1722
    %v2107 = vpack.c.b16 %v1739, %v1731
    %v2108 = vpack.c.b16 %v1740, %v1732
    %v2109 = vpack.c.b16 %v1741, %v1733
    %v2110 = vpack.c.b16 %v1742, %v1734
    %v2111 = vpack.c.b16 %v1743, %v1735
    %v2112 = vpack.c.b16 %v1744, %v1736
    %v2113 = vpack.c.b16 %v1745, %v1737
    %v2114 = vpack.c.b16 %v1746, %v1738
    %v2115 = vpack.c.b16 %v1755, %v1747
    %v2116 = vpack.c.b16 %v1756, %v1748
    %v2117 = vpack.c.b16 %v1757, %v1749
    %v2118 = vpack.c.b16 %v1758, %v1750
    %v2119 = vpack.c.b16 %v1759, %v1751
    %v2120 = vpack.c.b16 %v1760, %v1752
    %v2121 = vpack.c.b16 %v1761, %v1753
    %v2122 = vpack.c.b16 %v1762, %v1754
    %v2123 = vpack.c.b16 %v1771, %v1763
    %v2124 = vpack.c.b16 %v1772, %v1764
    %v2125 = vpack.c.b16 %v1773, %v1765
    %v2126 = vpack.c.b16 %v1774, %v1766
    %v2127 = vpack.c.b16 %v1775, %v1767
    %v2128 = vpack.c.b16 %v1776, %v1768
    %v2129 = vpack.c.b16 %v1777, %v1769
    %v2130 = vpack.c.b16 %v1778, %v1770
    %v2131 = vpack.c.b16 %v1787, %v1779
    %v2132 = vpack.c.b16 %v1788, %v1780
    %v2133 = vpack.c.b16 %v1789, %v1781
    %v2134 = vpack.c.b16 %v1790, %v1782
    %v2135 = vpack.c.b16 %v1791, %v1783
    %v2136 = vpack.c.b16 %v1792, %v1784
    %v2137 = vpack.c.b16 %v1793, %v1785
    %v2138 = vpack.c.b16 %v1794, %v1786
    %v2139 = vpack.c.b16 %v1803, %v1795
    %v2140 = vpack.c.b16 %v1804, %v1796
    %v2141 = vpack.c.b16 %v1805, %v1797
    %v2142 = vpack.c.b16 %v1806, %v1798
    %v2143 = vpack.c.b16 %v1807, %v1799
    %v2144 = vpack.c.b16 %v1808, %v1800
    %v2145 = vpack.c.b16 %v1809, %v1801
    %v2146 = vpack.c.b16 %v1810, %v1802
    %v2147 = vpack.c.b16 %v1819, %v1811
    %v2148 = vpack.c.b16 %v1820, %v1812
    %v2149 = vpack.c.b16 %v1821, %v1813
    %v2150 = vpack.c.b16 %v1822, %v1814
    %v2151 = vpack.c.b16 %v1823, %v1815
    %v2152 = vpack.c.b16 %v1824, %v1816
    %v2153 = vpack.c.b16 %v1825, %v1817
    %v2154 = vpack.c.b16 %v1826, %v1818
    %v2155 = vpack.c.b16 %v1835, %v1827
    %v2156 = vpack.c.b16 %v1836, %v1828
    %v2157 = vpack.c.b16 %v1837, %v1829
    %v2158 = vpack.c.b16 %v1838, %v1830
    %v2159 = vpack.c.b16 %v1839, %v1831
    %v2160 = vpack.c.b16 %v1840, %v1832
    %v2161 = vpack.c.b16 %v1841, %v1833
    %v2162 = vpack.c.b16 %v1842, %v1834
    %v2163 = vpack.c.b16 %v1851, %v1843
    %v2164 = vpack.c.b16 %v1852, %v1844
    %v2165 = vpack.c.b16 %v1853, %v1845
    %v2166 = vpack.c.b16 %v1854, %v1846
    %v2167 = vpack.c.b16 %v1855, %v1847
    %v2168 = vpack.c.b16 %v1856, %v1848
    %v2169 = vpack.c.b16 %v1857, %v1849
    %v2170 = vpack.c.b16 %v1858, %v1850
    %v2171 = vpack.c.b16 %v1867, %v1859
    %v2172 = vpack.c.b16 %v1868, %v1860
    %v2173 = vpack.c.b16 %v1869, %v1861
    %v2174 = vpack.c.b16 %v1870, %v1862
    %v2175 = vpack.c.b16 %v1871, %v1863
    %v2176 = vpack.c.b16 %v1872, %v1864
    %v2177 = vpack.c.b16 %v1873, %v1865
    %v2178 = vpack.c.b16 %v1874, %v1866
    %v2179 = vpack.c.b16 %v1883, %v1875
    %v2180 = vpack.c.b16 %v1884, %v1876
    %v2181 = vpack.c.b16 %v1885, %v1877
    %v2182 = vpack.c.b16 %v1886, %v1878
    %v2183 = vpack.c.b16 %v1887, %v1879
    %v2184 = vpack.c.b16 %v1888, %v1880
    %v2185 = vpack.c.b16 %v1889, %v1881
    %v2186 = vpack.c.b16 %v1890, %v1882
    %v2187 = vpack.c.b16 %v1899, %v1891
    %v2188 = vpack.c.b16 %v1900, %v1892
    %v2189 = vpack.c.b16 %v1901, %v1893
    %v2190 = vpack.c.b16 %v1902, %v1894
    %v2191 = vpack.c.b16 %v1903, %v1895
    %v2192 = vpack.c.b16 %v1904, %v1896
    %v2193 = vpack.c.b16 %v1905, %v1897
    %v2194 = vpack.c.b16 %v1906, %v1898
    %v2195 = vpack.c.b16 %v1915, %v1907
    %v2196 = vpack.c.b16 %v1916, %v1908
    %v2197 = vpack.c.b16 %v1917, %v1909
    %v2198 = vpack.c.b16 %v1918, %v1910
    %v2199 = vpack.c.b16 %v1919, %v1911
    %v2200 = vpack.c.b16 %v1920, %v1912
    %v2201 = vpack.c.b16 %v1921, %v1913
    %v2202 = vpack.c.b16 %v1922, %v1914
    %v2203 = vpack.c.b16 %v1931, %v1923
    %v2204 = vpack.c.b16 %v1932, %v1924
    %v2205 = vpack.c.b16 %v1933, %v1925
    %v2206 = vpack.c.b16 %v1934, %v1926
    %v2207 = vpack.c.b16 %v1935, %v1927
    %v2208 = vpack.c.b16 %v1936, %v1928
    %v2209 = vpack.c.b16 %v1937, %v1929
    %v2210 = vpack.c.b16 %v1938, %v1930
    %v2211 = vpack.c.b16 %v1947, %v1939
    %v2212 = vpack.c.b16 %v1948, %v1940
    %v2213 = vpack.c.b16 %v1949, %v1941
    %v2214 = vpack.c.b16 %v1950, %v1942
    %v2215 = vpack.c.b16 %v1951, %v1943
    %v2216 = vpack.c.b16 %v1952, %v1944
    %v2217 = vpack.c.b16 %v1953, %v1945
    %v2218 = vpack.c.b16 %v1954, %v1946
    %v2219 = vpack.c.b16 %v1963, %v1955
    %v2220 = vpack.c.b16 %v1964, %v1956
    %v2221 = vpack.c.b16 %v1965, %v1957
    %v2222 = vpack.c.b16 %v1966, %v1958
    %v2223 = vpack.c.b16 %v1967, %v1959
    %v2224 = vpack.c.b16 %v1968, %v1960
    %v2225 = vpack.c.b16 %v1969, %v1961
    %v2226 = vpack.c.b16 %v1970, %v1962
    %2483 = vmatpush.bf16.msra.mxu0 %v2027
    %2484 = vmatpush.bf16.msra.mxu0 %v2019
    %2485 = vmatpush.bf16.msra.mxu0 %v2011
    %2486 = vmatpush.bf16.msra.mxu0 %v2003
    %2487 = vmatpush.bf16.msra.mxu0 %v1995
    %2488 = vmatpush.bf16.msra.mxu0 %v1987
    %2489 = vmatpush.bf16.msra.mxu0 %v1979
    %2490 = vmatpush.bf16.msra.mxu0 %v1971
    %2491 = vmatmul.bf16.gmra.mxu0 %v925
    %v2492 = vpop.f32.mrf.mxu0
    %v2493 = vadd.f32 %v1187, %v2492
    %v2494 = vpop.f32.mrf.mxu0
    %2495 = vdwg.mxu0
    %2496 = vmatpush.bf16.msra.mxu0 %v2091
    %2497 = vmatpush.bf16.msra.mxu0 %v2083
    %2498 = vmatpush.bf16.msra.mxu0 %v2075
    %2499 = vmatpush.bf16.msra.mxu0 %v2067
    %2500 = vmatpush.bf16.msra.mxu0 %v2059
    %2501 = vmatpush.bf16.msra.mxu0 %v2051
    %2502 = vmatpush.bf16.msra.mxu0 %v2043
    %2503 = vmatpush.bf16.msra.mxu0 %v2035
    %2504 = vmatmul.bf16.gmra.mxu0 %v926
    %v2505 = vpop.f32.mrf.mxu0
    %v2506 = vadd.f32 %v2493, %v2505
    %v2507 = vpop.f32.mrf.mxu0
    %2508 = vdwg.mxu0
    %2509 = vmatpush.bf16.msra.mxu0 %v2155
    %2510 = vmatpush.bf16.msra.mxu0 %v2147
    %2511 = vmatpush.bf16.msra.mxu0 %v2139
    %2512 = vmatpush.bf16.msra.mxu0 %v2131
    %2513 = vmatpush.bf16.msra.mxu0 %v2123
    %2514 = vmatpush.bf16.msra.mxu0 %v2115
    %2515 = vmatpush.bf16.msra.mxu0 %v2107
    %2516 = vmatpush.bf16.msra.mxu0 %v2099
    %2517 = vmatmul.bf16.gmra.mxu0 %v927
    %v2518 = vpop.f32.mrf.mxu0
    %v2519 = vadd.f32 %v2506, %v2518
    %v2520 = vpop.f32.mrf.mxu0
    %2521 = vdwg.mxu0
    %2522 = vmatpush.bf16.msra.mxu0 %v2219
    %2523 = vmatpush.bf16.msra.mxu0 %v2211
    %2524 = vmatpush.bf16.msra.mxu0 %v2203
    %2525 = vmatpush.bf16.msra.mxu0 %v2195
    %2526 = vmatpush.bf16.msra.mxu0 %v2187
    %2527 = vmatpush.bf16.msra.mxu0 %v2179
    %2528 = vmatpush.bf16.msra.mxu0 %v2171
    %2529 = vmatpush.bf16.msra.mxu0 %v2163
    %2530 = vmatmul.bf16.gmra.mxu0 %v928
    %v2531 = vpop.f32.mrf.mxu0
    %v2532 = vadd.f32 %v2519, %v2531
    %v2533 = vpop.f32.mrf.mxu0
    %2534 = vdwg.mxu0
    %2535 = vmatpush.bf16.msra.mxu0 %v2028
    %2536 = vmatpush.bf16.msra.mxu0 %v2020
    %2537 = vmatpush.bf16.msra.mxu0 %v2012
    %2538 = vmatpush.bf16.msra.mxu0 %v2004
    %2539 = vmatpush.bf16.msra.mxu0 %v1996
    %2540 = vmatpush.bf16.msra.mxu0 %v1988
    %2541 = vmatpush.bf16.msra.mxu0 %v1980
    %2542 = vmatpush.bf16.msra.mxu0 %v1972
    %2543 = vmatmul.bf16.gmra.mxu0 %v925
    %v2544 = vpop.f32.mrf.mxu0
    %v2545 = vadd.f32 %v1188, %v2544
    %v2546 = vpop.f32.mrf.mxu0
    %2547 = vdwg.mxu0
    %2548 = vmatpush.bf16.msra.mxu0 %v2092
    %2549 = vmatpush.bf16.msra.mxu0 %v2084
    %2550 = vmatpush.bf16.msra.mxu0 %v2076
    %2551 = vmatpush.bf16.msra.mxu0 %v2068
    %2552 = vmatpush.bf16.msra.mxu0 %v2060
    %2553 = vmatpush.bf16.msra.mxu0 %v2052
    %2554 = vmatpush.bf16.msra.mxu0 %v2044
    %2555 = vmatpush.bf16.msra.mxu0 %v2036
    %2556 = vmatmul.bf16.gmra.mxu0 %v926
    %v2557 = vpop.f32.mrf.mxu0
    %v2558 = vadd.f32 %v2545, %v2557
    %v2559 = vpop.f32.mrf.mxu0
    %2560 = vdwg.mxu0
    %2561 = vmatpush.bf16.msra.mxu0 %v2156
    %2562 = vmatpush.bf16.msra.mxu0 %v2148
    %2563 = vmatpush.bf16.msra.mxu0 %v2140
    %2564 = vmatpush.bf16.msra.mxu0 %v2132
    %2565 = vmatpush.bf16.msra.mxu0 %v2124
    %2566 = vmatpush.bf16.msra.mxu0 %v2116
    %2567 = vmatpush.bf16.msra.mxu0 %v2108
    %2568 = vmatpush.bf16.msra.mxu0 %v2100
    %2569 = vmatmul.bf16.gmra.mxu0 %v927
    %v2570 = vpop.f32.mrf.mxu0
    %v2571 = vadd.f32 %v2558, %v2570
    %v2572 = vpop.f32.mrf.mxu0
    %2573 = vdwg.mxu0
    %2574 = vmatpush.bf16.msra.mxu0 %v2220
    %2575 = vmatpush.bf16.msra.mxu0 %v2212
    %2576 = vmatpush.bf16.msra.mxu0 %v2204
    %2577 = vmatpush.bf16.msra.mxu0 %v2196
    %2578 = vmatpush.bf16.msra.mxu0 %v2188
    %2579 = vmatpush.bf16.msra.mxu0 %v2180
    %2580 = vmatpush.bf16.msra.mxu0 %v2172
    %2581 = vmatpush.bf16.msra.mxu0 %v2164
    %2582 = vmatmul.bf16.gmra.mxu0 %v928
    %v2583 = vpop.f32.mrf.mxu0
    %v2584 = vadd.f32 %v2571, %v2583
    %v2585 = vpop.f32.mrf.mxu0
    %2586 = vdwg.mxu0
    %2587 = vmatpush.bf16.msra.mxu0 %v2029
    %2588 = vmatpush.bf16.msra.mxu0 %v2021
    %2589 = vmatpush.bf16.msra.mxu0 %v2013
    %2590 = vmatpush.bf16.msra.mxu0 %v2005
    %2591 = vmatpush.bf16.msra.mxu0 %v1997
    %2592 = vmatpush.bf16.msra.mxu0 %v1989
    %2593 = vmatpush.bf16.msra.mxu0 %v1981
    %2594 = vmatpush.bf16.msra.mxu0 %v1973
    %2595 = vmatmul.bf16.gmra.mxu0 %v925
    %v2596 = vpop.f32.mrf.mxu0
    %v2597 = vadd.f32 %v1189, %v2596
    %v2598 = vpop.f32.mrf.mxu0
    %2599 = vdwg.mxu0
    %2600 = vmatpush.bf16.msra.mxu0 %v2093
    %2601 = vmatpush.bf16.msra.mxu0 %v2085
    %2602 = vmatpush.bf16.msra.mxu0 %v2077
    %2603 = vmatpush.bf16.msra.mxu0 %v2069
    %2604 = vmatpush.bf16.msra.mxu0 %v2061
    %2605 = vmatpush.bf16.msra.mxu0 %v2053
    %2606 = vmatpush.bf16.msra.mxu0 %v2045
    %2607 = vmatpush.bf16.msra.mxu0 %v2037
    %2608 = vmatmul.bf16.gmra.mxu0 %v926
    %v2609 = vpop.f32.mrf.mxu0
    %v2610 = vadd.f32 %v2597, %v2609
    %v2611 = vpop.f32.mrf.mxu0
    %2612 = vdwg.mxu0
    %2613 = vmatpush.bf16.msra.mxu0 %v2157
    %2614 = vmatpush.bf16.msra.mxu0 %v2149
    %2615 = vmatpush.bf16.msra.mxu0 %v2141
    %2616 = vmatpush.bf16.msra.mxu0 %v2133
    %2617 = vmatpush.bf16.msra.mxu0 %v2125
    %2618 = vmatpush.bf16.msra.mxu0 %v2117
    %2619 = vmatpush.bf16.msra.mxu0 %v2109
    %2620 = vmatpush.bf16.msra.mxu0 %v2101
    %2621 = vmatmul.bf16.gmra.mxu0 %v927
    %v2622 = vpop.f32.mrf.mxu0
    %v2623 = vadd.f32 %v2610, %v2622
    %v2624 = vpop.f32.mrf.mxu0
    %2625 = vdwg.mxu0
    %2626 = vmatpush.bf16.msra.mxu0 %v2221
    %2627 = vmatpush.bf16.msra.mxu0 %v2213
    %2628 = vmatpush.bf16.msra.mxu0 %v2205
    %2629 = vmatpush.bf16.msra.mxu0 %v2197
    %2630 = vmatpush.bf16.msra.mxu0 %v2189
    %2631 = vmatpush.bf16.msra.mxu0 %v2181
    %2632 = vmatpush.bf16.msra.mxu0 %v2173
    %2633 = vmatpush.bf16.msra.mxu0 %v2165
    %2634 = vmatmul.bf16.gmra.mxu0 %v928
    %v2635 = vpop.f32.mrf.mxu0
    %v2636 = vadd.f32 %v2623, %v2635
    %v2637 = vpop.f32.mrf.mxu0
    %2638 = vdwg.mxu0
    %2639 = vmatpush.bf16.msra.mxu0 %v2030
    %2640 = vmatpush.bf16.msra.mxu0 %v2022
    %2641 = vmatpush.bf16.msra.mxu0 %v2014
    %2642 = vmatpush.bf16.msra.mxu0 %v2006
    %2643 = vmatpush.bf16.msra.mxu0 %v1998
    %2644 = vmatpush.bf16.msra.mxu0 %v1990
    %2645 = vmatpush.bf16.msra.mxu0 %v1982
    %2646 = vmatpush.bf16.msra.mxu0 %v1974
    %2647 = vmatmul.bf16.gmra.mxu0 %v925
    %v2648 = vpop.f32.mrf.mxu0
    %v2649 = vadd.f32 %v1190, %v2648
    %v2650 = vpop.f32.mrf.mxu0
    %2651 = vdwg.mxu0
    %2652 = vmatpush.bf16.msra.mxu0 %v2094
    %2653 = vmatpush.bf16.msra.mxu0 %v2086
    %2654 = vmatpush.bf16.msra.mxu0 %v2078
    %2655 = vmatpush.bf16.msra.mxu0 %v2070
    %2656 = vmatpush.bf16.msra.mxu0 %v2062
    %2657 = vmatpush.bf16.msra.mxu0 %v2054
    %2658 = vmatpush.bf16.msra.mxu0 %v2046
    %2659 = vmatpush.bf16.msra.mxu0 %v2038
    %2660 = vmatmul.bf16.gmra.mxu0 %v926
    %v2661 = vpop.f32.mrf.mxu0
    %v2662 = vadd.f32 %v2649, %v2661
    %v2663 = vpop.f32.mrf.mxu0
    %2664 = vdwg.mxu0
    %2665 = vmatpush.bf16.msra.mxu0 %v2158
    %2666 = vmatpush.bf16.msra.mxu0 %v2150
    %2667 = vmatpush.bf16.msra.mxu0 %v2142
    %2668 = vmatpush.bf16.msra.mxu0 %v2134
    %2669 = vmatpush.bf16.msra.mxu0 %v2126
    %2670 = vmatpush.bf16.msra.mxu0 %v2118
    %2671 = vmatpush.bf16.msra.mxu0 %v2110
    %2672 = vmatpush.bf16.msra.mxu0 %v2102
    %2673 = vmatmul.bf16.gmra.mxu0 %v927
    %v2674 = vpop.f32.mrf.mxu0
    %v2675 = vadd.f32 %v2662, %v2674
    %v2676 = vpop.f32.mrf.mxu0
    %2677 = vdwg.mxu0
    %2678 = vmatpush.bf16.msra.mxu0 %v2222
    %2679 = vmatpush.bf16.msra.mxu0 %v2214
    %2680 = vmatpush.bf16.msra.mxu0 %v2206
    %2681 = vmatpush.bf16.msra.mxu0 %v2198
    %2682 = vmatpush.bf16.msra.mxu0 %v2190
    %2683 = vmatpush.bf16.msra.mxu0 %v2182
    %2684 = vmatpush.bf16.msra.mxu0 %v2174
    %2685 = vmatpush.bf16.msra.mxu0 %v2166
    %2686 = vmatmul.bf16.gmra.mxu0 %v928
    %v2687 = vpop.f32.mrf.mxu0
    %v2688 = vadd.f32 %v2675, %v2687
    %v2689 = vpop.f32.mrf.mxu0
    %2690 = vdwg.mxu0
    %2691 = vmatpush.bf16.msra.mxu0 %v2031
    %2692 = vmatpush.bf16.msra.mxu0 %v2023
    %2693 = vmatpush.bf16.msra.mxu0 %v2015
    %2694 = vmatpush.bf16.msra.mxu0 %v2007
    %2695 = vmatpush.bf16.msra.mxu0 %v1999
    %2696 = vmatpush.bf16.msra.mxu0 %v1991
    %2697 = vmatpush.bf16.msra.mxu0 %v1983
    %2698 = vmatpush.bf16.msra.mxu0 %v1975
    %2699 = vmatmul.bf16.gmra.mxu0 %v925
    %v2700 = vpop.f32.mrf.mxu0
    %v2701 = vadd.f32 %v1191, %v2700
    %v2702 = vpop.f32.mrf.mxu0
    %2703 = vdwg.mxu0
    %2704 = vmatpush.bf16.msra.mxu0 %v2095
    %2705 = vmatpush.bf16.msra.mxu0 %v2087
    %2706 = vmatpush.bf16.msra.mxu0 %v2079
    %2707 = vmatpush.bf16.msra.mxu0 %v2071
    %2708 = vmatpush.bf16.msra.mxu0 %v2063
    %2709 = vmatpush.bf16.msra.mxu0 %v2055
    %2710 = vmatpush.bf16.msra.mxu0 %v2047
    %2711 = vmatpush.bf16.msra.mxu0 %v2039
    %2712 = vmatmul.bf16.gmra.mxu0 %v926
    %v2713 = vpop.f32.mrf.mxu0
    %v2714 = vadd.f32 %v2701, %v2713
    %v2715 = vpop.f32.mrf.mxu0
    %2716 = vdwg.mxu0
    %2717 = vmatpush.bf16.msra.mxu0 %v2159
    %2718 = vmatpush.bf16.msra.mxu0 %v2151
    %2719 = vmatpush.bf16.msra.mxu0 %v2143
    %2720 = vmatpush.bf16.msra.mxu0 %v2135
    %2721 = vmatpush.bf16.msra.mxu0 %v2127
    %2722 = vmatpush.bf16.msra.mxu0 %v2119
    %2723 = vmatpush.bf16.msra.mxu0 %v2111
    %2724 = vmatpush.bf16.msra.mxu0 %v2103
    %2725 = vmatmul.bf16.gmra.mxu0 %v927
    %v2726 = vpop.f32.mrf.mxu0
    %v2727 = vadd.f32 %v2714, %v2726
    %v2728 = vpop.f32.mrf.mxu0
    %2729 = vdwg.mxu0
    %2730 = vmatpush.bf16.msra.mxu0 %v2223
    %2731 = vmatpush.bf16.msra.mxu0 %v2215
    %2732 = vmatpush.bf16.msra.mxu0 %v2207
    %2733 = vmatpush.bf16.msra.mxu0 %v2199
    %2734 = vmatpush.bf16.msra.mxu0 %v2191
    %2735 = vmatpush.bf16.msra.mxu0 %v2183
    %2736 = vmatpush.bf16.msra.mxu0 %v2175
    %2737 = vmatpush.bf16.msra.mxu0 %v2167
    %2738 = vmatmul.bf16.gmra.mxu0 %v928
    %v2739 = vpop.f32.mrf.mxu0
    %v2740 = vadd.f32 %v2727, %v2739
    %v2741 = vpop.f32.mrf.mxu0
    %2742 = vdwg.mxu0
    %2743 = vmatpush.bf16.msra.mxu0 %v2032
    %2744 = vmatpush.bf16.msra.mxu0 %v2024
    %2745 = vmatpush.bf16.msra.mxu0 %v2016
    %2746 = vmatpush.bf16.msra.mxu0 %v2008
    %2747 = vmatpush.bf16.msra.mxu0 %v2000
    %2748 = vmatpush.bf16.msra.mxu0 %v1992
    %2749 = vmatpush.bf16.msra.mxu0 %v1984
    %2750 = vmatpush.bf16.msra.mxu0 %v1976
    %2751 = vmatmul.bf16.gmra.mxu0 %v925
    %v2752 = vpop.f32.mrf.mxu0
    %v2753 = vadd.f32 %v1192, %v2752
    %v2754 = vpop.f32.mrf.mxu0
    %2755 = vdwg.mxu0
    %2756 = vmatpush.bf16.msra.mxu0 %v2096
    %2757 = vmatpush.bf16.msra.mxu0 %v2088
    %2758 = vmatpush.bf16.msra.mxu0 %v2080
    %2759 = vmatpush.bf16.msra.mxu0 %v2072
    %2760 = vmatpush.bf16.msra.mxu0 %v2064
    %2761 = vmatpush.bf16.msra.mxu0 %v2056
    %2762 = vmatpush.bf16.msra.mxu0 %v2048
    %2763 = vmatpush.bf16.msra.mxu0 %v2040
    %2764 = vmatmul.bf16.gmra.mxu0 %v926
    %v2765 = vpop.f32.mrf.mxu0
    %v2766 = vadd.f32 %v2753, %v2765
    %v2767 = vpop.f32.mrf.mxu0
    %2768 = vdwg.mxu0
    %2769 = vmatpush.bf16.msra.mxu0 %v2160
    %2770 = vmatpush.bf16.msra.mxu0 %v2152
    %2771 = vmatpush.bf16.msra.mxu0 %v2144
    %2772 = vmatpush.bf16.msra.mxu0 %v2136
    %2773 = vmatpush.bf16.msra.mxu0 %v2128
    %2774 = vmatpush.bf16.msra.mxu0 %v2120
    %2775 = vmatpush.bf16.msra.mxu0 %v2112
    %2776 = vmatpush.bf16.msra.mxu0 %v2104
    %2777 = vmatmul.bf16.gmra.mxu0 %v927
    %v2778 = vpop.f32.mrf.mxu0
    %v2779 = vadd.f32 %v2766, %v2778
    %v2780 = vpop.f32.mrf.mxu0
    %2781 = vdwg.mxu0
    %2782 = vmatpush.bf16.msra.mxu0 %v2224
    %2783 = vmatpush.bf16.msra.mxu0 %v2216
    %2784 = vmatpush.bf16.msra.mxu0 %v2208
    %2785 = vmatpush.bf16.msra.mxu0 %v2200
    %2786 = vmatpush.bf16.msra.mxu0 %v2192
    %2787 = vmatpush.bf16.msra.mxu0 %v2184
    %2788 = vmatpush.bf16.msra.mxu0 %v2176
    %2789 = vmatpush.bf16.msra.mxu0 %v2168
    %2790 = vmatmul.bf16.gmra.mxu0 %v928
    %v2791 = vpop.f32.mrf.mxu0
    %v2792 = vadd.f32 %v2779, %v2791
    %v2793 = vpop.f32.mrf.mxu0
    %2794 = vdwg.mxu0
    %2795 = vmatpush.bf16.msra.mxu0 %v2033
    %2796 = vmatpush.bf16.msra.mxu0 %v2025
    %2797 = vmatpush.bf16.msra.mxu0 %v2017
    %2798 = vmatpush.bf16.msra.mxu0 %v2009
    %2799 = vmatpush.bf16.msra.mxu0 %v2001
    %2800 = vmatpush.bf16.msra.mxu0 %v1993
    %2801 = vmatpush.bf16.msra.mxu0 %v1985
    %2802 = vmatpush.bf16.msra.mxu0 %v1977
    %2803 = vmatmul.bf16.gmra.mxu0 %v925
    %v2804 = vpop.f32.mrf.mxu0
    %v2805 = vadd.f32 %v1193, %v2804
    %v2806 = vpop.f32.mrf.mxu0
    %2807 = vdwg.mxu0
    %2808 = vmatpush.bf16.msra.mxu0 %v2097
    %2809 = vmatpush.bf16.msra.mxu0 %v2089
    %2810 = vmatpush.bf16.msra.mxu0 %v2081
    %2811 = vmatpush.bf16.msra.mxu0 %v2073
    %2812 = vmatpush.bf16.msra.mxu0 %v2065
    %2813 = vmatpush.bf16.msra.mxu0 %v2057
    %2814 = vmatpush.bf16.msra.mxu0 %v2049
    %2815 = vmatpush.bf16.msra.mxu0 %v2041
    %2816 = vmatmul.bf16.gmra.mxu0 %v926
    %v2817 = vpop.f32.mrf.mxu0
    %v2818 = vadd.f32 %v2805, %v2817
    %v2819 = vpop.f32.mrf.mxu0
    %2820 = vdwg.mxu0
    %2821 = vmatpush.bf16.msra.mxu0 %v2161
    %2822 = vmatpush.bf16.msra.mxu0 %v2153
    %2823 = vmatpush.bf16.msra.mxu0 %v2145
    %2824 = vmatpush.bf16.msra.mxu0 %v2137
    %2825 = vmatpush.bf16.msra.mxu0 %v2129
    %2826 = vmatpush.bf16.msra.mxu0 %v2121
    %2827 = vmatpush.bf16.msra.mxu0 %v2113
    %2828 = vmatpush.bf16.msra.mxu0 %v2105
    %2829 = vmatmul.bf16.gmra.mxu0 %v927
    %v2830 = vpop.f32.mrf.mxu0
    %v2831 = vadd.f32 %v2818, %v2830
    %v2832 = vpop.f32.mrf.mxu0
    %2833 = vdwg.mxu0
    %2834 = vmatpush.bf16.msra.mxu0 %v2225
    %2835 = vmatpush.bf16.msra.mxu0 %v2217
    %2836 = vmatpush.bf16.msra.mxu0 %v2209
    %2837 = vmatpush.bf16.msra.mxu0 %v2201
    %2838 = vmatpush.bf16.msra.mxu0 %v2193
    %2839 = vmatpush.bf16.msra.mxu0 %v2185
    %2840 = vmatpush.bf16.msra.mxu0 %v2177
    %2841 = vmatpush.bf16.msra.mxu0 %v2169
    %2842 = vmatmul.bf16.gmra.mxu0 %v928
    %v2843 = vpop.f32.mrf.mxu0
    %v2844 = vadd.f32 %v2831, %v2843
    %v2845 = vpop.f32.mrf.mxu0
    %2846 = vdwg.mxu0
    %2847 = vmatpush.bf16.msra.mxu0 %v2034
    %2848 = vmatpush.bf16.msra.mxu0 %v2026
    %2849 = vmatpush.bf16.msra.mxu0 %v2018
    %2850 = vmatpush.bf16.msra.mxu0 %v2010
    %2851 = vmatpush.bf16.msra.mxu0 %v2002
    %2852 = vmatpush.bf16.msra.mxu0 %v1994
    %2853 = vmatpush.bf16.msra.mxu0 %v1986
    %2854 = vmatpush.bf16.msra.mxu0 %v1978
    %2855 = vmatmul.bf16.gmra.mxu0 %v925
    %v2856 = vpop.f32.mrf.mxu0
    %v2857 = vadd.f32 %v1194, %v2856
    %v2858 = vpop.f32.mrf.mxu0
    %2859 = vdwg.mxu0
    %2860 = vmatpush.bf16.msra.mxu0 %v2098
    %2861 = vmatpush.bf16.msra.mxu0 %v2090
    %2862 = vmatpush.bf16.msra.mxu0 %v2082
    %2863 = vmatpush.bf16.msra.mxu0 %v2074
    %2864 = vmatpush.bf16.msra.mxu0 %v2066
    %2865 = vmatpush.bf16.msra.mxu0 %v2058
    %2866 = vmatpush.bf16.msra.mxu0 %v2050
    %2867 = vmatpush.bf16.msra.mxu0 %v2042
    %2868 = vmatmul.bf16.gmra.mxu0 %v926
    %v2869 = vpop.f32.mrf.mxu0
    %v2870 = vadd.f32 %v2857, %v2869
    %v2871 = vpop.f32.mrf.mxu0
    %2872 = vdwg.mxu0
    %2873 = vmatpush.bf16.msra.mxu0 %v2162
    %2874 = vmatpush.bf16.msra.mxu0 %v2154
    %2875 = vmatpush.bf16.msra.mxu0 %v2146
    %2876 = vmatpush.bf16.msra.mxu0 %v2138
    %2877 = vmatpush.bf16.msra.mxu0 %v2130
    %2878 = vmatpush.bf16.msra.mxu0 %v2122
    %2879 = vmatpush.bf16.msra.mxu0 %v2114
    %2880 = vmatpush.bf16.msra.mxu0 %v2106
    %2881 = vmatmul.bf16.gmra.mxu0 %v927
    %v2882 = vpop.f32.mrf.mxu0
    %v2883 = vadd.f32 %v2870, %v2882
    %v2884 = vpop.f32.mrf.mxu0
    %2885 = vdwg.mxu0
    %2886 = vmatpush.bf16.msra.mxu0 %v2226
    %2887 = vmatpush.bf16.msra.mxu0 %v2218
    %2888 = vmatpush.bf16.msra.mxu0 %v2210
    %2889 = vmatpush.bf16.msra.mxu0 %v2202
    %2890 = vmatpush.bf16.msra.mxu0 %v2194
    %2891 = vmatpush.bf16.msra.mxu0 %v2186
    %2892 = vmatpush.bf16.msra.mxu0 %v2178
    %2893 = vmatpush.bf16.msra.mxu0 %v2170
    %2894 = vmatmul.bf16.gmra.mxu0 %v928
    %v2895 = vpop.f32.mrf.mxu0
    %v2896 = vadd.f32 %v2883, %v2895
    %v2897 = vpop.f32.mrf.mxu0
    %2898 = vdwg.mxu0
    %v2899 = vpack.c.bf16 %v2584, %v2532
    %v2900 = vpack.c.bf16 %v2688, %v2636
    %v2901 = vpack.c.bf16 %v2792, %v2740
    %v2902 = vpack.c.bf16 %v2896, %v2844
    %v2903 = vunpack.c.l.bf16 %v2899
    %v2904 = vunpack.c.h.bf16 %v2899
    %v2905 = vunpack.c.l.bf16 %v2900
    %v2906 = vunpack.c.h.bf16 %v2900
    %v2907 = vunpack.c.l.bf16 %v2901
    %v2908 = vunpack.c.h.bf16 %v2901
    %v2909 = vunpack.c.l.bf16 %v2902
    %v2910 = vunpack.c.h.bf16 %v2902
    %v2911 = vmul.f32 %v2903, 0.0009994507
    %v2912 = vmul.f32 %v2904, 0.0009994507
    %v2913 = vmul.f32 %v2905, 0.0009994507
    %v2914 = vmul.f32 %v2906, 0.0009994507
    %v2915 = vmul.f32 %v2907, 0.0009994507
    %v2916 = vmul.f32 %v2908, 0.0009994507
    %v2917 = vmul.f32 %v2909, 0.0009994507
    %v2918 = vmul.f32 %v2910, 0.0009994507
    %v2919 = vpack.c.bf16 %v2912, %v2911
    %v2920 = vpack.c.bf16 %v2914, %v2913
    %v2921 = vpack.c.bf16 %v2916, %v2915
    %v2922 = vpack.c.bf16 %v2918, %v2917
    %v2923 = vunpack.c.l.bf16 %v2919
    %v2924 = vunpack.c.h.bf16 %v2919
    %v2925 = vunpack.c.l.bf16 %v2920
    %v2926 = vunpack.c.h.bf16 %v2920
    %v2927 = vunpack.c.l.bf16 %v2921
    %v2928 = vunpack.c.h.bf16 %v2921
    %v2929 = vunpack.c.l.bf16 %v2922
    %v2930 = vunpack.c.h.bf16 %v2922
    %v2931 = vmax.f32 %v2903, %v2923
    %v2932 = vmax.f32 %v2904, %v2924
    %v2933 = vmax.f32 %v2905, %v2925
    %v2934 = vmax.f32 %v2906, %v2926
    %v2935 = vmax.f32 %v2907, %v2927
    %v2936 = vmax.f32 %v2908, %v2928
    %v2937 = vmax.f32 %v2909, %v2929
    %v2938 = vmax.f32 %v2910, %v2930
    %v2939 = vpack.c.bf16 %v2931, %v2931
    %v2940 = vpack.c.bf16 %v2932, %v2932
    %v2941 = vpack.c.bf16 %v2933, %v2933
    %v2942 = vpack.c.bf16 %v2934, %v2934
    %v2943 = vpack.c.bf16 %v2935, %v2935
    %v2944 = vpack.c.bf16 %v2936, %v2936
    %v2945 = vpack.c.bf16 %v2937, %v2937
    %v2946 = vpack.c.bf16 %v2938, %v2938
    %v2947 = vld [vmem:[#allocation11] sm:$0xff]
    %v2948 = vld [vmem:[#allocation11 + $0x8] sm:$0xff]
    %v2949 = vld [vmem:[#allocation11 + $0x10] sm:$0xff]
    %v2950 = vld [vmem:[#allocation11 + $0x18] sm:$0xff]
    %v2951 = vld [vmem:[#allocation11 + $0x20] sm:$0xff]
    %v2952 = vld [vmem:[#allocation11 + $0x28] sm:$0xff]
    %v2953 = vld [vmem:[#allocation11 + $0x30] sm:$0xff]
    %v2954 = vld [vmem:[#allocation11 + $0x38] sm:$0xff]
    %v2955 = vld [vmem:[#allocation11 + $0x40] sm:$0xff]
    %v2956 = vld [vmem:[#allocation11 + $0x48] sm:$0xff]
    %v2957 = vld [vmem:[#allocation11 + $0x50] sm:$0xff]
    %v2958 = vld [vmem:[#allocation11 + $0x58] sm:$0xff]
    %v2959 = vld [vmem:[#allocation11 + $0x60] sm:$0xff]
    %v2960 = vld [vmem:[#allocation11 + $0x68] sm:$0xff]
    %v2961 = vld [vmem:[#allocation11 + $0x70] sm:$0xff]
    %v2962 = vld [vmem:[#allocation11 + $0x78] sm:$0xff]
    %v2963 = vld [vmem:[#allocation11 + $0x80] sm:$0xff]
    %v2964 = vld [vmem:[#allocation11 + $0x88] sm:$0xff]
    %v2965 = vld [vmem:[#allocation11 + $0x90] sm:$0xff]
    %v2966 = vld [vmem:[#allocation11 + $0x98] sm:$0xff]
    %v2967 = vld [vmem:[#allocation11 + $0xa0] sm:$0xff]
    %v2968 = vld [vmem:[#allocation11 + $0xa8] sm:$0xff]
    %v2969 = vld [vmem:[#allocation11 + $0xb0] sm:$0xff]
    %v2970 = vld [vmem:[#allocation11 + $0xb8] sm:$0xff]
    %v2971 = vld [vmem:[#allocation11 + $0xc0] sm:$0xff]
    %v2972 = vld [vmem:[#allocation11 + $0xc8] sm:$0xff]
    %v2973 = vld [vmem:[#allocation11 + $0xd0] sm:$0xff]
    %v2974 = vld [vmem:[#allocation11 + $0xd8] sm:$0xff]
    %v2975 = vld [vmem:[#allocation11 + $0xe0] sm:$0xff]
    %v2976 = vld [vmem:[#allocation11 + $0xe8] sm:$0xff]
    %v2977 = vld [vmem:[#allocation11 + $0xf0] sm:$0xff]
    %v2978 = vld [vmem:[#allocation11 + $0xf8] sm:$0xff]
    %v2979 = vld [vmem:[#allocation11 + $0x100] sm:$0xff]
    %v2980 = vld [vmem:[#allocation11 + $0x108] sm:$0xff]
    %v2981 = vld [vmem:[#allocation11 + $0x110] sm:$0xff]
    %v2982 = vld [vmem:[#allocation11 + $0x118] sm:$0xff]
    %v2983 = vld [vmem:[#allocation11 + $0x120] sm:$0xff]
    %v2984 = vld [vmem:[#allocation11 + $0x128] sm:$0xff]
    %v2985 = vld [vmem:[#allocation11 + $0x130] sm:$0xff]
    %v2986 = vld [vmem:[#allocation11 + $0x138] sm:$0xff]
    %v2987 = vld [vmem:[#allocation11 + $0x140] sm:$0xff]
    %v2988 = vld [vmem:[#allocation11 + $0x148] sm:$0xff]
    %v2989 = vld [vmem:[#allocation11 + $0x150] sm:$0xff]
    %v2990 = vld [vmem:[#allocation11 + $0x158] sm:$0xff]
    %v2991 = vld [vmem:[#allocation11 + $0x160] sm:$0xff]
    %v2992 = vld [vmem:[#allocation11 + $0x168] sm:$0xff]
    %v2993 = vld [vmem:[#allocation11 + $0x170] sm:$0xff]
    %v2994 = vld [vmem:[#allocation11 + $0x178] sm:$0xff]
    %v2995 = vld [vmem:[#allocation11 + $0x180] sm:$0xff]
    %v2996 = vld [vmem:[#allocation11 + $0x188] sm:$0xff]
    %v2997 = vld [vmem:[#allocation11 + $0x190] sm:$0xff]
    %v2998 = vld [vmem:[#allocation11 + $0x198] sm:$0xff]
    %v2999 = vld [vmem:[#allocation11 + $0x1a0] sm:$0xff]
    %v3000 = vld [vmem:[#allocation11 + $0x1a8] sm:$0xff]
    %v3001 = vld [vmem:[#allocation11 + $0x1b0] sm:$0xff]
    %v3002 = vld [vmem:[#allocation11 + $0x1b8] sm:$0xff]
    %v3003 = vld [vmem:[#allocation11 + $0x1c0] sm:$0xff]
    %v3004 = vld [vmem:[#allocation11 + $0x1c8] sm:$0xff]
    %v3005 = vld [vmem:[#allocation11 + $0x1d0] sm:$0xff]
    %v3006 = vld [vmem:[#allocation11 + $0x1d8] sm:$0xff]
    %v3007 = vld [vmem:[#allocation11 + $0x1e0] sm:$0xff]
    %v3008 = vld [vmem:[#allocation11 + $0x1e8] sm:$0xff]
    %v3009 = vld [vmem:[#allocation11 + $0x1f0] sm:$0xff]
    %v3010 = vld [vmem:[#allocation11 + $0x1f8] sm:$0xff]
    %v3011 = vld [vmem:[#allocation11 + $0x200] sm:$0xff]
    %v3012 = vld [vmem:[#allocation11 + $0x208] sm:$0xff]
    %v3013 = vld [vmem:[#allocation11 + $0x210] sm:$0xff]
    %v3014 = vld [vmem:[#allocation11 + $0x218] sm:$0xff]
    %v3015 = vld [vmem:[#allocation11 + $0x220] sm:$0xff]
    %v3016 = vld [vmem:[#allocation11 + $0x228] sm:$0xff]
    %v3017 = vld [vmem:[#allocation11 + $0x230] sm:$0xff]
    %v3018 = vld [vmem:[#allocation11 + $0x238] sm:$0xff]
    %v3019 = vld [vmem:[#allocation11 + $0x240] sm:$0xff]
    %v3020 = vld [vmem:[#allocation11 + $0x248] sm:$0xff]
    %v3021 = vld [vmem:[#allocation11 + $0x250] sm:$0xff]
    %v3022 = vld [vmem:[#allocation11 + $0x258] sm:$0xff]
    %v3023 = vld [vmem:[#allocation11 + $0x260] sm:$0xff]
    %v3024 = vld [vmem:[#allocation11 + $0x268] sm:$0xff]
    %v3025 = vld [vmem:[#allocation11 + $0x270] sm:$0xff]
    %v3026 = vld [vmem:[#allocation11 + $0x278] sm:$0xff]
    %v3027 = vld [vmem:[#allocation11 + $0x280] sm:$0xff]
    %v3028 = vld [vmem:[#allocation11 + $0x288] sm:$0xff]
    %v3029 = vld [vmem:[#allocation11 + $0x290] sm:$0xff]
    %v3030 = vld [vmem:[#allocation11 + $0x298] sm:$0xff]
    %v3031 = vld [vmem:[#allocation11 + $0x2a0] sm:$0xff]
    %v3032 = vld [vmem:[#allocation11 + $0x2a8] sm:$0xff]
    %v3033 = vld [vmem:[#allocation11 + $0x2b0] sm:$0xff]
    %v3034 = vld [vmem:[#allocation11 + $0x2b8] sm:$0xff]
    %v3035 = vld [vmem:[#allocation11 + $0x2c0] sm:$0xff]
    %v3036 = vld [vmem:[#allocation11 + $0x2c8] sm:$0xff]
    %v3037 = vld [vmem:[#allocation11 + $0x2d0] sm:$0xff]
    %v3038 = vld [vmem:[#allocation11 + $0x2d8] sm:$0xff]
    %v3039 = vld [vmem:[#allocation11 + $0x2e0] sm:$0xff]
    %v3040 = vld [vmem:[#allocation11 + $0x2e8] sm:$0xff]
    %v3041 = vld [vmem:[#allocation11 + $0x2f0] sm:$0xff]
    %v3042 = vld [vmem:[#allocation11 + $0x2f8] sm:$0xff]
    %v3043 = vld [vmem:[#allocation11 + $0x300] sm:$0xff]
    %v3044 = vld [vmem:[#allocation11 + $0x308] sm:$0xff]
    %v3045 = vld [vmem:[#allocation11 + $0x310] sm:$0xff]
    %v3046 = vld [vmem:[#allocation11 + $0x318] sm:$0xff]
    %v3047 = vld [vmem:[#allocation11 + $0x320] sm:$0xff]
    %v3048 = vld [vmem:[#allocation11 + $0x328] sm:$0xff]
    %v3049 = vld [vmem:[#allocation11 + $0x330] sm:$0xff]
    %v3050 = vld [vmem:[#allocation11 + $0x338] sm:$0xff]
    %v3051 = vld [vmem:[#allocation11 + $0x340] sm:$0xff]
    %v3052 = vld [vmem:[#allocation11 + $0x348] sm:$0xff]
    %v3053 = vld [vmem:[#allocation11 + $0x350] sm:$0xff]
    %v3054 = vld [vmem:[#allocation11 + $0x358] sm:$0xff]
    %v3055 = vld [vmem:[#allocation11 + $0x360] sm:$0xff]
    %v3056 = vld [vmem:[#allocation11 + $0x368] sm:$0xff]
    %v3057 = vld [vmem:[#allocation11 + $0x370] sm:$0xff]
    %v3058 = vld [vmem:[#allocation11 + $0x378] sm:$0xff]
    %v3059 = vld [vmem:[#allocation11 + $0x380] sm:$0xff]
    %v3060 = vld [vmem:[#allocation11 + $0x388] sm:$0xff]
    %v3061 = vld [vmem:[#allocation11 + $0x390] sm:$0xff]
    %v3062 = vld [vmem:[#allocation11 + $0x398] sm:$0xff]
    %v3063 = vld [vmem:[#allocation11 + $0x3a0] sm:$0xff]
    %v3064 = vld [vmem:[#allocation11 + $0x3a8] sm:$0xff]
    %v3065 = vld [vmem:[#allocation11 + $0x3b0] sm:$0xff]
    %v3066 = vld [vmem:[#allocation11 + $0x3b8] sm:$0xff]
    %v3067 = vld [vmem:[#allocation11 + $0x3c0] sm:$0xff]
    %v3068 = vld [vmem:[#allocation11 + $0x3c8] sm:$0xff]
    %v3069 = vld [vmem:[#allocation11 + $0x3d0] sm:$0xff]
    %v3070 = vld [vmem:[#allocation11 + $0x3d8] sm:$0xff]
    %v3071 = vld [vmem:[#allocation11 + $0x3e0] sm:$0xff]
    %v3072 = vld [vmem:[#allocation11 + $0x3e8] sm:$0xff]
    %v3073 = vld [vmem:[#allocation11 + $0x3f0] sm:$0xff]
    %v3074 = vld [vmem:[#allocation11 + $0x3f8] sm:$0xff]
    %v3075 = vld [vmem:[#allocation11 + $0x400] sm:$0xff]
    %v3076 = vld [vmem:[#allocation11 + $0x408] sm:$0xff]
    %v3077 = vld [vmem:[#allocation11 + $0x410] sm:$0xff]
    %v3078 = vld [vmem:[#allocation11 + $0x418] sm:$0xff]
    %v3079 = vld [vmem:[#allocation11 + $0x420] sm:$0xff]
    %v3080 = vld [vmem:[#allocation11 + $0x428] sm:$0xff]
    %v3081 = vld [vmem:[#allocation11 + $0x430] sm:$0xff]
    %v3082 = vld [vmem:[#allocation11 + $0x438] sm:$0xff]
    %v3083 = vld [vmem:[#allocation11 + $0x440] sm:$0xff]
    %v3084 = vld [vmem:[#allocation11 + $0x448] sm:$0xff]
    %v3085 = vld [vmem:[#allocation11 + $0x450] sm:$0xff]
    %v3086 = vld [vmem:[#allocation11 + $0x458] sm:$0xff]
    %v3087 = vld [vmem:[#allocation11 + $0x460] sm:$0xff]
    %v3088 = vld [vmem:[#allocation11 + $0x468] sm:$0xff]
    %v3089 = vld [vmem:[#allocation11 + $0x470] sm:$0xff]
    %v3090 = vld [vmem:[#allocation11 + $0x478] sm:$0xff]
    %v3091 = vld [vmem:[#allocation11 + $0x480] sm:$0xff]
    %v3092 = vld [vmem:[#allocation11 + $0x488] sm:$0xff]
    %v3093 = vld [vmem:[#allocation11 + $0x490] sm:$0xff]
    %v3094 = vld [vmem:[#allocation11 + $0x498] sm:$0xff]
    %v3095 = vld [vmem:[#allocation11 + $0x4a0] sm:$0xff]
    %v3096 = vld [vmem:[#allocation11 + $0x4a8] sm:$0xff]
    %v3097 = vld [vmem:[#allocation11 + $0x4b0] sm:$0xff]
    %v3098 = vld [vmem:[#allocation11 + $0x4b8] sm:$0xff]
    %v3099 = vld [vmem:[#allocation11 + $0x4c0] sm:$0xff]
    %v3100 = vld [vmem:[#allocation11 + $0x4c8] sm:$0xff]
    %v3101 = vld [vmem:[#allocation11 + $0x4d0] sm:$0xff]
    %v3102 = vld [vmem:[#allocation11 + $0x4d8] sm:$0xff]
    %v3103 = vld [vmem:[#allocation11 + $0x4e0] sm:$0xff]
    %v3104 = vld [vmem:[#allocation11 + $0x4e8] sm:$0xff]
    %v3105 = vld [vmem:[#allocation11 + $0x4f0] sm:$0xff]
    %v3106 = vld [vmem:[#allocation11 + $0x4f8] sm:$0xff]
    %v3107 = vld [vmem:[#allocation11 + $0x500] sm:$0xff]
    %v3108 = vld [vmem:[#allocation11 + $0x508] sm:$0xff]
    %v3109 = vld [vmem:[#allocation11 + $0x510] sm:$0xff]
    %v3110 = vld [vmem:[#allocation11 + $0x518] sm:$0xff]
    %v3111 = vld [vmem:[#allocation11 + $0x520] sm:$0xff]
    %v3112 = vld [vmem:[#allocation11 + $0x528] sm:$0xff]
    %v3113 = vld [vmem:[#allocation11 + $0x530] sm:$0xff]
    %v3114 = vld [vmem:[#allocation11 + $0x538] sm:$0xff]
    %v3115 = vld [vmem:[#allocation11 + $0x540] sm:$0xff]
    %v3116 = vld [vmem:[#allocation11 + $0x548] sm:$0xff]
    %v3117 = vld [vmem:[#allocation11 + $0x550] sm:$0xff]
    %v3118 = vld [vmem:[#allocation11 + $0x558] sm:$0xff]
    %v3119 = vld [vmem:[#allocation11 + $0x560] sm:$0xff]
    %v3120 = vld [vmem:[#allocation11 + $0x568] sm:$0xff]
    %v3121 = vld [vmem:[#allocation11 + $0x570] sm:$0xff]
    %v3122 = vld [vmem:[#allocation11 + $0x578] sm:$0xff]
    %v3123 = vld [vmem:[#allocation11 + $0x580] sm:$0xff]
    %v3124 = vld [vmem:[#allocation11 + $0x588] sm:$0xff]
    %v3125 = vld [vmem:[#allocation11 + $0x590] sm:$0xff]
    %v3126 = vld [vmem:[#allocation11 + $0x598] sm:$0xff]
    %v3127 = vld [vmem:[#allocation11 + $0x5a0] sm:$0xff]
    %v3128 = vld [vmem:[#allocation11 + $0x5a8] sm:$0xff]
    %v3129 = vld [vmem:[#allocation11 + $0x5b0] sm:$0xff]
    %v3130 = vld [vmem:[#allocation11 + $0x5b8] sm:$0xff]
    %v3131 = vld [vmem:[#allocation11 + $0x5c0] sm:$0xff]
    %v3132 = vld [vmem:[#allocation11 + $0x5c8] sm:$0xff]
    %v3133 = vld [vmem:[#allocation11 + $0x5d0] sm:$0xff]
    %v3134 = vld [vmem:[#allocation11 + $0x5d8] sm:$0xff]
    %v3135 = vld [vmem:[#allocation11 + $0x5e0] sm:$0xff]
    %v3136 = vld [vmem:[#allocation11 + $0x5e8] sm:$0xff]
    %v3137 = vld [vmem:[#allocation11 + $0x5f0] sm:$0xff]
    %v3138 = vld [vmem:[#allocation11 + $0x5f8] sm:$0xff]
    %v3139 = vld [vmem:[#allocation11 + $0x600] sm:$0xff]
    %v3140 = vld [vmem:[#allocation11 + $0x608] sm:$0xff]
    %v3141 = vld [vmem:[#allocation11 + $0x610] sm:$0xff]
    %v3142 = vld [vmem:[#allocation11 + $0x618] sm:$0xff]
    %v3143 = vld [vmem:[#allocation11 + $0x620] sm:$0xff]
    %v3144 = vld [vmem:[#allocation11 + $0x628] sm:$0xff]
    %v3145 = vld [vmem:[#allocation11 + $0x630] sm:$0xff]
    %v3146 = vld [vmem:[#allocation11 + $0x638] sm:$0xff]
    %v3147 = vld [vmem:[#allocation11 + $0x640] sm:$0xff]
    %v3148 = vld [vmem:[#allocation11 + $0x648] sm:$0xff]
    %v3149 = vld [vmem:[#allocation11 + $0x650] sm:$0xff]
    %v3150 = vld [vmem:[#allocation11 + $0x658] sm:$0xff]
    %v3151 = vld [vmem:[#allocation11 + $0x660] sm:$0xff]
    %v3152 = vld [vmem:[#allocation11 + $0x668] sm:$0xff]
    %v3153 = vld [vmem:[#allocation11 + $0x670] sm:$0xff]
    %v3154 = vld [vmem:[#allocation11 + $0x678] sm:$0xff]
    %v3155 = vld [vmem:[#allocation11 + $0x680] sm:$0xff]
    %v3156 = vld [vmem:[#allocation11 + $0x688] sm:$0xff]
    %v3157 = vld [vmem:[#allocation11 + $0x690] sm:$0xff]
    %v3158 = vld [vmem:[#allocation11 + $0x698] sm:$0xff]
    %v3159 = vld [vmem:[#allocation11 + $0x6a0] sm:$0xff]
    %v3160 = vld [vmem:[#allocation11 + $0x6a8] sm:$0xff]
    %v3161 = vld [vmem:[#allocation11 + $0x6b0] sm:$0xff]
    %v3162 = vld [vmem:[#allocation11 + $0x6b8] sm:$0xff]
    %v3163 = vld [vmem:[#allocation11 + $0x6c0] sm:$0xff]
    %v3164 = vld [vmem:[#allocation11 + $0x6c8] sm:$0xff]
    %v3165 = vld [vmem:[#allocation11 + $0x6d0] sm:$0xff]
    %v3166 = vld [vmem:[#allocation11 + $0x6d8] sm:$0xff]
    %v3167 = vld [vmem:[#allocation11 + $0x6e0] sm:$0xff]
    %v3168 = vld [vmem:[#allocation11 + $0x6e8] sm:$0xff]
    %v3169 = vld [vmem:[#allocation11 + $0x6f0] sm:$0xff]
    %v3170 = vld [vmem:[#allocation11 + $0x6f8] sm:$0xff]
    %v3171 = vld [vmem:[#allocation11 + $0x700] sm:$0xff]
    %v3172 = vld [vmem:[#allocation11 + $0x708] sm:$0xff]
    %v3173 = vld [vmem:[#allocation11 + $0x710] sm:$0xff]
    %v3174 = vld [vmem:[#allocation11 + $0x718] sm:$0xff]
    %v3175 = vld [vmem:[#allocation11 + $0x720] sm:$0xff]
    %v3176 = vld [vmem:[#allocation11 + $0x728] sm:$0xff]
    %v3177 = vld [vmem:[#allocation11 + $0x730] sm:$0xff]
    %v3178 = vld [vmem:[#allocation11 + $0x738] sm:$0xff]
    %v3179 = vld [vmem:[#allocation11 + $0x740] sm:$0xff]
    %v3180 = vld [vmem:[#allocation11 + $0x748] sm:$0xff]
    %v3181 = vld [vmem:[#allocation11 + $0x750] sm:$0xff]
    %v3182 = vld [vmem:[#allocation11 + $0x758] sm:$0xff]
    %v3183 = vld [vmem:[#allocation11 + $0x760] sm:$0xff]
    %v3184 = vld [vmem:[#allocation11 + $0x768] sm:$0xff]
    %v3185 = vld [vmem:[#allocation11 + $0x770] sm:$0xff]
    %v3186 = vld [vmem:[#allocation11 + $0x778] sm:$0xff]
    %v3187 = vld [vmem:[#allocation11 + $0x780] sm:$0xff]
    %v3188 = vld [vmem:[#allocation11 + $0x788] sm:$0xff]
    %v3189 = vld [vmem:[#allocation11 + $0x790] sm:$0xff]
    %v3190 = vld [vmem:[#allocation11 + $0x798] sm:$0xff]
    %v3191 = vld [vmem:[#allocation11 + $0x7a0] sm:$0xff]
    %v3192 = vld [vmem:[#allocation11 + $0x7a8] sm:$0xff]
    %v3193 = vld [vmem:[#allocation11 + $0x7b0] sm:$0xff]
    %v3194 = vld [vmem:[#allocation11 + $0x7b8] sm:$0xff]
    %v3195 = vld [vmem:[#allocation11 + $0x7c0] sm:$0xff]
    %v3196 = vld [vmem:[#allocation11 + $0x7c8] sm:$0xff]
    %v3197 = vld [vmem:[#allocation11 + $0x7d0] sm:$0xff]
    %v3198 = vld [vmem:[#allocation11 + $0x7d8] sm:$0xff]
    %v3199 = vld [vmem:[#allocation11 + $0x7e0] sm:$0xff]
    %v3200 = vld [vmem:[#allocation11 + $0x7e8] sm:$0xff]
    %v3201 = vld [vmem:[#allocation11 + $0x7f0] sm:$0xff]
    %v3202 = vld [vmem:[#allocation11 + $0x7f8] sm:$0xff]
    %v3203 = vld [vmem:[#allocation13] sm:$0xf]
    %v3205 = vperm.slane %v3203, 0
    %v3206 = vperm.slane %v3203, 1
    %v3207 = vperm.slane %v3203, 2
    %v3208 = vperm.slane %v3203, 3
    %v3469 = vunpack.c.l.b16 %v2947
    %v3470 = vunpack.c.h.b16 %v2947
    %v3471 = vunpack.c.l.b16 %v2948
    %v3472 = vunpack.c.h.b16 %v2948
    %v3473 = vunpack.c.l.b16 %v2949
    %v3474 = vunpack.c.h.b16 %v2949
    %v3475 = vunpack.c.l.b16 %v2950
    %v3476 = vunpack.c.h.b16 %v2950
    %v3477 = vunpack.c.l.b16 %v2951
    %v3478 = vunpack.c.h.b16 %v2951
    %v3479 = vunpack.c.l.b16 %v2952
    %v3480 = vunpack.c.h.b16 %v2952
    %v3481 = vunpack.c.l.b16 %v2953
    %v3482 = vunpack.c.h.b16 %v2953
    %v3483 = vunpack.c.l.b16 %v2954
    %v3484 = vunpack.c.h.b16 %v2954
    %v3485 = vunpack.c.l.b16 %v2955
    %v3486 = vunpack.c.h.b16 %v2955
    %v3487 = vunpack.c.l.b16 %v2956
    %v3488 = vunpack.c.h.b16 %v2956
    %v3489 = vunpack.c.l.b16 %v2957
    %v3490 = vunpack.c.h.b16 %v2957
    %v3491 = vunpack.c.l.b16 %v2958
    %v3492 = vunpack.c.h.b16 %v2958
    %v3493 = vunpack.c.l.b16 %v2959
    %v3494 = vunpack.c.h.b16 %v2959
    %v3495 = vunpack.c.l.b16 %v2960
    %v3496 = vunpack.c.h.b16 %v2960
    %v3497 = vunpack.c.l.b16 %v2961
    %v3498 = vunpack.c.h.b16 %v2961
    %v3499 = vunpack.c.l.b16 %v2962
    %v3500 = vunpack.c.h.b16 %v2962
    %v3501 = vunpack.c.l.b16 %v2963
    %v3502 = vunpack.c.h.b16 %v2963
    %v3503 = vunpack.c.l.b16 %v2964
    %v3504 = vunpack.c.h.b16 %v2964
    %v3505 = vunpack.c.l.b16 %v2965
    %v3506 = vunpack.c.h.b16 %v2965
    %v3507 = vunpack.c.l.b16 %v2966
    %v3508 = vunpack.c.h.b16 %v2966
    %v3509 = vunpack.c.l.b16 %v2967
    %v3510 = vunpack.c.h.b16 %v2967
    %v3511 = vunpack.c.l.b16 %v2968
    %v3512 = vunpack.c.h.b16 %v2968
    %v3513 = vunpack.c.l.b16 %v2969
    %v3514 = vunpack.c.h.b16 %v2969
    %v3515 = vunpack.c.l.b16 %v2970
    %v3516 = vunpack.c.h.b16 %v2970
    %v3517 = vunpack.c.l.b16 %v2971
    %v3518 = vunpack.c.h.b16 %v2971
    %v3519 = vunpack.c.l.b16 %v2972
    %v3520 = vunpack.c.h.b16 %v2972
    %v3521 = vunpack.c.l.b16 %v2973
    %v3522 = vunpack.c.h.b16 %v2973
    %v3523 = vunpack.c.l.b16 %v2974
    %v3524 = vunpack.c.h.b16 %v2974
    %v3525 = vunpack.c.l.b16 %v2975
    %v3526 = vunpack.c.h.b16 %v2975
    %v3527 = vunpack.c.l.b16 %v2976
    %v3528 = vunpack.c.h.b16 %v2976
    %v3529 = vunpack.c.l.b16 %v2977
    %v3530 = vunpack.c.h.b16 %v2977
    %v3531 = vunpack.c.l.b16 %v2978
    %v3532 = vunpack.c.h.b16 %v2978
    %v3533 = vunpack.c.l.b16 %v2979
    %v3534 = vunpack.c.h.b16 %v2979
    %v3535 = vunpack.c.l.b16 %v2980
    %v3536 = vunpack.c.h.b16 %v2980
    %v3537 = vunpack.c.l.b16 %v2981
    %v3538 = vunpack.c.h.b16 %v2981
    %v3539 = vunpack.c.l.b16 %v2982
    %v3540 = vunpack.c.h.b16 %v2982
    %v3541 = vunpack.c.l.b16 %v2983
    %v3542 = vunpack.c.h.b16 %v2983
    %v3543 = vunpack.c.l.b16 %v2984
    %v3544 = vunpack.c.h.b16 %v2984
    %v3545 = vunpack.c.l.b16 %v2985
    %v3546 = vunpack.c.h.b16 %v2985
    %v3547 = vunpack.c.l.b16 %v2986
    %v3548 = vunpack.c.h.b16 %v2986
    %v3549 = vunpack.c.l.b16 %v2987
    %v3550 = vunpack.c.h.b16 %v2987
    %v3551 = vunpack.c.l.b16 %v2988
    %v3552 = vunpack.c.h.b16 %v2988
    %v3553 = vunpack.c.l.b16 %v2989
    %v3554 = vunpack.c.h.b16 %v2989
    %v3555 = vunpack.c.l.b16 %v2990
    %v3556 = vunpack.c.h.b16 %v2990
    %v3557 = vunpack.c.l.b16 %v2991
    %v3558 = vunpack.c.h.b16 %v2991
    %v3559 = vunpack.c.l.b16 %v2992
    %v3560 = vunpack.c.h.b16 %v2992
    %v3561 = vunpack.c.l.b16 %v2993
    %v3562 = vunpack.c.h.b16 %v2993
    %v3563 = vunpack.c.l.b16 %v2994
    %v3564 = vunpack.c.h.b16 %v2994
    %v3565 = vunpack.c.l.b16 %v2995
    %v3566 = vunpack.c.h.b16 %v2995
    %v3567 = vunpack.c.l.b16 %v2996
    %v3568 = vunpack.c.h.b16 %v2996
    %v3569 = vunpack.c.l.b16 %v2997
    %v3570 = vunpack.c.h.b16 %v2997
    %v3571 = vunpack.c.l.b16 %v2998
    %v3572 = vunpack.c.h.b16 %v2998
    %v3573 = vunpack.c.l.b16 %v2999
    %v3574 = vunpack.c.h.b16 %v2999
    %v3575 = vunpack.c.l.b16 %v3000
    %v3576 = vunpack.c.h.b16 %v3000
    %v3577 = vunpack.c.l.b16 %v3001
    %v3578 = vunpack.c.h.b16 %v3001
    %v3579 = vunpack.c.l.b16 %v3002
    %v3580 = vunpack.c.h.b16 %v3002
    %v3581 = vunpack.c.l.b16 %v3003
    %v3582 = vunpack.c.h.b16 %v3003
    %v3583 = vunpack.c.l.b16 %v3004
    %v3584 = vunpack.c.h.b16 %v3004
    %v3585 = vunpack.c.l.b16 %v3005
    %v3586 = vunpack.c.h.b16 %v3005
    %v3587 = vunpack.c.l.b16 %v3006
    %v3588 = vunpack.c.h.b16 %v3006
    %v3589 = vunpack.c.l.b16 %v3007
    %v3590 = vunpack.c.h.b16 %v3007
    %v3591 = vunpack.c.l.b16 %v3008
    %v3592 = vunpack.c.h.b16 %v3008
    %v3593 = vunpack.c.l.b16 %v3009
    %v3594 = vunpack.c.h.b16 %v3009
    %v3595 = vunpack.c.l.b16 %v3010
    %v3596 = vunpack.c.h.b16 %v3010
    %v3597 = vunpack.c.l.b16 %v3011
    %v3598 = vunpack.c.h.b16 %v3011
    %v3599 = vunpack.c.l.b16 %v3012
    %v3600 = vunpack.c.h.b16 %v3012
    %v3601 = vunpack.c.l.b16 %v3013
    %v3602 = vunpack.c.h.b16 %v3013
    %v3603 = vunpack.c.l.b16 %v3014
    %v3604 = vunpack.c.h.b16 %v3014
    %v3605 = vunpack.c.l.b16 %v3015
    %v3606 = vunpack.c.h.b16 %v3015
    %v3607 = vunpack.c.l.b16 %v3016
    %v3608 = vunpack.c.h.b16 %v3016
    %v3609 = vunpack.c.l.b16 %v3017
    %v3610 = vunpack.c.h.b16 %v3017
    %v3611 = vunpack.c.l.b16 %v3018
    %v3612 = vunpack.c.h.b16 %v3018
    %v3613 = vunpack.c.l.b16 %v3019
    %v3614 = vunpack.c.h.b16 %v3019
    %v3615 = vunpack.c.l.b16 %v3020
    %v3616 = vunpack.c.h.b16 %v3020
    %v3617 = vunpack.c.l.b16 %v3021
    %v3618 = vunpack.c.h.b16 %v3021
    %v3619 = vunpack.c.l.b16 %v3022
    %v3620 = vunpack.c.h.b16 %v3022
    %v3621 = vunpack.c.l.b16 %v3023
    %v3622 = vunpack.c.h.b16 %v3023
    %v3623 = vunpack.c.l.b16 %v3024
    %v3624 = vunpack.c.h.b16 %v3024
    %v3625 = vunpack.c.l.b16 %v3025
    %v3626 = vunpack.c.h.b16 %v3025
    %v3627 = vunpack.c.l.b16 %v3026
    %v3628 = vunpack.c.h.b16 %v3026
    %v3629 = vunpack.c.l.b16 %v3027
    %v3630 = vunpack.c.h.b16 %v3027
    %v3631 = vunpack.c.l.b16 %v3028
    %v3632 = vunpack.c.h.b16 %v3028
    %v3633 = vunpack.c.l.b16 %v3029
    %v3634 = vunpack.c.h.b16 %v3029
    %v3635 = vunpack.c.l.b16 %v3030
    %v3636 = vunpack.c.h.b16 %v3030
    %v3637 = vunpack.c.l.b16 %v3031
    %v3638 = vunpack.c.h.b16 %v3031
    %v3639 = vunpack.c.l.b16 %v3032
    %v3640 = vunpack.c.h.b16 %v3032
    %v3641 = vunpack.c.l.b16 %v3033
    %v3642 = vunpack.c.h.b16 %v3033
    %v3643 = vunpack.c.l.b16 %v3034
    %v3644 = vunpack.c.h.b16 %v3034
    %v3645 = vunpack.c.l.b16 %v3035
    %v3646 = vunpack.c.h.b16 %v3035
    %v3647 = vunpack.c.l.b16 %v3036
    %v3648 = vunpack.c.h.b16 %v3036
    %v3649 = vunpack.c.l.b16 %v3037
    %v3650 = vunpack.c.h.b16 %v3037
    %v3651 = vunpack.c.l.b16 %v3038
    %v3652 = vunpack.c.h.b16 %v3038
    %v3653 = vunpack.c.l.b16 %v3039
    %v3654 = vunpack.c.h.b16 %v3039
    %v3655 = vunpack.c.l.b16 %v3040
    %v3656 = vunpack.c.h.b16 %v3040
    %v3657 = vunpack.c.l.b16 %v3041
    %v3658 = vunpack.c.h.b16 %v3041
    %v3659 = vunpack.c.l.b16 %v3042
    %v3660 = vunpack.c.h.b16 %v3042
    %v3661 = vunpack.c.l.b16 %v3043
    %v3662 = vunpack.c.h.b16 %v3043
    %v3663 = vunpack.c.l.b16 %v3044
    %v3664 = vunpack.c.h.b16 %v3044
    %v3665 = vunpack.c.l.b16 %v3045
    %v3666 = vunpack.c.h.b16 %v3045
    %v3667 = vunpack.c.l.b16 %v3046
    %v3668 = vunpack.c.h.b16 %v3046
    %v3669 = vunpack.c.l.b16 %v3047
    %v3670 = vunpack.c.h.b16 %v3047
    %v3671 = vunpack.c.l.b16 %v3048
    %v3672 = vunpack.c.h.b16 %v3048
    %v3673 = vunpack.c.l.b16 %v3049
    %v3674 = vunpack.c.h.b16 %v3049
    %v3675 = vunpack.c.l.b16 %v3050
    %v3676 = vunpack.c.h.b16 %v3050
    %v3677 = vunpack.c.l.b16 %v3051
    %v3678 = vunpack.c.h.b16 %v3051
    %v3679 = vunpack.c.l.b16 %v3052
    %v3680 = vunpack.c.h.b16 %v3052
    %v3681 = vunpack.c.l.b16 %v3053
    %v3682 = vunpack.c.h.b16 %v3053
    %v3683 = vunpack.c.l.b16 %v3054
    %v3684 = vunpack.c.h.b16 %v3054
    %v3685 = vunpack.c.l.b16 %v3055
    %v3686 = vunpack.c.h.b16 %v3055
    %v3687 = vunpack.c.l.b16 %v3056
    %v3688 = vunpack.c.h.b16 %v3056
    %v3689 = vunpack.c.l.b16 %v3057
    %v3690 = vunpack.c.h.b16 %v3057
    %v3691 = vunpack.c.l.b16 %v3058
    %v3692 = vunpack.c.h.b16 %v3058
    %v3693 = vunpack.c.l.b16 %v3059
    %v3694 = vunpack.c.h.b16 %v3059
    %v3695 = vunpack.c.l.b16 %v3060
    %v3696 = vunpack.c.h.b16 %v3060
    %v3697 = vunpack.c.l.b16 %v3061
    %v3698 = vunpack.c.h.b16 %v3061
    %v3699 = vunpack.c.l.b16 %v3062
    %v3700 = vunpack.c.h.b16 %v3062
    %v3701 = vunpack.c.l.b16 %v3063
    %v3702 = vunpack.c.h.b16 %v3063
    %v3703 = vunpack.c.l.b16 %v3064
    %v3704 = vunpack.c.h.b16 %v3064
    %v3705 = vunpack.c.l.b16 %v3065
    %v3706 = vunpack.c.h.b16 %v3065
    %v3707 = vunpack.c.l.b16 %v3066
    %v3708 = vunpack.c.h.b16 %v3066
    %v3709 = vunpack.c.l.b16 %v3067
    %v3710 = vunpack.c.h.b16 %v3067
    %v3711 = vunpack.c.l.b16 %v3068
    %v3712 = vunpack.c.h.b16 %v3068
    %v3713 = vunpack.c.l.b16 %v3069
    %v3714 = vunpack.c.h.b16 %v3069
    %v3715 = vunpack.c.l.b16 %v3070
    %v3716 = vunpack.c.h.b16 %v3070
    %v3717 = vunpack.c.l.b16 %v3071
    %v3718 = vunpack.c.h.b16 %v3071
    %v3719 = vunpack.c.l.b16 %v3072
    %v3720 = vunpack.c.h.b16 %v3072
    %v3721 = vunpack.c.l.b16 %v3073
    %v3722 = vunpack.c.h.b16 %v3073
    %v3723 = vunpack.c.l.b16 %v3074
    %v3724 = vunpack.c.h.b16 %v3074
    %v3725 = vunpack.c.l.b16 %v3075
    %v3726 = vunpack.c.h.b16 %v3075
    %v3727 = vunpack.c.l.b16 %v3076
    %v3728 = vunpack.c.h.b16 %v3076
    %v3729 = vunpack.c.l.b16 %v3077
    %v3730 = vunpack.c.h.b16 %v3077
    %v3731 = vunpack.c.l.b16 %v3078
    %v3732 = vunpack.c.h.b16 %v3078
    %v3733 = vunpack.c.l.b16 %v3079
    %v3734 = vunpack.c.h.b16 %v3079
    %v3735 = vunpack.c.l.b16 %v3080
    %v3736 = vunpack.c.h.b16 %v3080
    %v3737 = vunpack.c.l.b16 %v3081
    %v3738 = vunpack.c.h.b16 %v3081
    %v3739 = vunpack.c.l.b16 %v3082
    %v3740 = vunpack.c.h.b16 %v3082
    %v3741 = vunpack.c.l.b16 %v3083
    %v3742 = vunpack.c.h.b16 %v3083
    %v3743 = vunpack.c.l.b16 %v3084
    %v3744 = vunpack.c.h.b16 %v3084
    %v3745 = vunpack.c.l.b16 %v3085
    %v3746 = vunpack.c.h.b16 %v3085
    %v3747 = vunpack.c.l.b16 %v3086
    %v3748 = vunpack.c.h.b16 %v3086
    %v3749 = vunpack.c.l.b16 %v3087
    %v3750 = vunpack.c.h.b16 %v3087
    %v3751 = vunpack.c.l.b16 %v3088
    %v3752 = vunpack.c.h.b16 %v3088
    %v3753 = vunpack.c.l.b16 %v3089
    %v3754 = vunpack.c.h.b16 %v3089
    %v3755 = vunpack.c.l.b16 %v3090
    %v3756 = vunpack.c.h.b16 %v3090
    %v3757 = vunpack.c.l.b16 %v3091
    %v3758 = vunpack.c.h.b16 %v3091
    %v3759 = vunpack.c.l.b16 %v3092
    %v3760 = vunpack.c.h.b16 %v3092
    %v3761 = vunpack.c.l.b16 %v3093
    %v3762 = vunpack.c.h.b16 %v3093
    %v3763 = vunpack.c.l.b16 %v3094
    %v3764 = vunpack.c.h.b16 %v3094
    %v3765 = vunpack.c.l.b16 %v3095
    %v3766 = vunpack.c.h.b16 %v3095
    %v3767 = vunpack.c.l.b16 %v3096
    %v3768 = vunpack.c.h.b16 %v3096
    %v3769 = vunpack.c.l.b16 %v3097
    %v3770 = vunpack.c.h.b16 %v3097
    %v3771 = vunpack.c.l.b16 %v3098
    %v3772 = vunpack.c.h.b16 %v3098
    %v3773 = vunpack.c.l.b16 %v3099
    %v3774 = vunpack.c.h.b16 %v3099
    %v3775 = vunpack.c.l.b16 %v3100
    %v3776 = vunpack.c.h.b16 %v3100
    %v3777 = vunpack.c.l.b16 %v3101
    %v3778 = vunpack.c.h.b16 %v3101
    %v3779 = vunpack.c.l.b16 %v3102
    %v3780 = vunpack.c.h.b16 %v3102
    %v3781 = vunpack.c.l.b16 %v3103
    %v3782 = vunpack.c.h.b16 %v3103
    %v3783 = vunpack.c.l.b16 %v3104
    %v3784 = vunpack.c.h.b16 %v3104
    %v3785 = vunpack.c.l.b16 %v3105
    %v3786 = vunpack.c.h.b16 %v3105
    %v3787 = vunpack.c.l.b16 %v3106
    %v3788 = vunpack.c.h.b16 %v3106
    %v3789 = vunpack.c.l.b16 %v3107
    %v3790 = vunpack.c.h.b16 %v3107
    %v3791 = vunpack.c.l.b16 %v3108
    %v3792 = vunpack.c.h.b16 %v3108
    %v3793 = vunpack.c.l.b16 %v3109
    %v3794 = vunpack.c.h.b16 %v3109
    %v3795 = vunpack.c.l.b16 %v3110
    %v3796 = vunpack.c.h.b16 %v3110
    %v3797 = vunpack.c.l.b16 %v3111
    %v3798 = vunpack.c.h.b16 %v3111
    %v3799 = vunpack.c.l.b16 %v3112
    %v3800 = vunpack.c.h.b16 %v3112
    %v3801 = vunpack.c.l.b16 %v3113
    %v3802 = vunpack.c.h.b16 %v3113
    %v3803 = vunpack.c.l.b16 %v3114
    %v3804 = vunpack.c.h.b16 %v3114
    %v3805 = vunpack.c.l.b16 %v3115
    %v3806 = vunpack.c.h.b16 %v3115
    %v3807 = vunpack.c.l.b16 %v3116
    %v3808 = vunpack.c.h.b16 %v3116
    %v3809 = vunpack.c.l.b16 %v3117
    %v3810 = vunpack.c.h.b16 %v3117
    %v3811 = vunpack.c.l.b16 %v3118
    %v3812 = vunpack.c.h.b16 %v3118
    %v3813 = vunpack.c.l.b16 %v3119
    %v3814 = vunpack.c.h.b16 %v3119
    %v3815 = vunpack.c.l.b16 %v3120
    %v3816 = vunpack.c.h.b16 %v3120
    %v3817 = vunpack.c.l.b16 %v3121
    %v3818 = vunpack.c.h.b16 %v3121
    %v3819 = vunpack.c.l.b16 %v3122
    %v3820 = vunpack.c.h.b16 %v3122
    %v3821 = vunpack.c.l.b16 %v3123
    %v3822 = vunpack.c.h.b16 %v3123
    %v3823 = vunpack.c.l.b16 %v3124
    %v3824 = vunpack.c.h.b16 %v3124
    %v3825 = vunpack.c.l.b16 %v3125
    %v3826 = vunpack.c.h.b16 %v3125
    %v3827 = vunpack.c.l.b16 %v3126
    %v3828 = vunpack.c.h.b16 %v3126
    %v3829 = vunpack.c.l.b16 %v3127
    %v3830 = vunpack.c.h.b16 %v3127
    %v3831 = vunpack.c.l.b16 %v3128
    %v3832 = vunpack.c.h.b16 %v3128
    %v3833 = vunpack.c.l.b16 %v3129
    %v3834 = vunpack.c.h.b16 %v3129
    %v3835 = vunpack.c.l.b16 %v3130
    %v3836 = vunpack.c.h.b16 %v3130
    %v3837 = vunpack.c.l.b16 %v3131
    %v3838 = vunpack.c.h.b16 %v3131
    %v3839 = vunpack.c.l.b16 %v3132
    %v3840 = vunpack.c.h.b16 %v3132
    %v3841 = vunpack.c.l.b16 %v3133
    %v3842 = vunpack.c.h.b16 %v3133
    %v3843 = vunpack.c.l.b16 %v3134
    %v3844 = vunpack.c.h.b16 %v3134
    %v3845 = vunpack.c.l.b16 %v3135
    %v3846 = vunpack.c.h.b16 %v3135
    %v3847 = vunpack.c.l.b16 %v3136
    %v3848 = vunpack.c.h.b16 %v3136
    %v3849 = vunpack.c.l.b16 %v3137
    %v3850 = vunpack.c.h.b16 %v3137
    %v3851 = vunpack.c.l.b16 %v3138
    %v3852 = vunpack.c.h.b16 %v3138
    %v3853 = vunpack.c.l.b16 %v3139
    %v3854 = vunpack.c.h.b16 %v3139
    %v3855 = vunpack.c.l.b16 %v3140
    %v3856 = vunpack.c.h.b16 %v3140
    %v3857 = vunpack.c.l.b16 %v3141
    %v3858 = vunpack.c.h.b16 %v3141
    %v3859 = vunpack.c.l.b16 %v3142
    %v3860 = vunpack.c.h.b16 %v3142
    %v3861 = vunpack.c.l.b16 %v3143
    %v3862 = vunpack.c.h.b16 %v3143
    %v3863 = vunpack.c.l.b16 %v3144
    %v3864 = vunpack.c.h.b16 %v3144
    %v3865 = vunpack.c.l.b16 %v3145
    %v3866 = vunpack.c.h.b16 %v3145
    %v3867 = vunpack.c.l.b16 %v3146
    %v3868 = vunpack.c.h.b16 %v3146
    %v3869 = vunpack.c.l.b16 %v3147
    %v3870 = vunpack.c.h.b16 %v3147
    %v3871 = vunpack.c.l.b16 %v3148
    %v3872 = vunpack.c.h.b16 %v3148
    %v3873 = vunpack.c.l.b16 %v3149
    %v3874 = vunpack.c.h.b16 %v3149
    %v3875 = vunpack.c.l.b16 %v3150
    %v3876 = vunpack.c.h.b16 %v3150
    %v3877 = vunpack.c.l.b16 %v3151
    %v3878 = vunpack.c.h.b16 %v3151
    %v3879 = vunpack.c.l.b16 %v3152
    %v3880 = vunpack.c.h.b16 %v3152
    %v3881 = vunpack.c.l.b16 %v3153
    %v3882 = vunpack.c.h.b16 %v3153
    %v3883 = vunpack.c.l.b16 %v3154
    %v3884 = vunpack.c.h.b16 %v3154
    %v3885 = vunpack.c.l.b16 %v3155
    %v3886 = vunpack.c.h.b16 %v3155
    %v3887 = vunpack.c.l.b16 %v3156
    %v3888 = vunpack.c.h.b16 %v3156
    %v3889 = vunpack.c.l.b16 %v3157
    %v3890 = vunpack.c.h.b16 %v3157
    %v3891 = vunpack.c.l.b16 %v3158
    %v3892 = vunpack.c.h.b16 %v3158
    %v3893 = vunpack.c.l.b16 %v3159
    %v3894 = vunpack.c.h.b16 %v3159
    %v3895 = vunpack.c.l.b16 %v3160
    %v3896 = vunpack.c.h.b16 %v3160
    %v3897 = vunpack.c.l.b16 %v3161
    %v3898 = vunpack.c.h.b16 %v3161
    %v3899 = vunpack.c.l.b16 %v3162
    %v3900 = vunpack.c.h.b16 %v3162
    %v3901 = vunpack.c.l.b16 %v3163
    %v3902 = vunpack.c.h.b16 %v3163
    %v3903 = vunpack.c.l.b16 %v3164
    %v3904 = vunpack.c.h.b16 %v3164
    %v3905 = vunpack.c.l.b16 %v3165
    %v3906 = vunpack.c.h.b16 %v3165
    %v3907 = vunpack.c.l.b16 %v3166
    %v3908 = vunpack.c.h.b16 %v3166
    %v3909 = vunpack.c.l.b16 %v3167
    %v3910 = vunpack.c.h.b16 %v3167
    %v3911 = vunpack.c.l.b16 %v3168
    %v3912 = vunpack.c.h.b16 %v3168
    %v3913 = vunpack.c.l.b16 %v3169
    %v3914 = vunpack.c.h.b16 %v3169
    %v3915 = vunpack.c.l.b16 %v3170
    %v3916 = vunpack.c.h.b16 %v3170
    %v3917 = vunpack.c.l.b16 %v3171
    %v3918 = vunpack.c.h.b16 %v3171
    %v3919 = vunpack.c.l.b16 %v3172
    %v3920 = vunpack.c.h.b16 %v3172
    %v3921 = vunpack.c.l.b16 %v3173
    %v3922 = vunpack.c.h.b16 %v3173
    %v3923 = vunpack.c.l.b16 %v3174
    %v3924 = vunpack.c.h.b16 %v3174
    %v3925 = vunpack.c.l.b16 %v3175
    %v3926 = vunpack.c.h.b16 %v3175
    %v3927 = vunpack.c.l.b16 %v3176
    %v3928 = vunpack.c.h.b16 %v3176
    %v3929 = vunpack.c.l.b16 %v3177
    %v3930 = vunpack.c.h.b16 %v3177
    %v3931 = vunpack.c.l.b16 %v3178
    %v3932 = vunpack.c.h.b16 %v3178
    %v3933 = vunpack.c.l.b16 %v3179
    %v3934 = vunpack.c.h.b16 %v3179
    %v3935 = vunpack.c.l.b16 %v3180
    %v3936 = vunpack.c.h.b16 %v3180
    %v3937 = vunpack.c.l.b16 %v3181
    %v3938 = vunpack.c.h.b16 %v3181
    %v3939 = vunpack.c.l.b16 %v3182
    %v3940 = vunpack.c.h.b16 %v3182
    %v3941 = vunpack.c.l.b16 %v3183
    %v3942 = vunpack.c.h.b16 %v3183
    %v3943 = vunpack.c.l.b16 %v3184
    %v3944 = vunpack.c.h.b16 %v3184
    %v3945 = vunpack.c.l.b16 %v3185
    %v3946 = vunpack.c.h.b16 %v3185
    %v3947 = vunpack.c.l.b16 %v3186
    %v3948 = vunpack.c.h.b16 %v3186
    %v3949 = vunpack.c.l.b16 %v3187
    %v3950 = vunpack.c.h.b16 %v3187
    %v3951 = vunpack.c.l.b16 %v3188
    %v3952 = vunpack.c.h.b16 %v3188
    %v3953 = vunpack.c.l.b16 %v3189
    %v3954 = vunpack.c.h.b16 %v3189
    %v3955 = vunpack.c.l.b16 %v3190
    %v3956 = vunpack.c.h.b16 %v3190
    %v3957 = vunpack.c.l.b16 %v3191
    %v3958 = vunpack.c.h.b16 %v3191
    %v3959 = vunpack.c.l.b16 %v3192
    %v3960 = vunpack.c.h.b16 %v3192
    %v3961 = vunpack.c.l.b16 %v3193
    %v3962 = vunpack.c.h.b16 %v3193
    %v3963 = vunpack.c.l.b16 %v3194
    %v3964 = vunpack.c.h.b16 %v3194
    %v3965 = vunpack.c.l.b16 %v3195
    %v3966 = vunpack.c.h.b16 %v3195
    %v3967 = vunpack.c.l.b16 %v3196
    %v3968 = vunpack.c.h.b16 %v3196
    %v3969 = vunpack.c.l.b16 %v3197
    %v3970 = vunpack.c.h.b16 %v3197
    %v3971 = vunpack.c.l.b16 %v3198
    %v3972 = vunpack.c.h.b16 %v3198
    %v3973 = vunpack.c.l.b16 %v3199
    %v3974 = vunpack.c.h.b16 %v3199
    %v3975 = vunpack.c.l.b16 %v3200
    %v3976 = vunpack.c.h.b16 %v3200
    %v3977 = vunpack.c.l.b16 %v3201
    %v3978 = vunpack.c.h.b16 %v3201
    %v3979 = vunpack.c.l.b16 %v3202
    %v3980 = vunpack.c.h.b16 %v3202
    %v3981 = vpack.c.b16 %v3473, %v3469
    %v3982 = vpack.c.b16 %v3474, %v3470
    %v3983 = vpack.c.b16 %v3475, %v3471
    %v3984 = vpack.c.b16 %v3476, %v3472
    %v3985 = vpack.c.b16 %v3481, %v3477
    %v3986 = vpack.c.b16 %v3482, %v3478
    %v3987 = vpack.c.b16 %v3483, %v3479
    %v3988 = vpack.c.b16 %v3484, %v3480
    %v3989 = vpack.c.b16 %v3489, %v3485
    %v3990 = vpack.c.b16 %v3490, %v3486
    %v3991 = vpack.c.b16 %v3491, %v3487
    %v3992 = vpack.c.b16 %v3492, %v3488
    %v3993 = vpack.c.b16 %v3497, %v3493
    %v3994 = vpack.c.b16 %v3498, %v3494
    %v3995 = vpack.c.b16 %v3499, %v3495
    %v3996 = vpack.c.b16 %v3500, %v3496
    %v3997 = vpack.c.b16 %v3505, %v3501
    %v3998 = vpack.c.b16 %v3506, %v3502
    %v3999 = vpack.c.b16 %v3507, %v3503
    %v4000 = vpack.c.b16 %v3508, %v3504
    %v4001 = vpack.c.b16 %v3513, %v3509
    %v4002 = vpack.c.b16 %v3514, %v3510
    %v4003 = vpack.c.b16 %v3515, %v3511
    %v4004 = vpack.c.b16 %v3516, %v3512
    %v4005 = vpack.c.b16 %v3521, %v3517
    %v4006 = vpack.c.b16 %v3522, %v3518
    %v4007 = vpack.c.b16 %v3523, %v3519
    %v4008 = vpack.c.b16 %v3524, %v3520
    %v4009 = vpack.c.b16 %v3529, %v3525
    %v4010 = vpack.c.b16 %v3530, %v3526
    %v4011 = vpack.c.b16 %v3531, %v3527
    %v4012 = vpack.c.b16 %v3532, %v3528
    %v4013 = vpack.c.b16 %v3537, %v3533
    %v4014 = vpack.c.b16 %v3538, %v3534
    %v4015 = vpack.c.b16 %v3539, %v3535
    %v4016 = vpack.c.b16 %v3540, %v3536
    %v4017 = vpack.c.b16 %v3545, %v3541
    %v4018 = vpack.c.b16 %v3546, %v3542
    %v4019 = vpack.c.b16 %v3547, %v3543
    %v4020 = vpack.c.b16 %v3548, %v3544
    %v4021 = vpack.c.b16 %v3553, %v3549
    %v4022 = vpack.c.b16 %v3554, %v3550
    %v4023 = vpack.c.b16 %v3555, %v3551
    %v4024 = vpack.c.b16 %v3556, %v3552
    %v4025 = vpack.c.b16 %v3561, %v3557
    %v4026 = vpack.c.b16 %v3562, %v3558
    %v4027 = vpack.c.b16 %v3563, %v3559
    %v4028 = vpack.c.b16 %v3564, %v3560
    %v4029 = vpack.c.b16 %v3569, %v3565
    %v4030 = vpack.c.b16 %v3570, %v3566
    %v4031 = vpack.c.b16 %v3571, %v3567
    %v4032 = vpack.c.b16 %v3572, %v3568
    %v4033 = vpack.c.b16 %v3577, %v3573
    %v4034 = vpack.c.b16 %v3578, %v3574
    %v4035 = vpack.c.b16 %v3579, %v3575
    %v4036 = vpack.c.b16 %v3580, %v3576
    %v4037 = vpack.c.b16 %v3585, %v3581
    %v4038 = vpack.c.b16 %v3586, %v3582
    %v4039 = vpack.c.b16 %v3587, %v3583
    %v4040 = vpack.c.b16 %v3588, %v3584
    %v4041 = vpack.c.b16 %v3593, %v3589
    %v4042 = vpack.c.b16 %v3594, %v3590
    %v4043 = vpack.c.b16 %v3595, %v3591
    %v4044 = vpack.c.b16 %v3596, %v3592
    %v4045 = vpack.c.b16 %v3601, %v3597
    %v4046 = vpack.c.b16 %v3602, %v3598
    %v4047 = vpack.c.b16 %v3603, %v3599
    %v4048 = vpack.c.b16 %v3604, %v3600
    %v4049 = vpack.c.b16 %v3609, %v3605
    %v4050 = vpack.c.b16 %v3610, %v3606
    %v4051 = vpack.c.b16 %v3611, %v3607
    %v4052 = vpack.c.b16 %v3612, %v3608
    %v4053 = vpack.c.b16 %v3617, %v3613
    %v4054 = vpack.c.b16 %v3618, %v3614
    %v4055 = vpack.c.b16 %v3619, %v3615
    %v4056 = vpack.c.b16 %v3620, %v3616
    %v4057 = vpack.c.b16 %v3625, %v3621
    %v4058 = vpack.c.b16 %v3626, %v3622
    %v4059 = vpack.c.b16 %v3627, %v3623
    %v4060 = vpack.c.b16 %v3628, %v3624
    %v4061 = vpack.c.b16 %v3633, %v3629
    %v4062 = vpack.c.b16 %v3634, %v3630
    %v4063 = vpack.c.b16 %v3635, %v3631
    %v4064 = vpack.c.b16 %v3636, %v3632
    %v4065 = vpack.c.b16 %v3641, %v3637
    %v4066 = vpack.c.b16 %v3642, %v3638
    %v4067 = vpack.c.b16 %v3643, %v3639
    %v4068 = vpack.c.b16 %v3644, %v3640
    %v4069 = vpack.c.b16 %v3649, %v3645
    %v4070 = vpack.c.b16 %v3650, %v3646
    %v4071 = vpack.c.b16 %v3651, %v3647
    %v4072 = vpack.c.b16 %v3652, %v3648
    %v4073 = vpack.c.b16 %v3657, %v3653
    %v4074 = vpack.c.b16 %v3658, %v3654
    %v4075 = vpack.c.b16 %v3659, %v3655
    %v4076 = vpack.c.b16 %v3660, %v3656
    %v4077 = vpack.c.b16 %v3665, %v3661
    %v4078 = vpack.c.b16 %v3666, %v3662
    %v4079 = vpack.c.b16 %v3667, %v3663
    %v4080 = vpack.c.b16 %v3668, %v3664
    %v4081 = vpack.c.b16 %v3673, %v3669
    %v4082 = vpack.c.b16 %v3674, %v3670
    %v4083 = vpack.c.b16 %v3675, %v3671
    %v4084 = vpack.c.b16 %v3676, %v3672
    %v4085 = vpack.c.b16 %v3681, %v3677
    %v4086 = vpack.c.b16 %v3682, %v3678
    %v4087 = vpack.c.b16 %v3683, %v3679
    %v4088 = vpack.c.b16 %v3684, %v3680
    %v4089 = vpack.c.b16 %v3689, %v3685
    %v4090 = vpack.c.b16 %v3690, %v3686
    %v4091 = vpack.c.b16 %v3691, %v3687
    %v4092 = vpack.c.b16 %v3692, %v3688
    %v4093 = vpack.c.b16 %v3697, %v3693
    %v4094 = vpack.c.b16 %v3698, %v3694
    %v4095 = vpack.c.b16 %v3699, %v3695
    %v4096 = vpack.c.b16 %v3700, %v3696
    %v4097 = vpack.c.b16 %v3705, %v3701
    %v4098 = vpack.c.b16 %v3706, %v3702
    %v4099 = vpack.c.b16 %v3707, %v3703
    %v4100 = vpack.c.b16 %v3708, %v3704
    %v4101 = vpack.c.b16 %v3713, %v3709
    %v4102 = vpack.c.b16 %v3714, %v3710
    %v4103 = vpack.c.b16 %v3715, %v3711
    %v4104 = vpack.c.b16 %v3716, %v3712
    %v4105 = vpack.c.b16 %v3721, %v3717
    %v4106 = vpack.c.b16 %v3722, %v3718
    %v4107 = vpack.c.b16 %v3723, %v3719
    %v4108 = vpack.c.b16 %v3724, %v3720
    %v4109 = vpack.c.b16 %v3729, %v3725
    %v4110 = vpack.c.b16 %v3730, %v3726
    %v4111 = vpack.c.b16 %v3731, %v3727
    %v4112 = vpack.c.b16 %v3732, %v3728
    %v4113 = vpack.c.b16 %v3737, %v3733
    %v4114 = vpack.c.b16 %v3738, %v3734
    %v4115 = vpack.c.b16 %v3739, %v3735
    %v4116 = vpack.c.b16 %v3740, %v3736
    %v4117 = vpack.c.b16 %v3745, %v3741
    %v4118 = vpack.c.b16 %v3746, %v3742
    %v4119 = vpack.c.b16 %v3747, %v3743
    %v4120 = vpack.c.b16 %v3748, %v3744
    %v4121 = vpack.c.b16 %v3753, %v3749
    %v4122 = vpack.c.b16 %v3754, %v3750
    %v4123 = vpack.c.b16 %v3755, %v3751
    %v4124 = vpack.c.b16 %v3756, %v3752
    %v4125 = vpack.c.b16 %v3761, %v3757
    %v4126 = vpack.c.b16 %v3762, %v3758
    %v4127 = vpack.c.b16 %v3763, %v3759
    %v4128 = vpack.c.b16 %v3764, %v3760
    %v4129 = vpack.c.b16 %v3769, %v3765
    %v4130 = vpack.c.b16 %v3770, %v3766
    %v4131 = vpack.c.b16 %v3771, %v3767
    %v4132 = vpack.c.b16 %v3772, %v3768
    %v4133 = vpack.c.b16 %v3777, %v3773
    %v4134 = vpack.c.b16 %v3778, %v3774
    %v4135 = vpack.c.b16 %v3779, %v3775
    %v4136 = vpack.c.b16 %v3780, %v3776
    %v4137 = vpack.c.b16 %v3785, %v3781
    %v4138 = vpack.c.b16 %v3786, %v3782
    %v4139 = vpack.c.b16 %v3787, %v3783
    %v4140 = vpack.c.b16 %v3788, %v3784
    %v4141 = vpack.c.b16 %v3793, %v3789
    %v4142 = vpack.c.b16 %v3794, %v3790
    %v4143 = vpack.c.b16 %v3795, %v3791
    %v4144 = vpack.c.b16 %v3796, %v3792
    %v4145 = vpack.c.b16 %v3801, %v3797
    %v4146 = vpack.c.b16 %v3802, %v3798
    %v4147 = vpack.c.b16 %v3803, %v3799
    %v4148 = vpack.c.b16 %v3804, %v3800
    %v4149 = vpack.c.b16 %v3809, %v3805
    %v4150 = vpack.c.b16 %v3810, %v3806
    %v4151 = vpack.c.b16 %v3811, %v3807
    %v4152 = vpack.c.b16 %v3812, %v3808
    %v4153 = vpack.c.b16 %v3817, %v3813
    %v4154 = vpack.c.b16 %v3818, %v3814
    %v4155 = vpack.c.b16 %v3819, %v3815
    %v4156 = vpack.c.b16 %v3820, %v3816
    %v4157 = vpack.c.b16 %v3825, %v3821
    %v4158 = vpack.c.b16 %v3826, %v3822
    %v4159 = vpack.c.b16 %v3827, %v3823
    %v4160 = vpack.c.b16 %v3828, %v3824
    %v4161 = vpack.c.b16 %v3833, %v3829
    %v4162 = vpack.c.b16 %v3834, %v3830
    %v4163 = vpack.c.b16 %v3835, %v3831
    %v4164 = vpack.c.b16 %v3836, %v3832
    %v4165 = vpack.c.b16 %v3841, %v3837
    %v4166 = vpack.c.b16 %v3842, %v3838
    %v4167 = vpack.c.b16 %v3843, %v3839
    %v4168 = vpack.c.b16 %v3844, %v3840
    %v4169 = vpack.c.b16 %v3849, %v3845
    %v4170 = vpack.c.b16 %v3850, %v3846
    %v4171 = vpack.c.b16 %v3851, %v3847
    %v4172 = vpack.c.b16 %v3852, %v3848
    %v4173 = vpack.c.b16 %v3857, %v3853
    %v4174 = vpack.c.b16 %v3858, %v3854
    %v4175 = vpack.c.b16 %v3859, %v3855
    %v4176 = vpack.c.b16 %v3860, %v3856
    %v4177 = vpack.c.b16 %v3865, %v3861
    %v4178 = vpack.c.b16 %v3866, %v3862
    %v4179 = vpack.c.b16 %v3867, %v3863
    %v4180 = vpack.c.b16 %v3868, %v3864
    %v4181 = vpack.c.b16 %v3873, %v3869
    %v4182 = vpack.c.b16 %v3874, %v3870
    %v4183 = vpack.c.b16 %v3875, %v3871
    %v4184 = vpack.c.b16 %v3876, %v3872
    %v4185 = vpack.c.b16 %v3881, %v3877
    %v4186 = vpack.c.b16 %v3882, %v3878
    %v4187 = vpack.c.b16 %v3883, %v3879
    %v4188 = vpack.c.b16 %v3884, %v3880
    %v4189 = vpack.c.b16 %v3889, %v3885
    %v4190 = vpack.c.b16 %v3890, %v3886
    %v4191 = vpack.c.b16 %v3891, %v3887
    %v4192 = vpack.c.b16 %v3892, %v3888
    %v4193 = vpack.c.b16 %v3897, %v3893
    %v4194 = vpack.c.b16 %v3898, %v3894
    %v4195 = vpack.c.b16 %v3899, %v3895
    %v4196 = vpack.c.b16 %v3900, %v3896
    %v4197 = vpack.c.b16 %v3905, %v3901
    %v4198 = vpack.c.b16 %v3906, %v3902
    %v4199 = vpack.c.b16 %v3907, %v3903
    %v4200 = vpack.c.b16 %v3908, %v3904
    %v4201 = vpack.c.b16 %v3913, %v3909
    %v4202 = vpack.c.b16 %v3914, %v3910
    %v4203 = vpack.c.b16 %v3915, %v3911
    %v4204 = vpack.c.b16 %v3916, %v3912
    %v4205 = vpack.c.b16 %v3921, %v3917
    %v4206 = vpack.c.b16 %v3922, %v3918
    %v4207 = vpack.c.b16 %v3923, %v3919
    %v4208 = vpack.c.b16 %v3924, %v3920
    %v4209 = vpack.c.b16 %v3929, %v3925
    %v4210 = vpack.c.b16 %v3930, %v3926
    %v4211 = vpack.c.b16 %v3931, %v3927
    %v4212 = vpack.c.b16 %v3932, %v3928
    %v4213 = vpack.c.b16 %v3937, %v3933
    %v4214 = vpack.c.b16 %v3938, %v3934
    %v4215 = vpack.c.b16 %v3939, %v3935
    %v4216 = vpack.c.b16 %v3940, %v3936
    %v4217 = vpack.c.b16 %v3945, %v3941
    %v4218 = vpack.c.b16 %v3946, %v3942
    %v4219 = vpack.c.b16 %v3947, %v3943
    %v4220 = vpack.c.b16 %v3948, %v3944
    %v4221 = vpack.c.b16 %v3953, %v3949
    %v4222 = vpack.c.b16 %v3954, %v3950
    %v4223 = vpack.c.b16 %v3955, %v3951
    %v4224 = vpack.c.b16 %v3956, %v3952
    %v4225 = vpack.c.b16 %v3961, %v3957
    %v4226 = vpack.c.b16 %v3962, %v3958
    %v4227 = vpack.c.b16 %v3963, %v3959
    %v4228 = vpack.c.b16 %v3964, %v3960
    %v4229 = vpack.c.b16 %v3969, %v3965
    %v4230 = vpack.c.b16 %v3970, %v3966
    %v4231 = vpack.c.b16 %v3971, %v3967
    %v4232 = vpack.c.b16 %v3972, %v3968
    %v4233 = vpack.c.b16 %v3977, %v3973
    %v4234 = vpack.c.b16 %v3978, %v3974
    %v4235 = vpack.c.b16 %v3979, %v3975
    %v4236 = vpack.c.b16 %v3980, %v3976
    %4493 = vmatpush.bf16.msra.mxu0 %v4009
    %4494 = vmatpush.bf16.msra.mxu0 %v4005
    %4495 = vmatpush.bf16.msra.mxu0 %v4001
    %4496 = vmatpush.bf16.msra.mxu0 %v3997
    %4497 = vmatpush.bf16.msra.mxu0 %v3993
    %4498 = vmatpush.bf16.msra.mxu0 %v3989
    %4499 = vmatpush.bf16.msra.mxu0 %v3985
    %4500 = vmatpush.bf16.msra.mxu0 %v3981
    %4501 = vmatmul.bf16.gmra.mxu0 %v2939
    %v4502 = vpop.f32.mrf.mxu0
    %v4503 = vadd.f32 %v3205, %v4502
    %v4504 = vpop.f32.mrf.mxu0
    %4505 = vdwg.mxu0
    %4506 = vmatpush.bf16.msra.mxu0 %v4041
    %4507 = vmatpush.bf16.msra.mxu0 %v4037
    %4508 = vmatpush.bf16.msra.mxu0 %v4033
    %4509 = vmatpush.bf16.msra.mxu0 %v4029
    %4510 = vmatpush.bf16.msra.mxu0 %v4025
    %4511 = vmatpush.bf16.msra.mxu0 %v4021
    %4512 = vmatpush.bf16.msra.mxu0 %v4017
    %4513 = vmatpush.bf16.msra.mxu0 %v4013
    %4514 = vmatmul.bf16.gmra.mxu0 %v2940
    %v4515 = vpop.f32.mrf.mxu0
    %v4516 = vadd.f32 %v4503, %v4515
    %v4517 = vpop.f32.mrf.mxu0
    %4518 = vdwg.mxu0
    %4519 = vmatpush.bf16.msra.mxu0 %v4073
    %4520 = vmatpush.bf16.msra.mxu0 %v4069
    %4521 = vmatpush.bf16.msra.mxu0 %v4065
    %4522 = vmatpush.bf16.msra.mxu0 %v4061
    %4523 = vmatpush.bf16.msra.mxu0 %v4057
    %4524 = vmatpush.bf16.msra.mxu0 %v4053
    %4525 = vmatpush.bf16.msra.mxu0 %v4049
    %4526 = vmatpush.bf16.msra.mxu0 %v4045
    %4527 = vmatmul.bf16.gmra.mxu0 %v2941
    %v4528 = vpop.f32.mrf.mxu0
    %v4529 = vadd.f32 %v4516, %v4528
    %v4530 = vpop.f32.mrf.mxu0
    %4531 = vdwg.mxu0
    %4532 = vmatpush.bf16.msra.mxu0 %v4105
    %4533 = vmatpush.bf16.msra.mxu0 %v4101
    %4534 = vmatpush.bf16.msra.mxu0 %v4097
    %4535 = vmatpush.bf16.msra.mxu0 %v4093
    %4536 = vmatpush.bf16.msra.mxu0 %v4089
    %4537 = vmatpush.bf16.msra.mxu0 %v4085
    %4538 = vmatpush.bf16.msra.mxu0 %v4081
    %4539 = vmatpush.bf16.msra.mxu0 %v4077
    %4540 = vmatmul.bf16.gmra.mxu0 %v2942
    %v4541 = vpop.f32.mrf.mxu0
    %v4542 = vadd.f32 %v4529, %v4541
    %v4543 = vpop.f32.mrf.mxu0
    %4544 = vdwg.mxu0
    %4545 = vmatpush.bf16.msra.mxu0 %v4137
    %4546 = vmatpush.bf16.msra.mxu0 %v4133
    %4547 = vmatpush.bf16.msra.mxu0 %v4129
    %4548 = vmatpush.bf16.msra.mxu0 %v4125
    %4549 = vmatpush.bf16.msra.mxu0 %v4121
    %4550 = vmatpush.bf16.msra.mxu0 %v4117
    %4551 = vmatpush.bf16.msra.mxu0 %v4113
    %4552 = vmatpush.bf16.msra.mxu0 %v4109
    %4553 = vmatmul.bf16.gmra.mxu0 %v2943
    %v4554 = vpop.f32.mrf.mxu0
    %v4555 = vadd.f32 %v4542, %v4554
    %v4556 = vpop.f32.mrf.mxu0
    %4557 = vdwg.mxu0
    %4558 = vmatpush.bf16.msra.mxu0 %v4169
    %4559 = vmatpush.bf16.msra.mxu0 %v4165
    %4560 = vmatpush.bf16.msra.mxu0 %v4161
    %4561 = vmatpush.bf16.msra.mxu0 %v4157
    %4562 = vmatpush.bf16.msra.mxu0 %v4153
    %4563 = vmatpush.bf16.msra.mxu0 %v4149
    %4564 = vmatpush.bf16.msra.mxu0 %v4145
    %4565 = vmatpush.bf16.msra.mxu0 %v4141
    %4566 = vmatmul.bf16.gmra.mxu0 %v2944
    %v4567 = vpop.f32.mrf.mxu0
    %v4568 = vadd.f32 %v4555, %v4567
    %v4569 = vpop.f32.mrf.mxu0
    %4570 = vdwg.mxu0
    %4571 = vmatpush.bf16.msra.mxu0 %v4201
    %4572 = vmatpush.bf16.msra.mxu0 %v4197
    %4573 = vmatpush.bf16.msra.mxu0 %v4193
    %4574 = vmatpush.bf16.msra.mxu0 %v4189
    %4575 = vmatpush.bf16.msra.mxu0 %v4185
    %4576 = vmatpush.bf16.msra.mxu0 %v4181
    %4577 = vmatpush.bf16.msra.mxu0 %v4177
    %4578 = vmatpush.bf16.msra.mxu0 %v4173
    %4579 = vmatmul.bf16.gmra.mxu0 %v2945
    %v4580 = vpop.f32.mrf.mxu0
    %v4581 = vadd.f32 %v4568, %v4580
    %v4582 = vpop.f32.mrf.mxu0
    %4583 = vdwg.mxu0
    %4584 = vmatpush.bf16.msra.mxu0 %v4233
    %4585 = vmatpush.bf16.msra.mxu0 %v4229
    %4586 = vmatpush.bf16.msra.mxu0 %v4225
    %4587 = vmatpush.bf16.msra.mxu0 %v4221
    %4588 = vmatpush.bf16.msra.mxu0 %v4217
    %4589 = vmatpush.bf16.msra.mxu0 %v4213
    %4590 = vmatpush.bf16.msra.mxu0 %v4209
    %4591 = vmatpush.bf16.msra.mxu0 %v4205
    %4592 = vmatmul.bf16.gmra.mxu0 %v2946
    %v4593 = vpop.f32.mrf.mxu0
    %v4594 = vadd.f32 %v4581, %v4593
    %v4595 = vpop.f32.mrf.mxu0
    %4596 = vdwg.mxu0
    %4597 = vmatpush.bf16.msra.mxu0 %v4010
    %4598 = vmatpush.bf16.msra.mxu0 %v4006
    %4599 = vmatpush.bf16.msra.mxu0 %v4002
    %4600 = vmatpush.bf16.msra.mxu0 %v3998
    %4601 = vmatpush.bf16.msra.mxu0 %v3994
    %4602 = vmatpush.bf16.msra.mxu0 %v3990
    %4603 = vmatpush.bf16.msra.mxu0 %v3986
    %4604 = vmatpush.bf16.msra.mxu0 %v3982
    %4605 = vmatmul.bf16.gmra.mxu0 %v2939
    %v4606 = vpop.f32.mrf.mxu0
    %v4607 = vadd.f32 %v3206, %v4606
    %v4608 = vpop.f32.mrf.mxu0
    %4609 = vdwg.mxu0
    %4610 = vmatpush.bf16.msra.mxu0 %v4042
    %4611 = vmatpush.bf16.msra.mxu0 %v4038
    %4612 = vmatpush.bf16.msra.mxu0 %v4034
    %4613 = vmatpush.bf16.msra.mxu0 %v4030
    %4614 = vmatpush.bf16.msra.mxu0 %v4026
    %4615 = vmatpush.bf16.msra.mxu0 %v4022
    %4616 = vmatpush.bf16.msra.mxu0 %v4018
    %4617 = vmatpush.bf16.msra.mxu0 %v4014
    %4618 = vmatmul.bf16.gmra.mxu0 %v2940
    %v4619 = vpop.f32.mrf.mxu0
    %v4620 = vadd.f32 %v4607, %v4619
    %v4621 = vpop.f32.mrf.mxu0
    %4622 = vdwg.mxu0
    %4623 = vmatpush.bf16.msra.mxu0 %v4074
    %4624 = vmatpush.bf16.msra.mxu0 %v4070
    %4625 = vmatpush.bf16.msra.mxu0 %v4066
    %4626 = vmatpush.bf16.msra.mxu0 %v4062
    %4627 = vmatpush.bf16.msra.mxu0 %v4058
    %4628 = vmatpush.bf16.msra.mxu0 %v4054
    %4629 = vmatpush.bf16.msra.mxu0 %v4050
    %4630 = vmatpush.bf16.msra.mxu0 %v4046
    %4631 = vmatmul.bf16.gmra.mxu0 %v2941
    %v4632 = vpop.f32.mrf.mxu0
    %v4633 = vadd.f32 %v4620, %v4632
    %v4634 = vpop.f32.mrf.mxu0
    %4635 = vdwg.mxu0
    %4636 = vmatpush.bf16.msra.mxu0 %v4106
    %4637 = vmatpush.bf16.msra.mxu0 %v4102
    %4638 = vmatpush.bf16.msra.mxu0 %v4098
    %4639 = vmatpush.bf16.msra.mxu0 %v4094
    %4640 = vmatpush.bf16.msra.mxu0 %v4090
    %4641 = vmatpush.bf16.msra.mxu0 %v4086
    %4642 = vmatpush.bf16.msra.mxu0 %v4082
    %4643 = vmatpush.bf16.msra.mxu0 %v4078
    %4644 = vmatmul.bf16.gmra.mxu0 %v2942
    %v4645 = vpop.f32.mrf.mxu0
    %v4646 = vadd.f32 %v4633, %v4645
    %v4647 = vpop.f32.mrf.mxu0
    %4648 = vdwg.mxu0
    %4649 = vmatpush.bf16.msra.mxu0 %v4138
    %4650 = vmatpush.bf16.msra.mxu0 %v4134
    %4651 = vmatpush.bf16.msra.mxu0 %v4130
    %4652 = vmatpush.bf16.msra.mxu0 %v4126
    %4653 = vmatpush.bf16.msra.mxu0 %v4122
    %4654 = vmatpush.bf16.msra.mxu0 %v4118
    %4655 = vmatpush.bf16.msra.mxu0 %v4114
    %4656 = vmatpush.bf16.msra.mxu0 %v4110
    %4657 = vmatmul.bf16.gmra.mxu0 %v2943
    %v4658 = vpop.f32.mrf.mxu0
    %v4659 = vadd.f32 %v4646, %v4658
    %v4660 = vpop.f32.mrf.mxu0
    %4661 = vdwg.mxu0
    %4662 = vmatpush.bf16.msra.mxu0 %v4170
    %4663 = vmatpush.bf16.msra.mxu0 %v4166
    %4664 = vmatpush.bf16.msra.mxu0 %v4162
    %4665 = vmatpush.bf16.msra.mxu0 %v4158
    %4666 = vmatpush.bf16.msra.mxu0 %v4154
    %4667 = vmatpush.bf16.msra.mxu0 %v4150
    %4668 = vmatpush.bf16.msra.mxu0 %v4146
    %4669 = vmatpush.bf16.msra.mxu0 %v4142
    %4670 = vmatmul.bf16.gmra.mxu0 %v2944
    %v4671 = vpop.f32.mrf.mxu0
    %v4672 = vadd.f32 %v4659, %v4671
    %v4673 = vpop.f32.mrf.mxu0
    %4674 = vdwg.mxu0
    %4675 = vmatpush.bf16.msra.mxu0 %v4202
    %4676 = vmatpush.bf16.msra.mxu0 %v4198
    %4677 = vmatpush.bf16.msra.mxu0 %v4194
    %4678 = vmatpush.bf16.msra.mxu0 %v4190
    %4679 = vmatpush.bf16.msra.mxu0 %v4186
    %4680 = vmatpush.bf16.msra.mxu0 %v4182
    %4681 = vmatpush.bf16.msra.mxu0 %v4178
    %4682 = vmatpush.bf16.msra.mxu0 %v4174
    %4683 = vmatmul.bf16.gmra.mxu0 %v2945
    %v4684 = vpop.f32.mrf.mxu0
    %v4685 = vadd.f32 %v4672, %v4684
    %v4686 = vpop.f32.mrf.mxu0
    %4687 = vdwg.mxu0
    %4688 = vmatpush.bf16.msra.mxu0 %v4234
    %4689 = vmatpush.bf16.msra.mxu0 %v4230
    %4690 = vmatpush.bf16.msra.mxu0 %v4226
    %4691 = vmatpush.bf16.msra.mxu0 %v4222
    %4692 = vmatpush.bf16.msra.mxu0 %v4218
    %4693 = vmatpush.bf16.msra.mxu0 %v4214
    %4694 = vmatpush.bf16.msra.mxu0 %v4210
    %4695 = vmatpush.bf16.msra.mxu0 %v4206
    %4696 = vmatmul.bf16.gmra.mxu0 %v2946
    %v4697 = vpop.f32.mrf.mxu0
    %v4698 = vadd.f32 %v4685, %v4697
    %v4699 = vpop.f32.mrf.mxu0
    %4700 = vdwg.mxu0
    %4701 = vmatpush.bf16.msra.mxu0 %v4011
    %4702 = vmatpush.bf16.msra.mxu0 %v4007
    %4703 = vmatpush.bf16.msra.mxu0 %v4003
    %4704 = vmatpush.bf16.msra.mxu0 %v3999
    %4705 = vmatpush.bf16.msra.mxu0 %v3995
    %4706 = vmatpush.bf16.msra.mxu0 %v3991
    %4707 = vmatpush.bf16.msra.mxu0 %v3987
    %4708 = vmatpush.bf16.msra.mxu0 %v3983
    %4709 = vmatmul.bf16.gmra.mxu0 %v2939
    %v4710 = vpop.f32.mrf.mxu0
    %v4711 = vadd.f32 %v3207, %v4710
    %v4712 = vpop.f32.mrf.mxu0
    %4713 = vdwg.mxu0
    %4714 = vmatpush.bf16.msra.mxu0 %v4043
    %4715 = vmatpush.bf16.msra.mxu0 %v4039
    %4716 = vmatpush.bf16.msra.mxu0 %v4035
    %4717 = vmatpush.bf16.msra.mxu0 %v4031
    %4718 = vmatpush.bf16.msra.mxu0 %v4027
    %4719 = vmatpush.bf16.msra.mxu0 %v4023
    %4720 = vmatpush.bf16.msra.mxu0 %v4019
    %4721 = vmatpush.bf16.msra.mxu0 %v4015
    %4722 = vmatmul.bf16.gmra.mxu0 %v2940
    %v4723 = vpop.f32.mrf.mxu0
    %v4724 = vadd.f32 %v4711, %v4723
    %v4725 = vpop.f32.mrf.mxu0
    %4726 = vdwg.mxu0
    %4727 = vmatpush.bf16.msra.mxu0 %v4075
    %4728 = vmatpush.bf16.msra.mxu0 %v4071
    %4729 = vmatpush.bf16.msra.mxu0 %v4067
    %4730 = vmatpush.bf16.msra.mxu0 %v4063
    %4731 = vmatpush.bf16.msra.mxu0 %v4059
    %4732 = vmatpush.bf16.msra.mxu0 %v4055
    %4733 = vmatpush.bf16.msra.mxu0 %v4051
    %4734 = vmatpush.bf16.msra.mxu0 %v4047
    %4735 = vmatmul.bf16.gmra.mxu0 %v2941
    %v4736 = vpop.f32.mrf.mxu0
    %v4737 = vadd.f32 %v4724, %v4736
    %v4738 = vpop.f32.mrf.mxu0
    %4739 = vdwg.mxu0
    %4740 = vmatpush.bf16.msra.mxu0 %v4107
    %4741 = vmatpush.bf16.msra.mxu0 %v4103
    %4742 = vmatpush.bf16.msra.mxu0 %v4099
    %4743 = vmatpush.bf16.msra.mxu0 %v4095
    %4744 = vmatpush.bf16.msra.mxu0 %v4091
    %4745 = vmatpush.bf16.msra.mxu0 %v4087
    %4746 = vmatpush.bf16.msra.mxu0 %v4083
    %4747 = vmatpush.bf16.msra.mxu0 %v4079
    %4748 = vmatmul.bf16.gmra.mxu0 %v2942
    %v4749 = vpop.f32.mrf.mxu0
    %v4750 = vadd.f32 %v4737, %v4749
    %v4751 = vpop.f32.mrf.mxu0
    %4752 = vdwg.mxu0
    %4753 = vmatpush.bf16.msra.mxu0 %v4139
    %4754 = vmatpush.bf16.msra.mxu0 %v4135
    %4755 = vmatpush.bf16.msra.mxu0 %v4131
    %4756 = vmatpush.bf16.msra.mxu0 %v4127
    %4757 = vmatpush.bf16.msra.mxu0 %v4123
    %4758 = vmatpush.bf16.msra.mxu0 %v4119
    %4759 = vmatpush.bf16.msra.mxu0 %v4115
    %4760 = vmatpush.bf16.msra.mxu0 %v4111
    %4761 = vmatmul.bf16.gmra.mxu0 %v2943
    %v4762 = vpop.f32.mrf.mxu0
    %v4763 = vadd.f32 %v4750, %v4762
    %v4764 = vpop.f32.mrf.mxu0
    %4765 = vdwg.mxu0
    %4766 = vmatpush.bf16.msra.mxu0 %v4171
    %4767 = vmatpush.bf16.msra.mxu0 %v4167
    %4768 = vmatpush.bf16.msra.mxu0 %v4163
    %4769 = vmatpush.bf16.msra.mxu0 %v4159
    %4770 = vmatpush.bf16.msra.mxu0 %v4155
    %4771 = vmatpush.bf16.msra.mxu0 %v4151
    %4772 = vmatpush.bf16.msra.mxu0 %v4147
    %4773 = vmatpush.bf16.msra.mxu0 %v4143
    %4774 = vmatmul.bf16.gmra.mxu0 %v2944
    %v4775 = vpop.f32.mrf.mxu0
    %v4776 = vadd.f32 %v4763, %v4775
    %v4777 = vpop.f32.mrf.mxu0
    %4778 = vdwg.mxu0
    %4779 = vmatpush.bf16.msra.mxu0 %v4203
    %4780 = vmatpush.bf16.msra.mxu0 %v4199
    %4781 = vmatpush.bf16.msra.mxu0 %v4195
    %4782 = vmatpush.bf16.msra.mxu0 %v4191
    %4783 = vmatpush.bf16.msra.mxu0 %v4187
    %4784 = vmatpush.bf16.msra.mxu0 %v4183
    %4785 = vmatpush.bf16.msra.mxu0 %v4179
    %4786 = vmatpush.bf16.msra.mxu0 %v4175
    %4787 = vmatmul.bf16.gmra.mxu0 %v2945
    %v4788 = vpop.f32.mrf.mxu0
    %v4789 = vadd.f32 %v4776, %v4788
    %v4790 = vpop.f32.mrf.mxu0
    %4791 = vdwg.mxu0
    %4792 = vmatpush.bf16.msra.mxu0 %v4235
    %4793 = vmatpush.bf16.msra.mxu0 %v4231
    %4794 = vmatpush.bf16.msra.mxu0 %v4227
    %4795 = vmatpush.bf16.msra.mxu0 %v4223
    %4796 = vmatpush.bf16.msra.mxu0 %v4219
    %4797 = vmatpush.bf16.msra.mxu0 %v4215
    %4798 = vmatpush.bf16.msra.mxu0 %v4211
    %4799 = vmatpush.bf16.msra.mxu0 %v4207
    %4800 = vmatmul.bf16.gmra.mxu0 %v2946
    %v4801 = vpop.f32.mrf.mxu0
    %v4802 = vadd.f32 %v4789, %v4801
    %v4803 = vpop.f32.mrf.mxu0
    %4804 = vdwg.mxu0
    %4805 = vmatpush.bf16.msra.mxu0 %v4012
    %4806 = vmatpush.bf16.msra.mxu0 %v4008
    %4807 = vmatpush.bf16.msra.mxu0 %v4004
    %4808 = vmatpush.bf16.msra.mxu0 %v4000
    %4809 = vmatpush.bf16.msra.mxu0 %v3996
    %4810 = vmatpush.bf16.msra.mxu0 %v3992
    %4811 = vmatpush.bf16.msra.mxu0 %v3988
    %4812 = vmatpush.bf16.msra.mxu0 %v3984
    %4813 = vmatmul.bf16.gmra.mxu0 %v2939
    %v4814 = vpop.f32.mrf.mxu0
    %v4815 = vadd.f32 %v3208, %v4814
    %v4816 = vpop.f32.mrf.mxu0
    %4817 = vdwg.mxu0
    %4818 = vmatpush.bf16.msra.mxu0 %v4044
    %4819 = vmatpush.bf16.msra.mxu0 %v4040
    %4820 = vmatpush.bf16.msra.mxu0 %v4036
    %4821 = vmatpush.bf16.msra.mxu0 %v4032
    %4822 = vmatpush.bf16.msra.mxu0 %v4028
    %4823 = vmatpush.bf16.msra.mxu0 %v4024
    %4824 = vmatpush.bf16.msra.mxu0 %v4020
    %4825 = vmatpush.bf16.msra.mxu0 %v4016
    %4826 = vmatmul.bf16.gmra.mxu0 %v2940
    %v4827 = vpop.f32.mrf.mxu0
    %v4828 = vadd.f32 %v4815, %v4827
    %v4829 = vpop.f32.mrf.mxu0
    %4830 = vdwg.mxu0
    %4831 = vmatpush.bf16.msra.mxu0 %v4076
    %4832 = vmatpush.bf16.msra.mxu0 %v4072
    %4833 = vmatpush.bf16.msra.mxu0 %v4068
    %4834 = vmatpush.bf16.msra.mxu0 %v4064
    %4835 = vmatpush.bf16.msra.mxu0 %v4060
    %4836 = vmatpush.bf16.msra.mxu0 %v4056
    %4837 = vmatpush.bf16.msra.mxu0 %v4052
    %4838 = vmatpush.bf16.msra.mxu0 %v4048
    %4839 = vmatmul.bf16.gmra.mxu0 %v2941
    %v4840 = vpop.f32.mrf.mxu0
    %v4841 = vadd.f32 %v4828, %v4840
    %v4842 = vpop.f32.mrf.mxu0
    %4843 = vdwg.mxu0
    %4844 = vmatpush.bf16.msra.mxu0 %v4108
    %4845 = vmatpush.bf16.msra.mxu0 %v4104
    %4846 = vmatpush.bf16.msra.mxu0 %v4100
    %4847 = vmatpush.bf16.msra.mxu0 %v4096
    %4848 = vmatpush.bf16.msra.mxu0 %v4092
    %4849 = vmatpush.bf16.msra.mxu0 %v4088
    %4850 = vmatpush.bf16.msra.mxu0 %v4084
    %4851 = vmatpush.bf16.msra.mxu0 %v4080
    %4852 = vmatmul.bf16.gmra.mxu0 %v2942
    %v4853 = vpop.f32.mrf.mxu0
    %v4854 = vadd.f32 %v4841, %v4853
    %v4855 = vpop.f32.mrf.mxu0
    %4856 = vdwg.mxu0
    %4857 = vmatpush.bf16.msra.mxu0 %v4140
    %4858 = vmatpush.bf16.msra.mxu0 %v4136
    %4859 = vmatpush.bf16.msra.mxu0 %v4132
    %4860 = vmatpush.bf16.msra.mxu0 %v4128
    %4861 = vmatpush.bf16.msra.mxu0 %v4124
    %4862 = vmatpush.bf16.msra.mxu0 %v4120
    %4863 = vmatpush.bf16.msra.mxu0 %v4116
    %4864 = vmatpush.bf16.msra.mxu0 %v4112
    %4865 = vmatmul.bf16.gmra.mxu0 %v2943
    %v4866 = vpop.f32.mrf.mxu0
    %v4867 = vadd.f32 %v4854, %v4866
    %v4868 = vpop.f32.mrf.mxu0
    %4869 = vdwg.mxu0
    %4870 = vmatpush.bf16.msra.mxu0 %v4172
    %4871 = vmatpush.bf16.msra.mxu0 %v4168
    %4872 = vmatpush.bf16.msra.mxu0 %v4164
    %4873 = vmatpush.bf16.msra.mxu0 %v4160
    %4874 = vmatpush.bf16.msra.mxu0 %v4156
    %4875 = vmatpush.bf16.msra.mxu0 %v4152
    %4876 = vmatpush.bf16.msra.mxu0 %v4148
    %4877 = vmatpush.bf16.msra.mxu0 %v4144
    %4878 = vmatmul.bf16.gmra.mxu0 %v2944
    %v4879 = vpop.f32.mrf.mxu0
    %v4880 = vadd.f32 %v4867, %v4879
    %v4881 = vpop.f32.mrf.mxu0
    %4882 = vdwg.mxu0
    %4883 = vmatpush.bf16.msra.mxu0 %v4204
    %4884 = vmatpush.bf16.msra.mxu0 %v4200
    %4885 = vmatpush.bf16.msra.mxu0 %v4196
    %4886 = vmatpush.bf16.msra.mxu0 %v4192
    %4887 = vmatpush.bf16.msra.mxu0 %v4188
    %4888 = vmatpush.bf16.msra.mxu0 %v4184
    %4889 = vmatpush.bf16.msra.mxu0 %v4180
    %4890 = vmatpush.bf16.msra.mxu0 %v4176
    %4891 = vmatmul.bf16.gmra.mxu0 %v2945
    %v4892 = vpop.f32.mrf.mxu0
    %v4893 = vadd.f32 %v4880, %v4892
    %v4894 = vpop.f32.mrf.mxu0
    %4895 = vdwg.mxu0
    %4896 = vmatpush.bf16.msra.mxu0 %v4236
    %4897 = vmatpush.bf16.msra.mxu0 %v4232
    %4898 = vmatpush.bf16.msra.mxu0 %v4228
    %4899 = vmatpush.bf16.msra.mxu0 %v4224
    %4900 = vmatpush.bf16.msra.mxu0 %v4220
    %4901 = vmatpush.bf16.msra.mxu0 %v4216
    %4902 = vmatpush.bf16.msra.mxu0 %v4212
    %4903 = vmatpush.bf16.msra.mxu0 %v4208
    %4904 = vmatmul.bf16.gmra.mxu0 %v2946
    %v4905 = vpop.f32.mrf.mxu0
    %v4906 = vadd.f32 %v4893, %v4905
    %v4907 = vpop.f32.mrf.mxu0
    %4908 = vdwg.mxu0
    %v4909 = vpack.c.bf16 %v4698, %v4594
    %v4910 = vpack.c.bf16 %v4906, %v4802
    %v4911 = vunpack.c.l.bf16 %v4909
    %v4912 = vunpack.c.h.bf16 %v4909
    %v4913 = vunpack.c.l.bf16 %v4910
    %v4914 = vunpack.c.h.bf16 %v4910
    %v4915 = vmul.f32 %v4911, 0.010009766
    %v4916 = vmul.f32 %v4912, 0.010009766
    %v4917 = vmul.f32 %v4913, 0.010009766
    %v4918 = vmul.f32 %v4914, 0.010009766
    %v4919 = vpack.c.bf16 %v4916, %v4915
    %v4920 = vpack.c.bf16 %v4918, %v4917
    %v4921 = vunpack.c.l.bf16 %v4919
    %v4922 = vunpack.c.h.bf16 %v4919
    %v4923 = vunpack.c.l.bf16 %v4920
    %v4924 = vunpack.c.h.bf16 %v4920
    %v4925 = vmax.f32 %v4911, %v4921
    %v4926 = vmax.f32 %v4912, %v4922
    %v4927 = vmax.f32 %v4913, %v4923
    %v4928 = vmax.f32 %v4914, %v4924
    %v4929 = vpack.c.bf16 %v4925, %v4925
    %v4930 = vpack.c.bf16 %v4926, %v4926
    %v4931 = vpack.c.bf16 %v4927, %v4927
    %v4932 = vpack.c.bf16 %v4928, %v4928
    %v4933 = vld [vmem:[#allocation14] sm:$0xff]
    %v4934 = vld [vmem:[#allocation14 + $0x8] sm:$0xff]
    %v4935 = vld [vmem:[#allocation14 + $0x10] sm:$0xff]
    %v4936 = vld [vmem:[#allocation14 + $0x18] sm:$0xff]
    %v4937 = vld [vmem:[#allocation14 + $0x20] sm:$0xff]
    %v4938 = vld [vmem:[#allocation14 + $0x28] sm:$0xff]
    %v4939 = vld [vmem:[#allocation14 + $0x30] sm:$0xff]
    %v4940 = vld [vmem:[#allocation14 + $0x38] sm:$0xff]
    %v4941 = vld [vmem:[#allocation14 + $0x40] sm:$0xff]
    %v4942 = vld [vmem:[#allocation14 + $0x48] sm:$0xff]
    %v4943 = vld [vmem:[#allocation14 + $0x50] sm:$0xff]
    %v4944 = vld [vmem:[#allocation14 + $0x58] sm:$0xff]
    %v4945 = vld [vmem:[#allocation14 + $0x60] sm:$0xff]
    %v4946 = vld [vmem:[#allocation14 + $0x68] sm:$0xff]
    %v4947 = vld [vmem:[#allocation14 + $0x70] sm:$0xff]
    %v4948 = vld [vmem:[#allocation14 + $0x78] sm:$0xff]
    %v4949 = vld [vmem:[#allocation14 + $0x80] sm:$0xff]
    %v4950 = vld [vmem:[#allocation14 + $0x88] sm:$0xff]
    %v4951 = vld [vmem:[#allocation14 + $0x90] sm:$0xff]
    %v4952 = vld [vmem:[#allocation14 + $0x98] sm:$0xff]
    %v4953 = vld [vmem:[#allocation14 + $0xa0] sm:$0xff]
    %v4954 = vld [vmem:[#allocation14 + $0xa8] sm:$0xff]
    %v4955 = vld [vmem:[#allocation14 + $0xb0] sm:$0xff]
    %v4956 = vld [vmem:[#allocation14 + $0xb8] sm:$0xff]
    %v4957 = vld [vmem:[#allocation14 + $0xc0] sm:$0xff]
    %v4958 = vld [vmem:[#allocation14 + $0xc8] sm:$0xff]
    %v4959 = vld [vmem:[#allocation14 + $0xd0] sm:$0xff]
    %v4960 = vld [vmem:[#allocation14 + $0xd8] sm:$0xff]
    %v4961 = vld [vmem:[#allocation14 + $0xe0] sm:$0xff]
    %v4962 = vld [vmem:[#allocation14 + $0xe8] sm:$0xff]
    %v4963 = vld [vmem:[#allocation14 + $0xf0] sm:$0xff]
    %v4964 = vld [vmem:[#allocation14 + $0xf8] sm:$0xff]
    %v4965 = vld [vmem:[#allocation14 + $0x100] sm:$0xff]
    %v4966 = vld [vmem:[#allocation14 + $0x108] sm:$0xff]
    %v4967 = vld [vmem:[#allocation14 + $0x110] sm:$0xff]
    %v4968 = vld [vmem:[#allocation14 + $0x118] sm:$0xff]
    %v4969 = vld [vmem:[#allocation14 + $0x120] sm:$0xff]
    %v4970 = vld [vmem:[#allocation14 + $0x128] sm:$0xff]
    %v4971 = vld [vmem:[#allocation14 + $0x130] sm:$0xff]
    %v4972 = vld [vmem:[#allocation14 + $0x138] sm:$0xff]
    %v4973 = vld [vmem:[#allocation14 + $0x140] sm:$0xff]
    %v4974 = vld [vmem:[#allocation14 + $0x148] sm:$0xff]
    %v4975 = vld [vmem:[#allocation14 + $0x150] sm:$0xff]
    %v4976 = vld [vmem:[#allocation14 + $0x158] sm:$0xff]
    %v4977 = vld [vmem:[#allocation14 + $0x160] sm:$0xff]
    %v4978 = vld [vmem:[#allocation14 + $0x168] sm:$0xff]
    %v4979 = vld [vmem:[#allocation14 + $0x170] sm:$0xff]
    %v4980 = vld [vmem:[#allocation14 + $0x178] sm:$0xff]
    %v4981 = vld [vmem:[#allocation14 + $0x180] sm:$0xff]
    %v4982 = vld [vmem:[#allocation14 + $0x188] sm:$0xff]
    %v4983 = vld [vmem:[#allocation14 + $0x190] sm:$0xff]
    %v4984 = vld [vmem:[#allocation14 + $0x198] sm:$0xff]
    %v4985 = vld [vmem:[#allocation14 + $0x1a0] sm:$0xff]
    %v4986 = vld [vmem:[#allocation14 + $0x1a8] sm:$0xff]
    %v4987 = vld [vmem:[#allocation14 + $0x1b0] sm:$0xff]
    %v4988 = vld [vmem:[#allocation14 + $0x1b8] sm:$0xff]
    %v4989 = vld [vmem:[#allocation14 + $0x1c0] sm:$0xff]
    %v4990 = vld [vmem:[#allocation14 + $0x1c8] sm:$0xff]
    %v4991 = vld [vmem:[#allocation14 + $0x1d0] sm:$0xff]
    %v4992 = vld [vmem:[#allocation14 + $0x1d8] sm:$0xff]
    %v4993 = vld [vmem:[#allocation14 + $0x1e0] sm:$0xff]
    %v4994 = vld [vmem:[#allocation14 + $0x1e8] sm:$0xff]
    %v4995 = vld [vmem:[#allocation14 + $0x1f0] sm:$0xff]
    %v4996 = vld [vmem:[#allocation14 + $0x1f8] sm:$0xff]
    %v4997 = vld [vmem:[#allocation14 + $0x200] sm:$0xff]
    %v4998 = vld [vmem:[#allocation14 + $0x208] sm:$0xff]
    %v4999 = vld [vmem:[#allocation14 + $0x210] sm:$0xff]
    %v5000 = vld [vmem:[#allocation14 + $0x218] sm:$0xff]
    %v5001 = vld [vmem:[#allocation14 + $0x220] sm:$0xff]
    %v5002 = vld [vmem:[#allocation14 + $0x228] sm:$0xff]
    %v5003 = vld [vmem:[#allocation14 + $0x230] sm:$0xff]
    %v5004 = vld [vmem:[#allocation14 + $0x238] sm:$0xff]
    %v5005 = vld [vmem:[#allocation14 + $0x240] sm:$0xff]
    %v5006 = vld [vmem:[#allocation14 + $0x248] sm:$0xff]
    %v5007 = vld [vmem:[#allocation14 + $0x250] sm:$0xff]
    %v5008 = vld [vmem:[#allocation14 + $0x258] sm:$0xff]
    %v5009 = vld [vmem:[#allocation14 + $0x260] sm:$0xff]
    %v5010 = vld [vmem:[#allocation14 + $0x268] sm:$0xff]
    %v5011 = vld [vmem:[#allocation14 + $0x270] sm:$0xff]
    %v5012 = vld [vmem:[#allocation14 + $0x278] sm:$0xff]
    %v5013 = vld [vmem:[#allocation14 + $0x280] sm:$0xff]
    %v5014 = vld [vmem:[#allocation14 + $0x288] sm:$0xff]
    %v5015 = vld [vmem:[#allocation14 + $0x290] sm:$0xff]
    %v5016 = vld [vmem:[#allocation14 + $0x298] sm:$0xff]
    %v5017 = vld [vmem:[#allocation14 + $0x2a0] sm:$0xff]
    %v5018 = vld [vmem:[#allocation14 + $0x2a8] sm:$0xff]
    %v5019 = vld [vmem:[#allocation14 + $0x2b0] sm:$0xff]
    %v5020 = vld [vmem:[#allocation14 + $0x2b8] sm:$0xff]
    %v5021 = vld [vmem:[#allocation14 + $0x2c0] sm:$0xff]
    %v5022 = vld [vmem:[#allocation14 + $0x2c8] sm:$0xff]
    %v5023 = vld [vmem:[#allocation14 + $0x2d0] sm:$0xff]
    %v5024 = vld [vmem:[#allocation14 + $0x2d8] sm:$0xff]
    %v5025 = vld [vmem:[#allocation14 + $0x2e0] sm:$0xff]
    %v5026 = vld [vmem:[#allocation14 + $0x2e8] sm:$0xff]
    %v5027 = vld [vmem:[#allocation14 + $0x2f0] sm:$0xff]
    %v5028 = vld [vmem:[#allocation14 + $0x2f8] sm:$0xff]
    %v5029 = vld [vmem:[#allocation14 + $0x300] sm:$0xff]
    %v5030 = vld [vmem:[#allocation14 + $0x308] sm:$0xff]
    %v5031 = vld [vmem:[#allocation14 + $0x310] sm:$0xff]
    %v5032 = vld [vmem:[#allocation14 + $0x318] sm:$0xff]
    %v5033 = vld [vmem:[#allocation14 + $0x320] sm:$0xff]
    %v5034 = vld [vmem:[#allocation14 + $0x328] sm:$0xff]
    %v5035 = vld [vmem:[#allocation14 + $0x330] sm:$0xff]
    %v5036 = vld [vmem:[#allocation14 + $0x338] sm:$0xff]
    %v5037 = vld [vmem:[#allocation14 + $0x340] sm:$0xff]
    %v5038 = vld [vmem:[#allocation14 + $0x348] sm:$0xff]
    %v5039 = vld [vmem:[#allocation14 + $0x350] sm:$0xff]
    %v5040 = vld [vmem:[#allocation14 + $0x358] sm:$0xff]
    %v5041 = vld [vmem:[#allocation14 + $0x360] sm:$0xff]
    %v5042 = vld [vmem:[#allocation14 + $0x368] sm:$0xff]
    %v5043 = vld [vmem:[#allocation14 + $0x370] sm:$0xff]
    %v5044 = vld [vmem:[#allocation14 + $0x378] sm:$0xff]
    %v5045 = vld [vmem:[#allocation14 + $0x380] sm:$0xff]
    %v5046 = vld [vmem:[#allocation14 + $0x388] sm:$0xff]
    %v5047 = vld [vmem:[#allocation14 + $0x390] sm:$0xff]
    %v5048 = vld [vmem:[#allocation14 + $0x398] sm:$0xff]
    %v5049 = vld [vmem:[#allocation14 + $0x3a0] sm:$0xff]
    %v5050 = vld [vmem:[#allocation14 + $0x3a8] sm:$0xff]
    %v5051 = vld [vmem:[#allocation14 + $0x3b0] sm:$0xff]
    %v5052 = vld [vmem:[#allocation14 + $0x3b8] sm:$0xff]
    %v5053 = vld [vmem:[#allocation14 + $0x3c0] sm:$0xff]
    %v5054 = vld [vmem:[#allocation14 + $0x3c8] sm:$0xff]
    %v5055 = vld [vmem:[#allocation14 + $0x3d0] sm:$0xff]
    %v5056 = vld [vmem:[#allocation14 + $0x3d8] sm:$0xff]
    %v5057 = vld [vmem:[#allocation14 + $0x3e0] sm:$0xff]
    %v5058 = vld [vmem:[#allocation14 + $0x3e8] sm:$0xff]
    %v5059 = vld [vmem:[#allocation14 + $0x3f0] sm:$0xff]
    %v5060 = vld [vmem:[#allocation14 + $0x3f8] sm:$0xff]
    %v5061 = vld [vmem:[#allocation14 + $0x400] sm:$0xff]
    %v5062 = vld [vmem:[#allocation14 + $0x408] sm:$0xff]
    %v5063 = vld [vmem:[#allocation14 + $0x410] sm:$0xff]
    %v5064 = vld [vmem:[#allocation14 + $0x418] sm:$0xff]
    %v5065 = vld [vmem:[#allocation14 + $0x420] sm:$0xff]
    %v5066 = vld [vmem:[#allocation14 + $0x428] sm:$0xff]
    %v5067 = vld [vmem:[#allocation14 + $0x430] sm:$0xff]
    %v5068 = vld [vmem:[#allocation14 + $0x438] sm:$0xff]
    %v5069 = vld [vmem:[#allocation14 + $0x440] sm:$0xff]
    %v5070 = vld [vmem:[#allocation14 + $0x448] sm:$0xff]
    %v5071 = vld [vmem:[#allocation14 + $0x450] sm:$0xff]
    %v5072 = vld [vmem:[#allocation14 + $0x458] sm:$0xff]
    %v5073 = vld [vmem:[#allocation14 + $0x460] sm:$0xff]
    %v5074 = vld [vmem:[#allocation14 + $0x468] sm:$0xff]
    %v5075 = vld [vmem:[#allocation14 + $0x470] sm:$0xff]
    %v5076 = vld [vmem:[#allocation14 + $0x478] sm:$0xff]
    %v5077 = vld [vmem:[#allocation14 + $0x480] sm:$0xff]
    %v5078 = vld [vmem:[#allocation14 + $0x488] sm:$0xff]
    %v5079 = vld [vmem:[#allocation14 + $0x490] sm:$0xff]
    %v5080 = vld [vmem:[#allocation14 + $0x498] sm:$0xff]
    %v5081 = vld [vmem:[#allocation14 + $0x4a0] sm:$0xff]
    %v5082 = vld [vmem:[#allocation14 + $0x4a8] sm:$0xff]
    %v5083 = vld [vmem:[#allocation14 + $0x4b0] sm:$0xff]
    %v5084 = vld [vmem:[#allocation14 + $0x4b8] sm:$0xff]
    %v5085 = vld [vmem:[#allocation14 + $0x4c0] sm:$0xff]
    %v5086 = vld [vmem:[#allocation14 + $0x4c8] sm:$0xff]
    %v5087 = vld [vmem:[#allocation14 + $0x4d0] sm:$0xff]
    %v5088 = vld [vmem:[#allocation14 + $0x4d8] sm:$0xff]
    %v5089 = vld [vmem:[#allocation14 + $0x4e0] sm:$0xff]
    %v5090 = vld [vmem:[#allocation14 + $0x4e8] sm:$0xff]
    %v5091 = vld [vmem:[#allocation14 + $0x4f0] sm:$0xff]
    %v5092 = vld [vmem:[#allocation14 + $0x4f8] sm:$0xff]
    %v5093 = vld [vmem:[#allocation14 + $0x500] sm:$0xff]
    %v5094 = vld [vmem:[#allocation14 + $0x508] sm:$0xff]
    %v5095 = vld [vmem:[#allocation14 + $0x510] sm:$0xff]
    %v5096 = vld [vmem:[#allocation14 + $0x518] sm:$0xff]
    %v5097 = vld [vmem:[#allocation14 + $0x520] sm:$0xff]
    %v5098 = vld [vmem:[#allocation14 + $0x528] sm:$0xff]
    %v5099 = vld [vmem:[#allocation14 + $0x530] sm:$0xff]
    %v5100 = vld [vmem:[#allocation14 + $0x538] sm:$0xff]
    %v5101 = vld [vmem:[#allocation14 + $0x540] sm:$0xff]
    %v5102 = vld [vmem:[#allocation14 + $0x548] sm:$0xff]
    %v5103 = vld [vmem:[#allocation14 + $0x550] sm:$0xff]
    %v5104 = vld [vmem:[#allocation14 + $0x558] sm:$0xff]
    %v5105 = vld [vmem:[#allocation14 + $0x560] sm:$0xff]
    %v5106 = vld [vmem:[#allocation14 + $0x568] sm:$0xff]
    %v5107 = vld [vmem:[#allocation14 + $0x570] sm:$0xff]
    %v5108 = vld [vmem:[#allocation14 + $0x578] sm:$0xff]
    %v5109 = vld [vmem:[#allocation14 + $0x580] sm:$0xff]
    %v5110 = vld [vmem:[#allocation14 + $0x588] sm:$0xff]
    %v5111 = vld [vmem:[#allocation14 + $0x590] sm:$0xff]
    %v5112 = vld [vmem:[#allocation14 + $0x598] sm:$0xff]
    %v5113 = vld [vmem:[#allocation14 + $0x5a0] sm:$0xff]
    %v5114 = vld [vmem:[#allocation14 + $0x5a8] sm:$0xff]
    %v5115 = vld [vmem:[#allocation14 + $0x5b0] sm:$0xff]
    %v5116 = vld [vmem:[#allocation14 + $0x5b8] sm:$0xff]
    %v5117 = vld [vmem:[#allocation14 + $0x5c0] sm:$0xff]
    %v5118 = vld [vmem:[#allocation14 + $0x5c8] sm:$0xff]
    %v5119 = vld [vmem:[#allocation14 + $0x5d0] sm:$0xff]
    %v5120 = vld [vmem:[#allocation14 + $0x5d8] sm:$0xff]
    %v5121 = vld [vmem:[#allocation14 + $0x5e0] sm:$0xff]
    %v5122 = vld [vmem:[#allocation14 + $0x5e8] sm:$0xff]
    %v5123 = vld [vmem:[#allocation14 + $0x5f0] sm:$0xff]
    %v5124 = vld [vmem:[#allocation14 + $0x5f8] sm:$0xff]
    %v5125 = vld [vmem:[%s8] sm:$0x3f]
    %v5127 = vperm.slane %v5125, 0
    %v5128 = vperm.slane %v5125, 1
    %v5129 = vperm.slane %v5125, 2
    %v5130 = vperm.slane %v5125, 3
    %v5131 = vperm.slane %v5125, 4
    %v5132 = vperm.slane %v5125, 5
    %v5331 = vunpack.c.l.b16 %v4933
    %v5332 = vunpack.c.h.b16 %v4933
    %v5333 = vunpack.c.l.b16 %v4934
    %v5334 = vunpack.c.h.b16 %v4934
    %v5335 = vunpack.c.l.b16 %v4935
    %v5336 = vunpack.c.h.b16 %v4935
    %v5337 = vunpack.c.l.b16 %v4936
    %v5338 = vunpack.c.h.b16 %v4936
    %v5339 = vunpack.c.l.b16 %v4937
    %v5340 = vunpack.c.h.b16 %v4937
    %v5341 = vunpack.c.l.b16 %v4938
    %v5342 = vunpack.c.h.b16 %v4938
    %v5343 = vunpack.c.l.b16 %v4939
    %v5344 = vunpack.c.h.b16 %v4939
    %v5345 = vunpack.c.l.b16 %v4940
    %v5346 = vunpack.c.h.b16 %v4940
    %v5347 = vunpack.c.l.b16 %v4941
    %v5348 = vunpack.c.h.b16 %v4941
    %v5349 = vunpack.c.l.b16 %v4942
    %v5350 = vunpack.c.h.b16 %v4942
    %v5351 = vunpack.c.l.b16 %v4943
    %v5352 = vunpack.c.h.b16 %v4943
    %v5353 = vunpack.c.l.b16 %v4944
    %v5354 = vunpack.c.h.b16 %v4944
    %v5355 = vunpack.c.l.b16 %v4945
    %v5356 = vunpack.c.h.b16 %v4945
    %v5357 = vunpack.c.l.b16 %v4946
    %v5358 = vunpack.c.h.b16 %v4946
    %v5359 = vunpack.c.l.b16 %v4947
    %v5360 = vunpack.c.h.b16 %v4947
    %v5361 = vunpack.c.l.b16 %v4948
    %v5362 = vunpack.c.h.b16 %v4948
    %v5363 = vunpack.c.l.b16 %v4949
    %v5364 = vunpack.c.h.b16 %v4949
    %v5365 = vunpack.c.l.b16 %v4950
    %v5366 = vunpack.c.h.b16 %v4950
    %v5367 = vunpack.c.l.b16 %v4951
    %v5368 = vunpack.c.h.b16 %v4951
    %v5369 = vunpack.c.l.b16 %v4952
    %v5370 = vunpack.c.h.b16 %v4952
    %v5371 = vunpack.c.l.b16 %v4953
    %v5372 = vunpack.c.h.b16 %v4953
    %v5373 = vunpack.c.l.b16 %v4954
    %v5374 = vunpack.c.h.b16 %v4954
    %v5375 = vunpack.c.l.b16 %v4955
    %v5376 = vunpack.c.h.b16 %v4955
    %v5377 = vunpack.c.l.b16 %v4956
    %v5378 = vunpack.c.h.b16 %v4956
    %v5379 = vunpack.c.l.b16 %v4957
    %v5380 = vunpack.c.h.b16 %v4957
    %v5381 = vunpack.c.l.b16 %v4958
    %v5382 = vunpack.c.h.b16 %v4958
    %v5383 = vunpack.c.l.b16 %v4959
    %v5384 = vunpack.c.h.b16 %v4959
    %v5385 = vunpack.c.l.b16 %v4960
    %v5386 = vunpack.c.h.b16 %v4960
    %v5387 = vunpack.c.l.b16 %v4961
    %v5388 = vunpack.c.h.b16 %v4961
    %v5389 = vunpack.c.l.b16 %v4962
    %v5390 = vunpack.c.h.b16 %v4962
    %v5391 = vunpack.c.l.b16 %v4963
    %v5392 = vunpack.c.h.b16 %v4963
    %v5393 = vunpack.c.l.b16 %v4964
    %v5394 = vunpack.c.h.b16 %v4964
    %v5395 = vunpack.c.l.b16 %v4965
    %v5396 = vunpack.c.h.b16 %v4965
    %v5397 = vunpack.c.l.b16 %v4966
    %v5398 = vunpack.c.h.b16 %v4966
    %v5399 = vunpack.c.l.b16 %v4967
    %v5400 = vunpack.c.h.b16 %v4967
    %v5401 = vunpack.c.l.b16 %v4968
    %v5402 = vunpack.c.h.b16 %v4968
    %v5403 = vunpack.c.l.b16 %v4969
    %v5404 = vunpack.c.h.b16 %v4969
    %v5405 = vunpack.c.l.b16 %v4970
    %v5406 = vunpack.c.h.b16 %v4970
    %v5407 = vunpack.c.l.b16 %v4971
    %v5408 = vunpack.c.h.b16 %v4971
    %v5409 = vunpack.c.l.b16 %v4972
    %v5410 = vunpack.c.h.b16 %v4972
    %v5411 = vunpack.c.l.b16 %v4973
    %v5412 = vunpack.c.h.b16 %v4973
    %v5413 = vunpack.c.l.b16 %v4974
    %v5414 = vunpack.c.h.b16 %v4974
    %v5415 = vunpack.c.l.b16 %v4975
    %v5416 = vunpack.c.h.b16 %v4975
    %v5417 = vunpack.c.l.b16 %v4976
    %v5418 = vunpack.c.h.b16 %v4976
    %v5419 = vunpack.c.l.b16 %v4977
    %v5420 = vunpack.c.h.b16 %v4977
    %v5421 = vunpack.c.l.b16 %v4978
    %v5422 = vunpack.c.h.b16 %v4978
    %v5423 = vunpack.c.l.b16 %v4979
    %v5424 = vunpack.c.h.b16 %v4979
    %v5425 = vunpack.c.l.b16 %v4980
    %v5426 = vunpack.c.h.b16 %v4980
    %v5427 = vunpack.c.l.b16 %v4981
    %v5428 = vunpack.c.h.b16 %v4981
    %v5429 = vunpack.c.l.b16 %v4982
    %v5430 = vunpack.c.h.b16 %v4982
    %v5431 = vunpack.c.l.b16 %v4983
    %v5432 = vunpack.c.h.b16 %v4983
    %v5433 = vunpack.c.l.b16 %v4984
    %v5434 = vunpack.c.h.b16 %v4984
    %v5435 = vunpack.c.l.b16 %v4985
    %v5436 = vunpack.c.h.b16 %v4985
    %v5437 = vunpack.c.l.b16 %v4986
    %v5438 = vunpack.c.h.b16 %v4986
    %v5439 = vunpack.c.l.b16 %v4987
    %v5440 = vunpack.c.h.b16 %v4987
    %v5441 = vunpack.c.l.b16 %v4988
    %v5442 = vunpack.c.h.b16 %v4988
    %v5443 = vunpack.c.l.b16 %v4989
    %v5444 = vunpack.c.h.b16 %v4989
    %v5445 = vunpack.c.l.b16 %v4990
    %v5446 = vunpack.c.h.b16 %v4990
    %v5447 = vunpack.c.l.b16 %v4991
    %v5448 = vunpack.c.h.b16 %v4991
    %v5449 = vunpack.c.l.b16 %v4992
    %v5450 = vunpack.c.h.b16 %v4992
    %v5451 = vunpack.c.l.b16 %v4993
    %v5452 = vunpack.c.h.b16 %v4993
    %v5453 = vunpack.c.l.b16 %v4994
    %v5454 = vunpack.c.h.b16 %v4994
    %v5455 = vunpack.c.l.b16 %v4995
    %v5456 = vunpack.c.h.b16 %v4995
    %v5457 = vunpack.c.l.b16 %v4996
    %v5458 = vunpack.c.h.b16 %v4996
    %v5459 = vunpack.c.l.b16 %v4997
    %v5460 = vunpack.c.h.b16 %v4997
    %v5461 = vunpack.c.l.b16 %v4998
    %v5462 = vunpack.c.h.b16 %v4998
    %v5463 = vunpack.c.l.b16 %v4999
    %v5464 = vunpack.c.h.b16 %v4999
    %v5465 = vunpack.c.l.b16 %v5000
    %v5466 = vunpack.c.h.b16 %v5000
    %v5467 = vunpack.c.l.b16 %v5001
    %v5468 = vunpack.c.h.b16 %v5001
    %v5469 = vunpack.c.l.b16 %v5002
    %v5470 = vunpack.c.h.b16 %v5002
    %v5471 = vunpack.c.l.b16 %v5003
    %v5472 = vunpack.c.h.b16 %v5003
    %v5473 = vunpack.c.l.b16 %v5004
    %v5474 = vunpack.c.h.b16 %v5004
    %v5475 = vunpack.c.l.b16 %v5005
    %v5476 = vunpack.c.h.b16 %v5005
    %v5477 = vunpack.c.l.b16 %v5006
    %v5478 = vunpack.c.h.b16 %v5006
    %v5479 = vunpack.c.l.b16 %v5007
    %v5480 = vunpack.c.h.b16 %v5007
    %v5481 = vunpack.c.l.b16 %v5008
    %v5482 = vunpack.c.h.b16 %v5008
    %v5483 = vunpack.c.l.b16 %v5009
    %v5484 = vunpack.c.h.b16 %v5009
    %v5485 = vunpack.c.l.b16 %v5010
    %v5486 = vunpack.c.h.b16 %v5010
    %v5487 = vunpack.c.l.b16 %v5011
    %v5488 = vunpack.c.h.b16 %v5011
    %v5489 = vunpack.c.l.b16 %v5012
    %v5490 = vunpack.c.h.b16 %v5012
    %v5491 = vunpack.c.l.b16 %v5013
    %v5492 = vunpack.c.h.b16 %v5013
    %v5493 = vunpack.c.l.b16 %v5014
    %v5494 = vunpack.c.h.b16 %v5014
    %v5495 = vunpack.c.l.b16 %v5015
    %v5496 = vunpack.c.h.b16 %v5015
    %v5497 = vunpack.c.l.b16 %v5016
    %v5498 = vunpack.c.h.b16 %v5016
    %v5499 = vunpack.c.l.b16 %v5017
    %v5500 = vunpack.c.h.b16 %v5017
    %v5501 = vunpack.c.l.b16 %v5018
    %v5502 = vunpack.c.h.b16 %v5018
    %v5503 = vunpack.c.l.b16 %v5019
    %v5504 = vunpack.c.h.b16 %v5019
    %v5505 = vunpack.c.l.b16 %v5020
    %v5506 = vunpack.c.h.b16 %v5020
    %v5507 = vunpack.c.l.b16 %v5021
    %v5508 = vunpack.c.h.b16 %v5021
    %v5509 = vunpack.c.l.b16 %v5022
    %v5510 = vunpack.c.h.b16 %v5022
    %v5511 = vunpack.c.l.b16 %v5023
    %v5512 = vunpack.c.h.b16 %v5023
    %v5513 = vunpack.c.l.b16 %v5024
    %v5514 = vunpack.c.h.b16 %v5024
    %v5515 = vunpack.c.l.b16 %v5025
    %v5516 = vunpack.c.h.b16 %v5025
    %v5517 = vunpack.c.l.b16 %v5026
    %v5518 = vunpack.c.h.b16 %v5026
    %v5519 = vunpack.c.l.b16 %v5027
    %v5520 = vunpack.c.h.b16 %v5027
    %v5521 = vunpack.c.l.b16 %v5028
    %v5522 = vunpack.c.h.b16 %v5028
    %v5523 = vunpack.c.l.b16 %v5029
    %v5524 = vunpack.c.h.b16 %v5029
    %v5525 = vunpack.c.l.b16 %v5030
    %v5526 = vunpack.c.h.b16 %v5030
    %v5527 = vunpack.c.l.b16 %v5031
    %v5528 = vunpack.c.h.b16 %v5031
    %v5529 = vunpack.c.l.b16 %v5032
    %v5530 = vunpack.c.h.b16 %v5032
    %v5531 = vunpack.c.l.b16 %v5033
    %v5532 = vunpack.c.h.b16 %v5033
    %v5533 = vunpack.c.l.b16 %v5034
    %v5534 = vunpack.c.h.b16 %v5034
    %v5535 = vunpack.c.l.b16 %v5035
    %v5536 = vunpack.c.h.b16 %v5035
    %v5537 = vunpack.c.l.b16 %v5036
    %v5538 = vunpack.c.h.b16 %v5036
    %v5539 = vunpack.c.l.b16 %v5037
    %v5540 = vunpack.c.h.b16 %v5037
    %v5541 = vunpack.c.l.b16 %v5038
    %v5542 = vunpack.c.h.b16 %v5038
    %v5543 = vunpack.c.l.b16 %v5039
    %v5544 = vunpack.c.h.b16 %v5039
    %v5545 = vunpack.c.l.b16 %v5040
    %v5546 = vunpack.c.h.b16 %v5040
    %v5547 = vunpack.c.l.b16 %v5041
    %v5548 = vunpack.c.h.b16 %v5041
    %v5549 = vunpack.c.l.b16 %v5042
    %v5550 = vunpack.c.h.b16 %v5042
    %v5551 = vunpack.c.l.b16 %v5043
    %v5552 = vunpack.c.h.b16 %v5043
    %v5553 = vunpack.c.l.b16 %v5044
    %v5554 = vunpack.c.h.b16 %v5044
    %v5555 = vunpack.c.l.b16 %v5045
    %v5556 = vunpack.c.h.b16 %v5045
    %v5557 = vunpack.c.l.b16 %v5046
    %v5558 = vunpack.c.h.b16 %v5046
    %v5559 = vunpack.c.l.b16 %v5047
    %v5560 = vunpack.c.h.b16 %v5047
    %v5561 = vunpack.c.l.b16 %v5048
    %v5562 = vunpack.c.h.b16 %v5048
    %v5563 = vunpack.c.l.b16 %v5049
    %v5564 = vunpack.c.h.b16 %v5049
    %v5565 = vunpack.c.l.b16 %v5050
    %v5566 = vunpack.c.h.b16 %v5050
    %v5567 = vunpack.c.l.b16 %v5051
    %v5568 = vunpack.c.h.b16 %v5051
    %v5569 = vunpack.c.l.b16 %v5052
    %v5570 = vunpack.c.h.b16 %v5052
    %v5571 = vunpack.c.l.b16 %v5053
    %v5572 = vunpack.c.h.b16 %v5053
    %v5573 = vunpack.c.l.b16 %v5054
    %v5574 = vunpack.c.h.b16 %v5054
    %v5575 = vunpack.c.l.b16 %v5055
    %v5576 = vunpack.c.h.b16 %v5055
    %v5577 = vunpack.c.l.b16 %v5056
    %v5578 = vunpack.c.h.b16 %v5056
    %v5579 = vunpack.c.l.b16 %v5057
    %v5580 = vunpack.c.h.b16 %v5057
    %v5581 = vunpack.c.l.b16 %v5058
    %v5582 = vunpack.c.h.b16 %v5058
    %v5583 = vunpack.c.l.b16 %v5059
    %v5584 = vunpack.c.h.b16 %v5059
    %v5585 = vunpack.c.l.b16 %v5060
    %v5586 = vunpack.c.h.b16 %v5060
    %v5587 = vunpack.c.l.b16 %v5061
    %v5588 = vunpack.c.h.b16 %v5061
    %v5589 = vunpack.c.l.b16 %v5062
    %v5590 = vunpack.c.h.b16 %v5062
    %v5591 = vunpack.c.l.b16 %v5063
    %v5592 = vunpack.c.h.b16 %v5063
    %v5593 = vunpack.c.l.b16 %v5064
    %v5594 = vunpack.c.h.b16 %v5064
    %v5595 = vunpack.c.l.b16 %v5065
    %v5596 = vunpack.c.h.b16 %v5065
    %v5597 = vunpack.c.l.b16 %v5066
    %v5598 = vunpack.c.h.b16 %v5066
    %v5599 = vunpack.c.l.b16 %v5067
    %v5600 = vunpack.c.h.b16 %v5067
    %v5601 = vunpack.c.l.b16 %v5068
    %v5602 = vunpack.c.h.b16 %v5068
    %v5603 = vunpack.c.l.b16 %v5069
    %v5604 = vunpack.c.h.b16 %v5069
    %v5605 = vunpack.c.l.b16 %v5070
    %v5606 = vunpack.c.h.b16 %v5070
    %v5607 = vunpack.c.l.b16 %v5071
    %v5608 = vunpack.c.h.b16 %v5071
    %v5609 = vunpack.c.l.b16 %v5072
    %v5610 = vunpack.c.h.b16 %v5072
    %v5611 = vunpack.c.l.b16 %v5073
    %v5612 = vunpack.c.h.b16 %v5073
    %v5613 = vunpack.c.l.b16 %v5074
    %v5614 = vunpack.c.h.b16 %v5074
    %v5615 = vunpack.c.l.b16 %v5075
    %v5616 = vunpack.c.h.b16 %v5075
    %v5617 = vunpack.c.l.b16 %v5076
    %v5618 = vunpack.c.h.b16 %v5076
    %v5619 = vunpack.c.l.b16 %v5077
    %v5620 = vunpack.c.h.b16 %v5077
    %v5621 = vunpack.c.l.b16 %v5078
    %v5622 = vunpack.c.h.b16 %v5078
    %v5623 = vunpack.c.l.b16 %v5079
    %v5624 = vunpack.c.h.b16 %v5079
    %v5625 = vunpack.c.l.b16 %v5080
    %v5626 = vunpack.c.h.b16 %v5080
    %v5627 = vunpack.c.l.b16 %v5081
    %v5628 = vunpack.c.h.b16 %v5081
    %v5629 = vunpack.c.l.b16 %v5082
    %v5630 = vunpack.c.h.b16 %v5082
    %v5631 = vunpack.c.l.b16 %v5083
    %v5632 = vunpack.c.h.b16 %v5083
    %v5633 = vunpack.c.l.b16 %v5084
    %v5634 = vunpack.c.h.b16 %v5084
    %v5635 = vunpack.c.l.b16 %v5085
    %v5636 = vunpack.c.h.b16 %v5085
    %v5637 = vunpack.c.l.b16 %v5086
    %v5638 = vunpack.c.h.b16 %v5086
    %v5639 = vunpack.c.l.b16 %v5087
    %v5640 = vunpack.c.h.b16 %v5087
    %v5641 = vunpack.c.l.b16 %v5088
    %v5642 = vunpack.c.h.b16 %v5088
    %v5643 = vunpack.c.l.b16 %v5089
    %v5644 = vunpack.c.h.b16 %v5089
    %v5645 = vunpack.c.l.b16 %v5090
    %v5646 = vunpack.c.h.b16 %v5090
    %v5647 = vunpack.c.l.b16 %v5091
    %v5648 = vunpack.c.h.b16 %v5091
    %v5649 = vunpack.c.l.b16 %v5092
    %v5650 = vunpack.c.h.b16 %v5092
    %v5651 = vunpack.c.l.b16 %v5093
    %v5652 = vunpack.c.h.b16 %v5093
    %v5653 = vunpack.c.l.b16 %v5094
    %v5654 = vunpack.c.h.b16 %v5094
    %v5655 = vunpack.c.l.b16 %v5095
    %v5656 = vunpack.c.h.b16 %v5095
    %v5657 = vunpack.c.l.b16 %v5096
    %v5658 = vunpack.c.h.b16 %v5096
    %v5659 = vunpack.c.l.b16 %v5097
    %v5660 = vunpack.c.h.b16 %v5097
    %v5661 = vunpack.c.l.b16 %v5098
    %v5662 = vunpack.c.h.b16 %v5098
    %v5663 = vunpack.c.l.b16 %v5099
    %v5664 = vunpack.c.h.b16 %v5099
    %v5665 = vunpack.c.l.b16 %v5100
    %v5666 = vunpack.c.h.b16 %v5100
    %v5667 = vunpack.c.l.b16 %v5101
    %v5668 = vunpack.c.h.b16 %v5101
    %v5669 = vunpack.c.l.b16 %v5102
    %v5670 = vunpack.c.h.b16 %v5102
    %v5671 = vunpack.c.l.b16 %v5103
    %v5672 = vunpack.c.h.b16 %v5103
    %v5673 = vunpack.c.l.b16 %v5104
    %v5674 = vunpack.c.h.b16 %v5104
    %v5675 = vunpack.c.l.b16 %v5105
    %v5676 = vunpack.c.h.b16 %v5105
    %v5677 = vunpack.c.l.b16 %v5106
    %v5678 = vunpack.c.h.b16 %v5106
    %v5679 = vunpack.c.l.b16 %v5107
    %v5680 = vunpack.c.h.b16 %v5107
    %v5681 = vunpack.c.l.b16 %v5108
    %v5682 = vunpack.c.h.b16 %v5108
    %v5683 = vunpack.c.l.b16 %v5109
    %v5684 = vunpack.c.h.b16 %v5109
    %v5685 = vunpack.c.l.b16 %v5110
    %v5686 = vunpack.c.h.b16 %v5110
    %v5687 = vunpack.c.l.b16 %v5111
    %v5688 = vunpack.c.h.b16 %v5111
    %v5689 = vunpack.c.l.b16 %v5112
    %v5690 = vunpack.c.h.b16 %v5112
    %v5691 = vunpack.c.l.b16 %v5113
    %v5692 = vunpack.c.h.b16 %v5113
    %v5693 = vunpack.c.l.b16 %v5114
    %v5694 = vunpack.c.h.b16 %v5114
    %v5695 = vunpack.c.l.b16 %v5115
    %v5696 = vunpack.c.h.b16 %v5115
    %v5697 = vunpack.c.l.b16 %v5116
    %v5698 = vunpack.c.h.b16 %v5116
    %v5699 = vunpack.c.l.b16 %v5117
    %v5700 = vunpack.c.h.b16 %v5117
    %v5701 = vunpack.c.l.b16 %v5118
    %v5702 = vunpack.c.h.b16 %v5118
    %v5703 = vunpack.c.l.b16 %v5119
    %v5704 = vunpack.c.h.b16 %v5119
    %v5705 = vunpack.c.l.b16 %v5120
    %v5706 = vunpack.c.h.b16 %v5120
    %v5707 = vunpack.c.l.b16 %v5121
    %v5708 = vunpack.c.h.b16 %v5121
    %v5709 = vunpack.c.l.b16 %v5122
    %v5710 = vunpack.c.h.b16 %v5122
    %v5711 = vunpack.c.l.b16 %v5123
    %v5712 = vunpack.c.h.b16 %v5123
    %v5713 = vunpack.c.l.b16 %v5124
    %v5714 = vunpack.c.h.b16 %v5124
    %v5715 = vpack.c.b16 %v5337, %v5331
    %v5716 = vpack.c.b16 %v5338, %v5332
    %v5717 = vpack.c.b16 %v5339, %v5333
    %v5718 = vpack.c.b16 %v5340, %v5334
    %v5719 = vpack.c.b16 %v5341, %v5335
    %v5720 = vpack.c.b16 %v5342, %v5336
    %v5721 = vpack.c.b16 %v5349, %v5343
    %v5722 = vpack.c.b16 %v5350, %v5344
    %v5723 = vpack.c.b16 %v5351, %v5345
    %v5724 = vpack.c.b16 %v5352, %v5346
    %v5725 = vpack.c.b16 %v5353, %v5347
    %v5726 = vpack.c.b16 %v5354, %v5348
    %v5727 = vpack.c.b16 %v5361, %v5355
    %v5728 = vpack.c.b16 %v5362, %v5356
    %v5729 = vpack.c.b16 %v5363, %v5357
    %v5730 = vpack.c.b16 %v5364, %v5358
    %v5731 = vpack.c.b16 %v5365, %v5359
    %v5732 = vpack.c.b16 %v5366, %v5360
    %v5733 = vpack.c.b16 %v5373, %v5367
    %v5734 = vpack.c.b16 %v5374, %v5368
    %v5735 = vpack.c.b16 %v5375, %v5369
    %v5736 = vpack.c.b16 %v5376, %v5370
    %v5737 = vpack.c.b16 %v5377, %v5371
    %v5738 = vpack.c.b16 %v5378, %v5372
    %v5739 = vpack.c.b16 %v5385, %v5379
    %v5740 = vpack.c.b16 %v5386, %v5380
    %v5741 = vpack.c.b16 %v5387, %v5381
    %v5742 = vpack.c.b16 %v5388, %v5382
    %v5743 = vpack.c.b16 %v5389, %v5383
    %v5744 = vpack.c.b16 %v5390, %v5384
    %v5745 = vpack.c.b16 %v5397, %v5391
    %v5746 = vpack.c.b16 %v5398, %v5392
    %v5747 = vpack.c.b16 %v5399, %v5393
    %v5748 = vpack.c.b16 %v5400, %v5394
    %v5749 = vpack.c.b16 %v5401, %v5395
    %v5750 = vpack.c.b16 %v5402, %v5396
    %v5751 = vpack.c.b16 %v5409, %v5403
    %v5752 = vpack.c.b16 %v5410, %v5404
    %v5753 = vpack.c.b16 %v5411, %v5405
    %v5754 = vpack.c.b16 %v5412, %v5406
    %v5755 = vpack.c.b16 %v5413, %v5407
    %v5756 = vpack.c.b16 %v5414, %v5408
    %v5757 = vpack.c.b16 %v5421, %v5415
    %v5758 = vpack.c.b16 %v5422, %v5416
    %v5759 = vpack.c.b16 %v5423, %v5417
    %v5760 = vpack.c.b16 %v5424, %v5418
    %v5761 = vpack.c.b16 %v5425, %v5419
    %v5762 = vpack.c.b16 %v5426, %v5420
    %v5763 = vpack.c.b16 %v5433, %v5427
    %v5764 = vpack.c.b16 %v5434, %v5428
    %v5765 = vpack.c.b16 %v5435, %v5429
    %v5766 = vpack.c.b16 %v5436, %v5430
    %v5767 = vpack.c.b16 %v5437, %v5431
    %v5768 = vpack.c.b16 %v5438, %v5432
    %v5769 = vpack.c.b16 %v5445, %v5439
    %v5770 = vpack.c.b16 %v5446, %v5440
    %v5771 = vpack.c.b16 %v5447, %v5441
    %v5772 = vpack.c.b16 %v5448, %v5442
    %v5773 = vpack.c.b16 %v5449, %v5443
    %v5774 = vpack.c.b16 %v5450, %v5444
    %v5775 = vpack.c.b16 %v5457, %v5451
    %v5776 = vpack.c.b16 %v5458, %v5452
    %v5777 = vpack.c.b16 %v5459, %v5453
    %v5778 = vpack.c.b16 %v5460, %v5454
    %v5779 = vpack.c.b16 %v5461, %v5455
    %v5780 = vpack.c.b16 %v5462, %v5456
    %v5781 = vpack.c.b16 %v5469, %v5463
    %v5782 = vpack.c.b16 %v5470, %v5464
    %v5783 = vpack.c.b16 %v5471, %v5465
    %v5784 = vpack.c.b16 %v5472, %v5466
    %v5785 = vpack.c.b16 %v5473, %v5467
    %v5786 = vpack.c.b16 %v5474, %v5468
    %v5787 = vpack.c.b16 %v5481, %v5475
    %v5788 = vpack.c.b16 %v5482, %v5476
    %v5789 = vpack.c.b16 %v5483, %v5477
    %v5790 = vpack.c.b16 %v5484, %v5478
    %v5791 = vpack.c.b16 %v5485, %v5479
    %v5792 = vpack.c.b16 %v5486, %v5480
    %v5793 = vpack.c.b16 %v5493, %v5487
    %v5794 = vpack.c.b16 %v5494, %v5488
    %v5795 = vpack.c.b16 %v5495, %v5489
    %v5796 = vpack.c.b16 %v5496, %v5490
    %v5797 = vpack.c.b16 %v5497, %v5491
    %v5798 = vpack.c.b16 %v5498, %v5492
    %v5799 = vpack.c.b16 %v5505, %v5499
    %v5800 = vpack.c.b16 %v5506, %v5500
    %v5801 = vpack.c.b16 %v5507, %v5501
    %v5802 = vpack.c.b16 %v5508, %v5502
    %v5803 = vpack.c.b16 %v5509, %v5503
    %v5804 = vpack.c.b16 %v5510, %v5504
    %v5805 = vpack.c.b16 %v5517, %v5511
    %v5806 = vpack.c.b16 %v5518, %v5512
    %v5807 = vpack.c.b16 %v5519, %v5513
    %v5808 = vpack.c.b16 %v5520, %v5514
    %v5809 = vpack.c.b16 %v5521, %v5515
    %v5810 = vpack.c.b16 %v5522, %v5516
    %v5811 = vpack.c.b16 %v5529, %v5523
    %v5812 = vpack.c.b16 %v5530, %v5524
    %v5813 = vpack.c.b16 %v5531, %v5525
    %v5814 = vpack.c.b16 %v5532, %v5526
    %v5815 = vpack.c.b16 %v5533, %v5527
    %v5816 = vpack.c.b16 %v5534, %v5528
    %v5817 = vpack.c.b16 %v5541, %v5535
    %v5818 = vpack.c.b16 %v5542, %v5536
    %v5819 = vpack.c.b16 %v5543, %v5537
    %v5820 = vpack.c.b16 %v5544, %v5538
    %v5821 = vpack.c.b16 %v5545, %v5539
    %v5822 = vpack.c.b16 %v5546, %v5540
    %v5823 = vpack.c.b16 %v5553, %v5547
    %v5824 = vpack.c.b16 %v5554, %v5548
    %v5825 = vpack.c.b16 %v5555, %v5549
    %v5826 = vpack.c.b16 %v5556, %v5550
    %v5827 = vpack.c.b16 %v5557, %v5551
    %v5828 = vpack.c.b16 %v5558, %v5552
    %v5829 = vpack.c.b16 %v5565, %v5559
    %v5830 = vpack.c.b16 %v5566, %v5560
    %v5831 = vpack.c.b16 %v5567, %v5561
    %v5832 = vpack.c.b16 %v5568, %v5562
    %v5833 = vpack.c.b16 %v5569, %v5563
    %v5834 = vpack.c.b16 %v5570, %v5564
    %v5835 = vpack.c.b16 %v5577, %v5571
    %v5836 = vpack.c.b16 %v5578, %v5572
    %v5837 = vpack.c.b16 %v5579, %v5573
    %v5838 = vpack.c.b16 %v5580, %v5574
    %v5839 = vpack.c.b16 %v5581, %v5575
    %v5840 = vpack.c.b16 %v5582, %v5576
    %v5841 = vpack.c.b16 %v5589, %v5583
    %v5842 = vpack.c.b16 %v5590, %v5584
    %v5843 = vpack.c.b16 %v5591, %v5585
    %v5844 = vpack.c.b16 %v5592, %v5586
    %v5845 = vpack.c.b16 %v5593, %v5587
    %v5846 = vpack.c.b16 %v5594, %v5588
    %v5847 = vpack.c.b16 %v5601, %v5595
    %v5848 = vpack.c.b16 %v5602, %v5596
    %v5849 = vpack.c.b16 %v5603, %v5597
    %v5850 = vpack.c.b16 %v5604, %v5598
    %v5851 = vpack.c.b16 %v5605, %v5599
    %v5852 = vpack.c.b16 %v5606, %v5600
    %v5853 = vpack.c.b16 %v5613, %v5607
    %v5854 = vpack.c.b16 %v5614, %v5608
    %v5855 = vpack.c.b16 %v5615, %v5609
    %v5856 = vpack.c.b16 %v5616, %v5610
    %v5857 = vpack.c.b16 %v5617, %v5611
    %v5858 = vpack.c.b16 %v5618, %v5612
    %v5859 = vpack.c.b16 %v5625, %v5619
    %v5860 = vpack.c.b16 %v5626, %v5620
    %v5861 = vpack.c.b16 %v5627, %v5621
    %v5862 = vpack.c.b16 %v5628, %v5622
    %v5863 = vpack.c.b16 %v5629, %v5623
    %v5864 = vpack.c.b16 %v5630, %v5624
    %v5865 = vpack.c.b16 %v5637, %v5631
    %v5866 = vpack.c.b16 %v5638, %v5632
    %v5867 = vpack.c.b16 %v5639, %v5633
    %v5868 = vpack.c.b16 %v5640, %v5634
    %v5869 = vpack.c.b16 %v5641, %v5635
    %v5870 = vpack.c.b16 %v5642, %v5636
    %v5871 = vpack.c.b16 %v5649, %v5643
    %v5872 = vpack.c.b16 %v5650, %v5644
    %v5873 = vpack.c.b16 %v5651, %v5645
    %v5874 = vpack.c.b16 %v5652, %v5646
    %v5875 = vpack.c.b16 %v5653, %v5647
    %v5876 = vpack.c.b16 %v5654, %v5648
    %v5877 = vpack.c.b16 %v5661, %v5655
    %v5878 = vpack.c.b16 %v5662, %v5656
    %v5879 = vpack.c.b16 %v5663, %v5657
    %v5880 = vpack.c.b16 %v5664, %v5658
    %v5881 = vpack.c.b16 %v5665, %v5659
    %v5882 = vpack.c.b16 %v5666, %v5660
    %v5883 = vpack.c.b16 %v5673, %v5667
    %v5884 = vpack.c.b16 %v5674, %v5668
    %v5885 = vpack.c.b16 %v5675, %v5669
    %v5886 = vpack.c.b16 %v5676, %v5670
    %v5887 = vpack.c.b16 %v5677, %v5671
    %v5888 = vpack.c.b16 %v5678, %v5672
    %v5889 = vpack.c.b16 %v5685, %v5679
    %v5890 = vpack.c.b16 %v5686, %v5680
    %v5891 = vpack.c.b16 %v5687, %v5681
    %v5892 = vpack.c.b16 %v5688, %v5682
    %v5893 = vpack.c.b16 %v5689, %v5683
    %v5894 = vpack.c.b16 %v5690, %v5684
    %v5895 = vpack.c.b16 %v5697, %v5691
    %v5896 = vpack.c.b16 %v5698, %v5692
    %v5897 = vpack.c.b16 %v5699, %v5693
    %v5898 = vpack.c.b16 %v5700, %v5694
    %v5899 = vpack.c.b16 %v5701, %v5695
    %v5900 = vpack.c.b16 %v5702, %v5696
    %v5901 = vpack.c.b16 %v5709, %v5703
    %v5902 = vpack.c.b16 %v5710, %v5704
    %v5903 = vpack.c.b16 %v5711, %v5705
    %v5904 = vpack.c.b16 %v5712, %v5706
    %v5905 = vpack.c.b16 %v5713, %v5707
    %v5906 = vpack.c.b16 %v5714, %v5708
    %6099 = vmatpush.bf16.msra.mxu0 %v5757
    %6100 = vmatpush.bf16.msra.mxu0 %v5751
    %6101 = vmatpush.bf16.msra.mxu0 %v5745
    %6102 = vmatpush.bf16.msra.mxu0 %v5739
    %6103 = vmatpush.bf16.msra.mxu0 %v5733
    %6104 = vmatpush.bf16.msra.mxu0 %v5727
    %6105 = vmatpush.bf16.msra.mxu0 %v5721
    %6106 = vmatpush.bf16.msra.mxu0 %v5715
    %6107 = vmatmul.bf16.gmra.mxu0 %v4929
    %v6108 = vpop.f32.mrf.mxu0
    %v6109 = vadd.f32 %v5127, %v6108
    %v6110 = vpop.f32.mrf.mxu0
    %6111 = vdwg.mxu0
    %6112 = vmatpush.bf16.msra.mxu0 %v5805
    %6113 = vmatpush.bf16.msra.mxu0 %v5799
    %6114 = vmatpush.bf16.msra.mxu0 %v5793
    %6115 = vmatpush.bf16.msra.mxu0 %v5787
    %6116 = vmatpush.bf16.msra.mxu0 %v5781
    %6117 = vmatpush.bf16.msra.mxu0 %v5775
    %6118 = vmatpush.bf16.msra.mxu0 %v5769
    %6119 = vmatpush.bf16.msra.mxu0 %v5763
    %6120 = vmatmul.bf16.gmra.mxu0 %v4930
    %v6121 = vpop.f32.mrf.mxu0
    %v6122 = vadd.f32 %v6109, %v6121
    %v6123 = vpop.f32.mrf.mxu0
    %6124 = vdwg.mxu0
    %6125 = vmatpush.bf16.msra.mxu0 %v5853
    %6126 = vmatpush.bf16.msra.mxu0 %v5847
    %6127 = vmatpush.bf16.msra.mxu0 %v5841
    %6128 = vmatpush.bf16.msra.mxu0 %v5835
    %6129 = vmatpush.bf16.msra.mxu0 %v5829
    %6130 = vmatpush.bf16.msra.mxu0 %v5823
    %6131 = vmatpush.bf16.msra.mxu0 %v5817
    %6132 = vmatpush.bf16.msra.mxu0 %v5811
    %6133 = vmatmul.bf16.gmra.mxu0 %v4931
    %v6134 = vpop.f32.mrf.mxu0
    %v6135 = vadd.f32 %v6122, %v6134
    %v6136 = vpop.f32.mrf.mxu0
    %6137 = vdwg.mxu0
    %6138 = vmatpush.bf16.msra.mxu0 %v5901
    %6139 = vmatpush.bf16.msra.mxu0 %v5895
    %6140 = vmatpush.bf16.msra.mxu0 %v5889
    %6141 = vmatpush.bf16.msra.mxu0 %v5883
    %6142 = vmatpush.bf16.msra.mxu0 %v5877
    %6143 = vmatpush.bf16.msra.mxu0 %v5871
    %6144 = vmatpush.bf16.msra.mxu0 %v5865
    %6145 = vmatpush.bf16.msra.mxu0 %v5859
    %6146 = vmatmul.bf16.gmra.mxu0 %v4932
    %v6147 = vpop.f32.mrf.mxu0
    %v6148 = vadd.f32 %v6135, %v6147
    %v6149 = vpop.f32.mrf.mxu0
    %6150 = vdwg.mxu0
    %6151 = vmatpush.bf16.msra.mxu0 %v5758
    %6152 = vmatpush.bf16.msra.mxu0 %v5752
    %6153 = vmatpush.bf16.msra.mxu0 %v5746
    %6154 = vmatpush.bf16.msra.mxu0 %v5740
    %6155 = vmatpush.bf16.msra.mxu0 %v5734
    %6156 = vmatpush.bf16.msra.mxu0 %v5728
    %6157 = vmatpush.bf16.msra.mxu0 %v5722
    %6158 = vmatpush.bf16.msra.mxu0 %v5716
    %6159 = vmatmul.bf16.gmra.mxu0 %v4929
    %v6160 = vpop.f32.mrf.mxu0
    %v6161 = vadd.f32 %v5128, %v6160
    %v6162 = vpop.f32.mrf.mxu0
    %6163 = vdwg.mxu0
    %6164 = vmatpush.bf16.msra.mxu0 %v5806
    %6165 = vmatpush.bf16.msra.mxu0 %v5800
    %6166 = vmatpush.bf16.msra.mxu0 %v5794
    %6167 = vmatpush.bf16.msra.mxu0 %v5788
    %6168 = vmatpush.bf16.msra.mxu0 %v5782
    %6169 = vmatpush.bf16.msra.mxu0 %v5776
    %6170 = vmatpush.bf16.msra.mxu0 %v5770
    %6171 = vmatpush.bf16.msra.mxu0 %v5764
    %6172 = vmatmul.bf16.gmra.mxu0 %v4930
    %v6173 = vpop.f32.mrf.mxu0
    %v6174 = vadd.f32 %v6161, %v6173
    %v6175 = vpop.f32.mrf.mxu0
    %6176 = vdwg.mxu0
    %6177 = vmatpush.bf16.msra.mxu0 %v5854
    %6178 = vmatpush.bf16.msra.mxu0 %v5848
    %6179 = vmatpush.bf16.msra.mxu0 %v5842
    %6180 = vmatpush.bf16.msra.mxu0 %v5836
    %6181 = vmatpush.bf16.msra.mxu0 %v5830
    %6182 = vmatpush.bf16.msra.mxu0 %v5824
    %6183 = vmatpush.bf16.msra.mxu0 %v5818
    %6184 = vmatpush.bf16.msra.mxu0 %v5812
    %6185 = vmatmul.bf16.gmra.mxu0 %v4931
    %v6186 = vpop.f32.mrf.mxu0
    %v6187 = vadd.f32 %v6174, %v6186
    %v6188 = vpop.f32.mrf.mxu0
    %6189 = vdwg.mxu0
    %6190 = vmatpush.bf16.msra.mxu0 %v5902
    %6191 = vmatpush.bf16.msra.mxu0 %v5896
    %6192 = vmatpush.bf16.msra.mxu0 %v5890
    %6193 = vmatpush.bf16.msra.mxu0 %v5884
    %6194 = vmatpush.bf16.msra.mxu0 %v5878
    %6195 = vmatpush.bf16.msra.mxu0 %v5872
    %6196 = vmatpush.bf16.msra.mxu0 %v5866
    %6197 = vmatpush.bf16.msra.mxu0 %v5860
    %6198 = vmatmul.bf16.gmra.mxu0 %v4932
    %v6199 = vpop.f32.mrf.mxu0
    %v6200 = vadd.f32 %v6187, %v6199
    %v6201 = vpop.f32.mrf.mxu0
    %6202 = vdwg.mxu0
    %6203 = vmatpush.bf16.msra.mxu0 %v5759
    %6204 = vmatpush.bf16.msra.mxu0 %v5753
    %6205 = vmatpush.bf16.msra.mxu0 %v5747
    %6206 = vmatpush.bf16.msra.mxu0 %v5741
    %6207 = vmatpush.bf16.msra.mxu0 %v5735
    %6208 = vmatpush.bf16.msra.mxu0 %v5729
    %6209 = vmatpush.bf16.msra.mxu0 %v5723
    %6210 = vmatpush.bf16.msra.mxu0 %v5717
    %6211 = vmatmul.bf16.gmra.mxu0 %v4929
    %v6212 = vpop.f32.mrf.mxu0
    %v6213 = vadd.f32 %v5129, %v6212
    %v6214 = vpop.f32.mrf.mxu0
    %6215 = vdwg.mxu0
    %6216 = vmatpush.bf16.msra.mxu0 %v5807
    %6217 = vmatpush.bf16.msra.mxu0 %v5801
    %6218 = vmatpush.bf16.msra.mxu0 %v5795
    %6219 = vmatpush.bf16.msra.mxu0 %v5789
    %6220 = vmatpush.bf16.msra.mxu0 %v5783
    %6221 = vmatpush.bf16.msra.mxu0 %v5777
    %6222 = vmatpush.bf16.msra.mxu0 %v5771
    %6223 = vmatpush.bf16.msra.mxu0 %v5765
    %6224 = vmatmul.bf16.gmra.mxu0 %v4930
    %v6225 = vpop.f32.mrf.mxu0
    %v6226 = vadd.f32 %v6213, %v6225
    %v6227 = vpop.f32.mrf.mxu0
    %6228 = vdwg.mxu0
    %6229 = vmatpush.bf16.msra.mxu0 %v5855
    %6230 = vmatpush.bf16.msra.mxu0 %v5849
    %6231 = vmatpush.bf16.msra.mxu0 %v5843
    %6232 = vmatpush.bf16.msra.mxu0 %v5837
    %6233 = vmatpush.bf16.msra.mxu0 %v5831
    %6234 = vmatpush.bf16.msra.mxu0 %v5825
    %6235 = vmatpush.bf16.msra.mxu0 %v5819
    %6236 = vmatpush.bf16.msra.mxu0 %v5813
    %6237 = vmatmul.bf16.gmra.mxu0 %v4931
    %v6238 = vpop.f32.mrf.mxu0
    %v6239 = vadd.f32 %v6226, %v6238
    %v6240 = vpop.f32.mrf.mxu0
    %6241 = vdwg.mxu0
    %6242 = vmatpush.bf16.msra.mxu0 %v5903
    %6243 = vmatpush.bf16.msra.mxu0 %v5897
    %6244 = vmatpush.bf16.msra.mxu0 %v5891
    %6245 = vmatpush.bf16.msra.mxu0 %v5885
    %6246 = vmatpush.bf16.msra.mxu0 %v5879
    %6247 = vmatpush.bf16.msra.mxu0 %v5873
    %6248 = vmatpush.bf16.msra.mxu0 %v5867
    %6249 = vmatpush.bf16.msra.mxu0 %v5861
    %6250 = vmatmul.bf16.gmra.mxu0 %v4932
    %v6251 = vpop.f32.mrf.mxu0
    %v6252 = vadd.f32 %v6239, %v6251
    %v6253 = vpop.f32.mrf.mxu0
    %6254 = vdwg.mxu0
    %6255 = vmatpush.bf16.msra.mxu0 %v5760
    %6256 = vmatpush.bf16.msra.mxu0 %v5754
    %6257 = vmatpush.bf16.msra.mxu0 %v5748
    %6258 = vmatpush.bf16.msra.mxu0 %v5742
    %6259 = vmatpush.bf16.msra.mxu0 %v5736
    %6260 = vmatpush.bf16.msra.mxu0 %v5730
    %6261 = vmatpush.bf16.msra.mxu0 %v5724
    %6262 = vmatpush.bf16.msra.mxu0 %v5718
    %6263 = vmatmul.bf16.gmra.mxu0 %v4929
    %v6264 = vpop.f32.mrf.mxu0
    %v6265 = vadd.f32 %v5130, %v6264
    %v6266 = vpop.f32.mrf.mxu0
    %6267 = vdwg.mxu0
    %6268 = vmatpush.bf16.msra.mxu0 %v5808
    %6269 = vmatpush.bf16.msra.mxu0 %v5802
    %6270 = vmatpush.bf16.msra.mxu0 %v5796
    %6271 = vmatpush.bf16.msra.mxu0 %v5790
    %6272 = vmatpush.bf16.msra.mxu0 %v5784
    %6273 = vmatpush.bf16.msra.mxu0 %v5778
    %6274 = vmatpush.bf16.msra.mxu0 %v5772
    %6275 = vmatpush.bf16.msra.mxu0 %v5766
    %6276 = vmatmul.bf16.gmra.mxu0 %v4930
    %v6277 = vpop.f32.mrf.mxu0
    %v6278 = vadd.f32 %v6265, %v6277
    %v6279 = vpop.f32.mrf.mxu0
    %6280 = vdwg.mxu0
    %6281 = vmatpush.bf16.msra.mxu0 %v5856
    %6282 = vmatpush.bf16.msra.mxu0 %v5850
    %6283 = vmatpush.bf16.msra.mxu0 %v5844
    %6284 = vmatpush.bf16.msra.mxu0 %v5838
    %6285 = vmatpush.bf16.msra.mxu0 %v5832
    %6286 = vmatpush.bf16.msra.mxu0 %v5826
    %6287 = vmatpush.bf16.msra.mxu0 %v5820
    %6288 = vmatpush.bf16.msra.mxu0 %v5814
    %6289 = vmatmul.bf16.gmra.mxu0 %v4931
    %v6290 = vpop.f32.mrf.mxu0
    %v6291 = vadd.f32 %v6278, %v6290
    %v6292 = vpop.f32.mrf.mxu0
    %6293 = vdwg.mxu0
    %6294 = vmatpush.bf16.msra.mxu0 %v5904
    %6295 = vmatpush.bf16.msra.mxu0 %v5898
    %6296 = vmatpush.bf16.msra.mxu0 %v5892
    %6297 = vmatpush.bf16.msra.mxu0 %v5886
    %6298 = vmatpush.bf16.msra.mxu0 %v5880
    %6299 = vmatpush.bf16.msra.mxu0 %v5874
    %6300 = vmatpush.bf16.msra.mxu0 %v5868
    %6301 = vmatpush.bf16.msra.mxu0 %v5862
    %6302 = vmatmul.bf16.gmra.mxu0 %v4932
    %v6303 = vpop.f32.mrf.mxu0
    %v6304 = vadd.f32 %v6291, %v6303
    %v6305 = vpop.f32.mrf.mxu0
    %6306 = vdwg.mxu0
    %6307 = vmatpush.bf16.msra.mxu0 %v5761
    %6308 = vmatpush.bf16.msra.mxu0 %v5755
    %6309 = vmatpush.bf16.msra.mxu0 %v5749
    %6310 = vmatpush.bf16.msra.mxu0 %v5743
    %6311 = vmatpush.bf16.msra.mxu0 %v5737
    %6312 = vmatpush.bf16.msra.mxu0 %v5731
    %6313 = vmatpush.bf16.msra.mxu0 %v5725
    %6314 = vmatpush.bf16.msra.mxu0 %v5719
    %6315 = vmatmul.bf16.gmra.mxu0 %v4929
    %v6316 = vpop.f32.mrf.mxu0
    %v6317 = vadd.f32 %v5131, %v6316
    %v6318 = vpop.f32.mrf.mxu0
    %6319 = vdwg.mxu0
    %6320 = vmatpush.bf16.msra.mxu0 %v5809
    %6321 = vmatpush.bf16.msra.mxu0 %v5803
    %6322 = vmatpush.bf16.msra.mxu0 %v5797
    %6323 = vmatpush.bf16.msra.mxu0 %v5791
    %6324 = vmatpush.bf16.msra.mxu0 %v5785
    %6325 = vmatpush.bf16.msra.mxu0 %v5779
    %6326 = vmatpush.bf16.msra.mxu0 %v5773
    %6327 = vmatpush.bf16.msra.mxu0 %v5767
    %6328 = vmatmul.bf16.gmra.mxu0 %v4930
    %v6329 = vpop.f32.mrf.mxu0
    %v6330 = vadd.f32 %v6317, %v6329
    %v6331 = vpop.f32.mrf.mxu0
    %6332 = vdwg.mxu0
    %6333 = vmatpush.bf16.msra.mxu0 %v5857
    %6334 = vmatpush.bf16.msra.mxu0 %v5851
    %6335 = vmatpush.bf16.msra.mxu0 %v5845
    %6336 = vmatpush.bf16.msra.mxu0 %v5839
    %6337 = vmatpush.bf16.msra.mxu0 %v5833
    %6338 = vmatpush.bf16.msra.mxu0 %v5827
    %6339 = vmatpush.bf16.msra.mxu0 %v5821
    %6340 = vmatpush.bf16.msra.mxu0 %v5815
    %6341 = vmatmul.bf16.gmra.mxu0 %v4931
    %v6342 = vpop.f32.mrf.mxu0
    %v6343 = vadd.f32 %v6330, %v6342
    %v6344 = vpop.f32.mrf.mxu0
    %6345 = vdwg.mxu0
    %6346 = vmatpush.bf16.msra.mxu0 %v5905
    %6347 = vmatpush.bf16.msra.mxu0 %v5899
    %6348 = vmatpush.bf16.msra.mxu0 %v5893
    %6349 = vmatpush.bf16.msra.mxu0 %v5887
    %6350 = vmatpush.bf16.msra.mxu0 %v5881
    %6351 = vmatpush.bf16.msra.mxu0 %v5875
    %6352 = vmatpush.bf16.msra.mxu0 %v5869
    %6353 = vmatpush.bf16.msra.mxu0 %v5863
    %6354 = vmatmul.bf16.gmra.mxu0 %v4932
    %v6355 = vpop.f32.mrf.mxu0
    %v6356 = vadd.f32 %v6343, %v6355
    %v6357 = vpop.f32.mrf.mxu0
    %6358 = vdwg.mxu0
    %6359 = vmatpush.bf16.msra.mxu0 %v5762
    %6360 = vmatpush.bf16.msra.mxu0 %v5756
    %6361 = vmatpush.bf16.msra.mxu0 %v5750
    %6362 = vmatpush.bf16.msra.mxu0 %v5744
    %6363 = vmatpush.bf16.msra.mxu0 %v5738
    %6364 = vmatpush.bf16.msra.mxu0 %v5732
    %6365 = vmatpush.bf16.msra.mxu0 %v5726
    %6366 = vmatpush.bf16.msra.mxu0 %v5720
    %6367 = vmatmul.bf16.gmra.mxu0 %v4929
    %v6368 = vpop.f32.mrf.mxu0
    %v6369 = vadd.f32 %v5132, %v6368
    %v6370 = vpop.f32.mrf.mxu0
    %6371 = vdwg.mxu0
    %6372 = vmatpush.bf16.msra.mxu0 %v5810
    %6373 = vmatpush.bf16.msra.mxu0 %v5804
    %6374 = vmatpush.bf16.msra.mxu0 %v5798
    %6375 = vmatpush.bf16.msra.mxu0 %v5792
    %6376 = vmatpush.bf16.msra.mxu0 %v5786
    %6377 = vmatpush.bf16.msra.mxu0 %v5780
    %6378 = vmatpush.bf16.msra.mxu0 %v5774
    %6379 = vmatpush.bf16.msra.mxu0 %v5768
    %6380 = vmatmul.bf16.gmra.mxu0 %v4930
    %v6381 = vpop.f32.mrf.mxu0
    %v6382 = vadd.f32 %v6369, %v6381
    %v6383 = vpop.f32.mrf.mxu0
    %6384 = vdwg.mxu0
    %6385 = vmatpush.bf16.msra.mxu0 %v5858
    %6386 = vmatpush.bf16.msra.mxu0 %v5852
    %6387 = vmatpush.bf16.msra.mxu0 %v5846
    %6388 = vmatpush.bf16.msra.mxu0 %v5840
    %6389 = vmatpush.bf16.msra.mxu0 %v5834
    %6390 = vmatpush.bf16.msra.mxu0 %v5828
    %6391 = vmatpush.bf16.msra.mxu0 %v5822
    %6392 = vmatpush.bf16.msra.mxu0 %v5816
    %6393 = vmatmul.bf16.gmra.mxu0 %v4931
    %v6394 = vpop.f32.mrf.mxu0
    %v6395 = vadd.f32 %v6382, %v6394
    %v6396 = vpop.f32.mrf.mxu0
    %6397 = vdwg.mxu0
    %6398 = vmatpush.bf16.msra.mxu0 %v5906
    %6399 = vmatpush.bf16.msra.mxu0 %v5900
    %6400 = vmatpush.bf16.msra.mxu0 %v5894
    %6401 = vmatpush.bf16.msra.mxu0 %v5888
    %6402 = vmatpush.bf16.msra.mxu0 %v5882
    %6403 = vmatpush.bf16.msra.mxu0 %v5876
    %6404 = vmatpush.bf16.msra.mxu0 %v5870
    %6405 = vmatpush.bf16.msra.mxu0 %v5864
    %6406 = vmatmul.bf16.gmra.mxu0 %v4932
    %v6407 = vpop.f32.mrf.mxu0
    %v6408 = vadd.f32 %v6395, %v6407
    %v6409 = vpop.f32.mrf.mxu0
    %6410 = vdwg.mxu0
    %6411 = vst [vmem:[#allocation16] sm:$0xff] %v6148
    %6412 = vst [vmem:[#allocation16 + $0x8] sm:$0xff] %v6200
    %6413 = vst [vmem:[#allocation16 + $0x10] sm:$0xff] %v6252
    %6414 = vst [vmem:[#allocation16 + $0x18] sm:$0xff] %v6304
    %6415 = vst [vmem:[#allocation16 + $0x20] sm:$0xff] %v6356
    %6416 = vst [vmem:[#allocation16 + $0x28] sm:$0xff] %v6408
    // Predicated region
    $region70: #{tpu_custom_call.1} parent=1 // pred_check
      _
    $region71: #{tpu_custom_call.1} parent=1 // pred_check_branch
      %6418 = sbr.rel (0) target = $region73
    $region72: #{tpu_custom_call.1} parent=1 // pred_region
      %6420 = vsyncadd [#allocation4], 0
      %s6422 = sshll.u32 [#allocation16], 4
      %s6423 = int_to_ptr.vmem [resolvable:$true] %s6422
      %s6424 = sshll.u32 %s9, 4
      %s6425 = int_to_ptr.hbm [resolvable:$true] %s6424
      %6427 = dma.vmem_to_hbm [thread:$0]  %s6423, 768, %s6425, [#allocation4]
    $region73: #{tpu_custom_call.1} parent=1 // pred_fallthru
      _
    // Predicated region
    $region74: #{tpu_custom_call.1} parent=1 // pred_check
      _
    $region75: #{tpu_custom_call.1} parent=1 // pred_check_branch
      %6429 = sbr.rel (0) target = $region77
    $region76: #{tpu_custom_call.1} parent=1 // pred_region
      %6431 = dma.done [#allocation4], 768
    $region77: #{tpu_custom_call.1} parent=1 // pred_fallthru
      _
    %6432 = vsyncpa [#allocation3], 1
    %6433 = vsyncpa [#allocation6], 1
    %6434 = vsyncpa [#allocation9], 1
    %6435 = vsyncpa [#allocation12], 1
    %6436 = vsyncpa [#allocation15], 1
    %6437 = vsyncpa [#allocation4], 1

</llo_original>
